<compile_context>
chip_gen: v5e
topology: v5e:2x2
jax: 0.10.0
libtpu: 0.0.40
codegen_flags: <defaults>
</compile_context>

<pallas_src>
import functools
import math

import jax
import jax.numpy as jnp
from jax import lax
from jax.experimental import pallas as pl
from jax.experimental.pallas import tpu as pltpu


# ---------------------------------------------------------------------------
# Per-layer kernel: RelPartialLearnableDecoderLayer (attention + FFN), pre-LN.
# Grid is over batch; each grid point handles one batch element fully in VMEM.
# ---------------------------------------------------------------------------
def _decoder_layer_kernel(h_ref, mem_ref, pos_ref,
                          rwb_ref, rrb_ref,
                          qkv_w_ref, r_w_ref, o_w_ref,
                          ln1_g_ref, ln1_b_ref,
                          ff_w1_ref, ff_b1_ref, ff_w2_ref, ff_b2_ref,
                          ln2_g_ref, ln2_b_ref,
                          out_ref,
                          *, qlen, mlen, n_head, d_head, eps):
    d_model = n_head * d_head
    klen = qlen + mlen
    scale = 1.0 / math.sqrt(d_head)

    h = h_ref[0]          # (qlen, d_model) f32 residual stream
    mem = mem_ref[0]      # (mlen, d_model) f32
    pos = pos_ref[...]    # (klen, d_model) f32 sinusoidal relative positions

    def layernorm(x, g, b):
        mu = jnp.mean(x, axis=-1, keepdims=True)
        var = jnp.mean(jnp.square(x - mu), axis=-1, keepdims=True)
        return (x - mu) * lax.rsqrt(var + eps) * g + b

    def heads(x):  # (seq, d_model) -> (n_head, seq, d_head) via static lane slices
        return jnp.stack(
            [x[:, hd * d_head:(hd + 1) * d_head] for hd in range(n_head)], axis=0)

    # ---- relative multi-head attention (pre_lnorm) ----
    cat = jnp.concatenate([mem, h], axis=0)                         # (klen, d_model)
    cat_ln = layernorm(cat, ln1_g_ref[...], ln1_b_ref[...]).astype(jnp.bfloat16)

    w_heads = jnp.dot(cat_ln, qkv_w_ref[...],
                      preferred_element_type=jnp.float32)           # (klen, 3*d_model)
    r_head_k = jnp.dot(pos.astype(jnp.bfloat16), r_w_ref[...],
                       preferred_element_type=jnp.float32)          # (klen, d_model)

    w_q = w_heads[mlen:, 0:d_model]                                 # (qlen, d_model)
    rw_q = heads((w_q + rwb_ref[...]).astype(jnp.bfloat16))         # content bias
    rr_q = heads((w_q + rrb_ref[...]).astype(jnp.bfloat16))         # position bias
    k_h = heads(w_heads[:, d_model:2 * d_model].astype(jnp.bfloat16))
    v_h = heads(w_heads[:, 2 * d_model:3 * d_model].astype(jnp.bfloat16))
    r_h = heads(r_head_k.astype(jnp.bfloat16))

    dn_qk = (((2,), (2,)), ((0,), (0,)))     # (h,q,d) x (h,k,d) -> (h,q,k)
    ac = lax.dot_general(rw_q, k_h, dn_qk, preferred_element_type=jnp.float32)
    bd = lax.dot_general(rr_q, r_h, dn_qk, preferred_element_type=jnp.float32)

    # rel_shift: need bd[h, i, j + qlen-1-i] at every unmasked (i, j).
    # Uniform left roll by (qlen-1), then a per-row right roll by i decomposed
    # into its binary digits -> O(log qlen) masked uniform rolls total.
    def roll_right(x, amt):
        amt = amt % klen
        if amt == 0:
            return x
        return jnp.concatenate([x[..., klen - amt:], x[..., :klen - amt]], axis=-1)

    row_ids = lax.broadcasted_iota(jnp.int32, (qlen, klen), 0)
    col_ids = lax.broadcasted_iota(jnp.int32, (qlen, klen), 1)

    bd_s = roll_right(bd, klen - (qlen - 1))        # uniform left roll by qlen-1
    for bit in range((qlen - 1).bit_length()):
        rolled = roll_right(bd_s, 1 << bit)
        sel = ((row_ids >> bit) & 1) == 1           # rows whose shift has this bit
        bd_s = jnp.where(sel[None], rolled, bd_s)

    # causal + memory mask as a single precomputed additive bias (applied after scaling)
    mask_bias = jnp.where(col_ids > row_ids + mlen, -1e30, 0.0)     # (qlen, klen)

    score = (ac + bd_s) * scale + mask_bias[None]                   # (n_head, qlen, klen)
    score = score - jnp.max(score, axis=-1, keepdims=True)
    p = jnp.exp(score)
    p = p * pl.reciprocal(jnp.sum(p, axis=-1, keepdims=True), approx=True)

    dn_pv = (((2,), (1,)), ((0,), (0,)))     # (h,q,k) x (h,k,d) -> (h,q,d)
    av = lax.dot_general(p.astype(jnp.bfloat16), v_h, dn_pv,
                         preferred_element_type=jnp.float32)        # (n_head, qlen, d_head)

    attn_vec = jnp.concatenate([av[hd] for hd in range(n_head)], axis=-1)  # (qlen, d_model)
    attn_out = jnp.dot(attn_vec.astype(jnp.bfloat16), o_w_ref[...],
                       preferred_element_type=jnp.float32)          # o_net has no bias
    h1 = h + attn_out                                               # pre_lnorm residual

    # ---- position-wise FFN (pre_lnorm) ----
    h1_ln = layernorm(h1, ln2_g_ref[...], ln2_b_ref[...]).astype(jnp.bfloat16)
    ff = jnp.dot(h1_ln, ff_w1_ref[...],
                 preferred_element_type=jnp.float32) + ff_b1_ref[...]
    ff = jnp.maximum(ff, 0.0).astype(jnp.bfloat16)
    ff = jnp.dot(ff, ff_w2_ref[...],
                 preferred_element_type=jnp.float32) + ff_b2_ref[...]
    out_ref[0] = h1 + ff


def decoder_layer(h, mem, pos_emb, r_w_bias, r_r_bias, lp, *, n_head, d_head, eps):
    bsz, qlen, d_model = h.shape
    mlen = mem.shape[1]

    kern = functools.partial(_decoder_layer_kernel, qlen=qlen, mlen=mlen,
                             n_head=n_head, d_head=d_head, eps=eps)

    def batch_spec(seq, width):
        return pl.BlockSpec((1, seq, width), lambda b: (b, 0, 0))

    def full_spec(arr):
        nd = arr.ndim
        return pl.BlockSpec(arr.shape, lambda b, nd=nd: (0,) * nd)

    ins = [h, mem, pos_emb, r_w_bias, r_r_bias,
           lp['qkv_w'], lp['r_w'], lp['o_w'],
           lp['ln1_g'], lp['ln1_b'],
           lp['ff_w1'], lp['ff_b1'], lp['ff_w2'], lp['ff_b2'],
           lp['ln2_g'], lp['ln2_b']]
    in_specs = ([batch_spec(qlen, d_model), batch_spec(mlen, d_model)]
                + [full_spec(a) for a in ins[2:]])

    return pl.pallas_call(
        kern,
        out_shape=jax.ShapeDtypeStruct((bsz, qlen, d_model), jnp.float32),
        grid=(bsz,),
        in_specs=in_specs,
        out_specs=batch_spec(qlen, d_model),
        compiler_params=pltpu.CompilerParams(
            dimension_semantics=("parallel",),
            vmem_limit_bytes=64 * 1024 * 1024),
    )(*ins)


# ---------------------------------------------------------------------------
# Final vocab projection: logits = x @ W + b, tiled over (vocab, rows) so the
# (d_model, n_token) weight streams through VMEM (double-buffered by Pallas).
# ---------------------------------------------------------------------------
def _linear_kernel(x_ref, w_ref, b_ref, o_ref):
    o_ref[...] = (jnp.dot(x_ref[...].astype(jnp.bfloat16), w_ref[...],
                          preferred_element_type=jnp.float32) + b_ref[...])


def linear_proj(x2d, w, b, *, tm=256, tn=512):
    M, K = x2d.shape
    N = w.shape[1]
    tm = min(tm, M)
    tn = min(tn, N)
    return pl.pallas_call(
        _linear_kernel,
        out_shape=jax.ShapeDtypeStruct((M, N), jnp.float32),
        # vocab tiles are the outer axis so each weight tile is DMA'd once and
        # reused across all row tiles.
        grid=(pl.cdiv(N, tn), pl.cdiv(M, tm)),
        in_specs=[pl.BlockSpec((tm, K), lambda j, i: (i, 0)),
                  pl.BlockSpec((K, tn), lambda j, i: (0, j)),
                  pl.BlockSpec((1, tn), lambda j, i: (0, j))],
        out_specs=pl.BlockSpec((tm, tn), lambda j, i: (i, j)),
        compiler_params=pltpu.CompilerParams(
            dimension_semantics=("parallel", "parallel"),
            vmem_limit_bytes=64 * 1024 * 1024),
    )(x2d, w, b)


# ---------------------------------------------------------------------------
# Full model forward (glue + Pallas kernels)
# ---------------------------------------------------------------------------
def model_forward(input_ids, params, cfg):
    bsz, qlen = input_ids.shape
    d_model = cfg['d_model']
    mlen = cfg['mem_len']
    klen = mlen + qlen

    # adaptive embedding (single bucket) + sqrt(d_model) scale; dropout = identity (eval)
    word_emb = params['emb'][input_ids] * math.sqrt(d_model)        # (bsz, qlen, d_model)

    # sinusoidal relative positional embedding, pos_seq = klen-1 .. 0 (clamp_len < 0)
    pos_seq = jnp.arange(klen - 1, -1, -1, dtype=jnp.float32)
    inv_freq = 1.0 / (10000.0 ** (jnp.arange(0, d_model, 2, dtype=jnp.float32) / d_model))
    sinusoid = jnp.outer(pos_seq, inv_freq)
    pos_emb = jnp.concatenate([jnp.sin(sinusoid), jnp.cos(sinusoid)], axis=-1)

    # init_mems: zero-initialized memories of length mem_len for every layer
    mem = jnp.zeros((bsz, mlen, d_model), jnp.float32)

    # r_w_bias / r_r_bias are shared across layers (untie_r=False); flatten to a
    # lane row so the kernel adds them with a cheap 2-D broadcast before the head split.
    rwb = params['r_w_bias'].reshape(1, d_model)
    rrb = params['r_r_bias'].reshape(1, d_model)

    h = word_emb
    for lp in params['layers']:
        h = decoder_layer(h, mem, pos_emb, rwb, rrb, lp,
                          n_head=cfg['n_head'], d_head=cfg['d_head'],
                          eps=cfg['eps'])

    # final dropout (identity in eval) + tiled vocab projection -> logits
    logits = linear_proj(h.reshape(bsz * qlen, d_model),
                         params['lin_w'], params['lin_b'])
    return logits.reshape(bsz, qlen, -1)


# ---------------------------------------------------------------------------
# Deterministic synthetic parameter init (init_std = 0.02, like the module);
# matmul weights stored in bf16, biases/LN params/embedding in f32.
# ---------------------------------------------------------------------------
def init_params(key, cfg):
    std = 0.02
    d_model, d_ff, n_head, d_head, vocab = (cfg['d_model'], cfg['d_ff'],
                                            cfg['n_head'], cfg['d_head'],
                                            cfg['vocab'])

    def nrm(k, shape, dtype=jnp.bfloat16):
        return (std * jax.random.normal(k, shape, dtype=jnp.float32)).astype(dtype)

    keys = jax.random.split(key, 5 + 5 * cfg['n_layer'])
    ki = iter(keys)

    params = {
        'emb': nrm(next(ki), (vocab, d_model), jnp.float32),
        'r_w_bias': nrm(next(ki), (n_head, d_head), jnp.float32),   # untie_r=False: shared
        'r_r_bias': nrm(next(ki), (n_head, d_head), jnp.float32),
        'lin_w': nrm(next(ki), (d_model, vocab)),
        'lin_b': jnp.zeros((1, vocab), jnp.float32),
        'layers': [],
    }
    for _ in range(cfg['n_layer']):
        lp = {
            'qkv_w': nrm(next(ki), (d_model, 3 * d_model)),   # qkv_net (no bias)
            'r_w':   nrm(next(ki), (d_model, d_model)),       # r_net   (no bias)
            'o_w':   nrm(next(ki), (d_model, d_model)),       # o_net   (no bias)
            'ln1_g': jnp.ones((1, d_model), jnp.float32),
            'ln1_b': jnp.zeros((1, d_model), jnp.float32),
            'ff_w1': nrm(next(ki), (d_model, d_ff)),
            'ff_b1': jnp.zeros((1, d_ff), jnp.float32),
            'ff_w2': nrm(next(ki), (d_ff, d_model)),
            'ff_b2': jnp.zeros((1, d_model), jnp.float32),
            'ln2_g': jnp.ones((1, d_model), jnp.float32),
            'ln2_b': jnp.zeros((1, d_model), jnp.float32),
        }
        params['layers'].append(lp)
    return params


if __name__ == "__main__":
    # Toy config mirroring the module's structure (original: n_layer=12,
    # d_model=512, n_head=8, d_head=64, d_ff=2048, mem_len=512, vocab=len(dict)).
    # Shapes are kept lane-dense (last dims are multiples of 128).
    cfg = dict(vocab=256, d_model=128, n_head=4, d_head=32, d_ff=256,
               n_layer=2, mem_len=8, eps=1e-3)

    key = jax.random.PRNGKey(0)
    k_param, k_data = jax.random.split(key)
    params = init_params(k_param, cfg)

    bsz, qlen = 2, 8
    input_ids = jax.random.randint(k_data, (bsz, qlen), 0, cfg['vocab'],
                                   dtype=jnp.int32)

    fwd = jax.jit(functools.partial(model_forward, cfg=cfg))
    logits = fwd(input_ids, params)
    logits = jax.block_until_ready(logits)

    assert logits.shape == (bsz, qlen, cfg['vocab'])
    assert bool(jnp.all(jnp.isfinite(logits)))
    print("KERNEL_OK")
</pallas_src>

<mosaic_0001>
module attributes {stable_mosaic.version = 11 : i64} {
  func.func @_decoder_layer_kernel(%arg0: i32, %arg1: memref<1x8x128xf32, #tpu.memory_space<vmem>>, %arg2: memref<1x8x128xf32, #tpu.memory_space<vmem>>, %arg3: memref<16x128xf32, #tpu.memory_space<vmem>>, %arg4: memref<1x128xf32, #tpu.memory_space<vmem>>, %arg5: memref<1x128xf32, #tpu.memory_space<vmem>>, %arg6: memref<128x384xbf16, #tpu.memory_space<vmem>>, %arg7: memref<128x128xbf16, #tpu.memory_space<vmem>>, %arg8: memref<128x128xbf16, #tpu.memory_space<vmem>>, %arg9: memref<1x128xf32, #tpu.memory_space<vmem>>, %arg10: memref<1x128xf32, #tpu.memory_space<vmem>>, %arg11: memref<128x256xbf16, #tpu.memory_space<vmem>>, %arg12: memref<1x256xf32, #tpu.memory_space<vmem>>, %arg13: memref<256x128xbf16, #tpu.memory_space<vmem>>, %arg14: memref<1x128xf32, #tpu.memory_space<vmem>>, %arg15: memref<1x128xf32, #tpu.memory_space<vmem>>, %arg16: memref<1x128xf32, #tpu.memory_space<vmem>>, %arg17: memref<1x8x128xf32, #tpu.memory_space<vmem>>) attributes {dimension_semantics = [#tpu.dimension_semantics<parallel>], iteration_bounds = array<i64: 2>, scalar_prefetch = 0 : i64, scratch_operands = 0 : i64, tpu.core_type = #tpu.core_type<tc>, window_params = [{transform_indices = @transform_0, window_bounds = array<i64: 1, 8, 128>}, {transform_indices = @transform_1, window_bounds = array<i64: 1, 8, 128>}, {pipeline_mode = #tpu.pipeline_mode<synchronous>, transform_indices = @transform_2, window_bounds = array<i64: 16, 128>}, {pipeline_mode = #tpu.pipeline_mode<synchronous>, transform_indices = @transform_3, window_bounds = array<i64: 1, 128>}, {pipeline_mode = #tpu.pipeline_mode<synchronous>, transform_indices = @transform_4, window_bounds = array<i64: 1, 128>}, {pipeline_mode = #tpu.pipeline_mode<synchronous>, transform_indices = @transform_5, window_bounds = array<i64: 128, 384>}, {pipeline_mode = #tpu.pipeline_mode<synchronous>, transform_indices = @transform_6, window_bounds = array<i64: 128, 128>}, {pipeline_mode = #tpu.pipeline_mode<synchronous>, transform_indices = @transform_7, window_bounds = array<i64: 128, 128>}, {pipeline_mode = #tpu.pipeline_mode<synchronous>, transform_indices = @transform_8, window_bounds = array<i64: 1, 128>}, {pipeline_mode = #tpu.pipeline_mode<synchronous>, transform_indices = @transform_9, window_bounds = array<i64: 1, 128>}, {pipeline_mode = #tpu.pipeline_mode<synchronous>, transform_indices = @transform_10, window_bounds = array<i64: 128, 256>}, {pipeline_mode = #tpu.pipeline_mode<synchronous>, transform_indices = @transform_11, window_bounds = array<i64: 1, 256>}, {pipeline_mode = #tpu.pipeline_mode<synchronous>, transform_indices = @transform_12, window_bounds = array<i64: 256, 128>}, {pipeline_mode = #tpu.pipeline_mode<synchronous>, transform_indices = @transform_13, window_bounds = array<i64: 1, 128>}, {pipeline_mode = #tpu.pipeline_mode<synchronous>, transform_indices = @transform_14, window_bounds = array<i64: 1, 128>}, {pipeline_mode = #tpu.pipeline_mode<synchronous>, transform_indices = @transform_15, window_bounds = array<i64: 1, 128>}, {transform_indices = @transform_16, window_bounds = array<i64: 1, 8, 128>}]} {
    %c0 = arith.constant 0 : index
    %c0_0 = arith.constant 0 : index
    %c0_1 = arith.constant 0 : index
    %0 = vector.load %arg1[%c0, %c0_0, %c0_1] : memref<1x8x128xf32, #tpu.memory_space<vmem>>, vector<1x8x128xf32>
    %1 = vector.shape_cast %0 : vector<1x8x128xf32> to vector<8x128xf32>
    %c0_2 = arith.constant 0 : index
    %c0_3 = arith.constant 0 : index
    %c0_4 = arith.constant 0 : index
    %2 = vector.load %arg2[%c0_2, %c0_3, %c0_4] : memref<1x8x128xf32, #tpu.memory_space<vmem>>, vector<1x8x128xf32>
    %3 = vector.shape_cast %2 : vector<1x8x128xf32> to vector<8x128xf32>
    %c0_5 = arith.constant 0 : index
    %c0_6 = arith.constant 0 : index
    %4 = vector.load %arg3[%c0_5, %c0_6] : memref<16x128xf32, #tpu.memory_space<vmem>>, vector<16x128xf32>
    %5 = tpu.concatenate %3, %1 in 0 : vector<8x128xf32>, vector<8x128xf32> -> vector<16x128xf32>
    %c0_7 = arith.constant 0 : index
    %c0_8 = arith.constant 0 : index
    %6 = vector.load %arg9[%c0_7, %c0_8] : memref<1x128xf32, #tpu.memory_space<vmem>>, vector<1x128xf32>
    %c0_9 = arith.constant 0 : index
    %c0_10 = arith.constant 0 : index
    %7 = vector.load %arg10[%c0_9, %c0_10] : memref<1x128xf32, #tpu.memory_space<vmem>>, vector<1x128xf32>
    %cst = arith.constant dense<0.000000e+00> : vector<16xf32>
    %8 = vector.multi_reduction <add>, %5, %cst [1] : vector<16x128xf32> to vector<16xf32>
    %9 = vector.shape_cast %8 : vector<16xf32> to vector<16x1xf32>
    %cst_11 = arith.constant 1.280000e+02 : f32
    %10 = vector.broadcast %cst_11 : f32 to vector<16x1xf32>
    %11 = arith.divf %9, %10 : vector<16x1xf32>
    %12 = vector.broadcast %11 : vector<16x1xf32> to vector<16x128xf32>
    %13 = arith.subf %5, %12 : vector<16x128xf32>
    %14 = arith.mulf %13, %13 : vector<16x128xf32>
    %cst_12 = arith.constant dense<0.000000e+00> : vector<16xf32>
    %15 = vector.multi_reduction <add>, %14, %cst_12 [1] : vector<16x128xf32> to vector<16xf32>
    %16 = vector.shape_cast %15 : vector<16xf32> to vector<16x1xf32>
    %cst_13 = arith.constant 1.280000e+02 : f32
    %17 = vector.broadcast %cst_13 : f32 to vector<16x1xf32>
    %18 = arith.divf %16, %17 : vector<16x1xf32>
    %19 = vector.broadcast %11 : vector<16x1xf32> to vector<16x128xf32>
    %20 = arith.subf %5, %19 : vector<16x128xf32>
    %cst_14 = arith.constant 1.000000e-03 : f32
    %21 = vector.broadcast %cst_14 : f32 to vector<16x1xf32>
    %22 = arith.addf %18, %21 : vector<16x1xf32>
    %23 = math.rsqrt %22 : vector<16x1xf32>
    %24 = vector.broadcast %23 : vector<16x1xf32> to vector<16x128xf32>
    %25 = arith.mulf %20, %24 : vector<16x128xf32>
    %26 = vector.broadcast %6 : vector<1x128xf32> to vector<16x128xf32>
    %27 = arith.mulf %25, %26 : vector<16x128xf32>
    %28 = vector.broadcast %7 : vector<1x128xf32> to vector<16x128xf32>
    %29 = arith.addf %27, %28 : vector<16x128xf32>
    %30 = arith.truncf %29 : vector<16x128xf32> to vector<16x128xbf16>
    %c0_15 = arith.constant 0 : index
    %c0_16 = arith.constant 0 : index
    %31 = vector.load %arg6[%c0_15, %c0_16] : memref<128x384xbf16, #tpu.memory_space<vmem>>, vector<128x384xbf16>
    %cst_17 = arith.constant dense<0.000000e+00> : vector<16x384xf32>
    %32 = tpu.matmul %30, %31, %cst_17 {dimension_numbers = #tpu.dot_dimension_numbers<[1], [0], [0], [1], [0, 0, 1, 1], [], []>} : vector<16x128xbf16>, vector<128x384xbf16>, vector<16x384xf32> -> vector<16x384xf32>
    %33 = arith.truncf %4 : vector<16x128xf32> to vector<16x128xbf16>
    %c0_18 = arith.constant 0 : index
    %c0_19 = arith.constant 0 : index
    %34 = vector.load %arg7[%c0_18, %c0_19] : memref<128x128xbf16, #tpu.memory_space<vmem>>, vector<128x128xbf16>
    %cst_20 = arith.constant dense<0.000000e+00> : vector<16x128xf32>
    %35 = tpu.matmul %33, %34, %cst_20 {dimension_numbers = #tpu.dot_dimension_numbers<[1], [0], [0], [1], [0, 0, 1, 1], [], []>} : vector<16x128xbf16>, vector<128x128xbf16>, vector<16x128xf32> -> vector<16x128xf32>
    %36 = vector.extract_strided_slice %32 {offsets = [8, 0], sizes = [8, 128], strides = [1, 1]} : vector<16x384xf32> to vector<8x128xf32>
    %c0_21 = arith.constant 0 : index
    %c0_22 = arith.constant 0 : index
    %37 = vector.load %arg4[%c0_21, %c0_22] : memref<1x128xf32, #tpu.memory_space<vmem>>, vector<1x128xf32>
    %38 = vector.broadcast %37 : vector<1x128xf32> to vector<8x128xf32>
    %39 = arith.addf %36, %38 : vector<8x128xf32>
    %40 = arith.truncf %39 : vector<8x128xf32> to vector<8x128xbf16>
    %41 = vector.extract_strided_slice %40 {offsets = [0, 0], sizes = [8, 32], strides = [1, 1]} : vector<8x128xbf16> to vector<8x32xbf16>
    %42 = vector.extract_strided_slice %40 {offsets = [0, 32], sizes = [8, 32], strides = [1, 1]} : vector<8x128xbf16> to vector<8x32xbf16>
    %43 = vector.extract_strided_slice %40 {offsets = [0, 64], sizes = [8, 32], strides = [1, 1]} : vector<8x128xbf16> to vector<8x32xbf16>
    %44 = vector.extract_strided_slice %40 {offsets = [0, 96], sizes = [8, 32], strides = [1, 1]} : vector<8x128xbf16> to vector<8x32xbf16>
    %45 = vector.shape_cast %41 : vector<8x32xbf16> to vector<1x8x32xbf16>
    %46 = vector.shape_cast %42 : vector<8x32xbf16> to vector<1x8x32xbf16>
    %47 = vector.shape_cast %43 : vector<8x32xbf16> to vector<1x8x32xbf16>
    %48 = vector.shape_cast %44 : vector<8x32xbf16> to vector<1x8x32xbf16>
    %49 = tpu.concatenate %45, %46, %47, %48 in 0 : vector<1x8x32xbf16>, vector<1x8x32xbf16>, vector<1x8x32xbf16>, vector<1x8x32xbf16> -> vector<4x8x32xbf16>
    %c0_23 = arith.constant 0 : index
    %c0_24 = arith.constant 0 : index
    %50 = vector.load %arg5[%c0_23, %c0_24] : memref<1x128xf32, #tpu.memory_space<vmem>>, vector<1x128xf32>
    %51 = vector.broadcast %50 : vector<1x128xf32> to vector<8x128xf32>
    %52 = arith.addf %36, %51 : vector<8x128xf32>
    %53 = arith.truncf %52 : vector<8x128xf32> to vector<8x128xbf16>
    %54 = vector.extract_strided_slice %53 {offsets = [0, 0], sizes = [8, 32], strides = [1, 1]} : vector<8x128xbf16> to vector<8x32xbf16>
    %55 = vector.extract_strided_slice %53 {offsets = [0, 32], sizes = [8, 32], strides = [1, 1]} : vector<8x128xbf16> to vector<8x32xbf16>
    %56 = vector.extract_strided_slice %53 {offsets = [0, 64], sizes = [8, 32], strides = [1, 1]} : vector<8x128xbf16> to vector<8x32xbf16>
    %57 = vector.extract_strided_slice %53 {offsets = [0, 96], sizes = [8, 32], strides = [1, 1]} : vector<8x128xbf16> to vector<8x32xbf16>
    %58 = vector.shape_cast %54 : vector<8x32xbf16> to vector<1x8x32xbf16>
    %59 = vector.shape_cast %55 : vector<8x32xbf16> to vector<1x8x32xbf16>
    %60 = vector.shape_cast %56 : vector<8x32xbf16> to vector<1x8x32xbf16>
    %61 = vector.shape_cast %57 : vector<8x32xbf16> to vector<1x8x32xbf16>
    %62 = tpu.concatenate %58, %59, %60, %61 in 0 : vector<1x8x32xbf16>, vector<1x8x32xbf16>, vector<1x8x32xbf16>, vector<1x8x32xbf16> -> vector<4x8x32xbf16>
    %63 = vector.extract_strided_slice %32 {offsets = [0, 128], sizes = [16, 128], strides = [1, 1]} : vector<16x384xf32> to vector<16x128xf32>
    %64 = arith.truncf %63 : vector<16x128xf32> to vector<16x128xbf16>
    %65 = vector.extract_strided_slice %64 {offsets = [0, 0], sizes = [16, 32], strides = [1, 1]} : vector<16x128xbf16> to vector<16x32xbf16>
    %66 = vector.extract_strided_slice %64 {offsets = [0, 32], sizes = [16, 32], strides = [1, 1]} : vector<16x128xbf16> to vector<16x32xbf16>
    %67 = vector.extract_strided_slice %64 {offsets = [0, 64], sizes = [16, 32], strides = [1, 1]} : vector<16x128xbf16> to vector<16x32xbf16>
    %68 = vector.extract_strided_slice %64 {offsets = [0, 96], sizes = [16, 32], strides = [1, 1]} : vector<16x128xbf16> to vector<16x32xbf16>
    %69 = vector.shape_cast %65 : vector<16x32xbf16> to vector<1x16x32xbf16>
    %70 = vector.shape_cast %66 : vector<16x32xbf16> to vector<1x16x32xbf16>
    %71 = vector.shape_cast %67 : vector<16x32xbf16> to vector<1x16x32xbf16>
    %72 = vector.shape_cast %68 : vector<16x32xbf16> to vector<1x16x32xbf16>
    %73 = tpu.concatenate %69, %70, %71, %72 in 0 : vector<1x16x32xbf16>, vector<1x16x32xbf16>, vector<1x16x32xbf16>, vector<1x16x32xbf16> -> vector<4x16x32xbf16>
    %74 = vector.extract_strided_slice %32 {offsets = [0, 256], sizes = [16, 128], strides = [1, 1]} : vector<16x384xf32> to vector<16x128xf32>
    %75 = arith.truncf %74 : vector<16x128xf32> to vector<16x128xbf16>
    %76 = vector.extract_strided_slice %75 {offsets = [0, 0], sizes = [16, 32], strides = [1, 1]} : vector<16x128xbf16> to vector<16x32xbf16>
    %77 = vector.extract_strided_slice %75 {offsets = [0, 32], sizes = [16, 32], strides = [1, 1]} : vector<16x128xbf16> to vector<16x32xbf16>
    %78 = vector.extract_strided_slice %75 {offsets = [0, 64], sizes = [16, 32], strides = [1, 1]} : vector<16x128xbf16> to vector<16x32xbf16>
    %79 = vector.extract_strided_slice %75 {offsets = [0, 96], sizes = [16, 32], strides = [1, 1]} : vector<16x128xbf16> to vector<16x32xbf16>
    %80 = vector.shape_cast %76 : vector<16x32xbf16> to vector<1x16x32xbf16>
    %81 = vector.shape_cast %77 : vector<16x32xbf16> to vector<1x16x32xbf16>
    %82 = vector.shape_cast %78 : vector<16x32xbf16> to vector<1x16x32xbf16>
    %83 = vector.shape_cast %79 : vector<16x32xbf16> to vector<1x16x32xbf16>
    %84 = tpu.concatenate %80, %81, %82, %83 in 0 : vector<1x16x32xbf16>, vector<1x16x32xbf16>, vector<1x16x32xbf16>, vector<1x16x32xbf16> -> vector<4x16x32xbf16>
    %85 = arith.truncf %35 : vector<16x128xf32> to vector<16x128xbf16>
    %86 = vector.extract_strided_slice %85 {offsets = [0, 0], sizes = [16, 32], strides = [1, 1]} : vector<16x128xbf16> to vector<16x32xbf16>
    %87 = vector.extract_strided_slice %85 {offsets = [0, 32], sizes = [16, 32], strides = [1, 1]} : vector<16x128xbf16> to vector<16x32xbf16>
    %88 = vector.extract_strided_slice %85 {offsets = [0, 64], sizes = [16, 32], strides = [1, 1]} : vector<16x128xbf16> to vector<16x32xbf16>
    %89 = vector.extract_strided_slice %85 {offsets = [0, 96], sizes = [16, 32], strides = [1, 1]} : vector<16x128xbf16> to vector<16x32xbf16>
    %90 = vector.shape_cast %86 : vector<16x32xbf16> to vector<1x16x32xbf16>
    %91 = vector.shape_cast %87 : vector<16x32xbf16> to vector<1x16x32xbf16>
    %92 = vector.shape_cast %88 : vector<16x32xbf16> to vector<1x16x32xbf16>
    %93 = vector.shape_cast %89 : vector<16x32xbf16> to vector<1x16x32xbf16>
    %94 = tpu.concatenate %90, %91, %92, %93 in 0 : vector<1x16x32xbf16>, vector<1x16x32xbf16>, vector<1x16x32xbf16>, vector<1x16x32xbf16> -> vector<4x16x32xbf16>
    %cst_25 = arith.constant dense<0.000000e+00> : vector<4x8x16xf32>
    %95 = tpu.matmul %49, %73, %cst_25 {dimension_numbers = #tpu.dot_dimension_numbers<[2], [2], [1], [1], [0, 0, 0, 1, 1, 1], [0], [0]>} : vector<4x8x32xbf16>, vector<4x16x32xbf16>, vector<4x8x16xf32> -> vector<4x8x16xf32>
    %cst_26 = arith.constant dense<0.000000e+00> : vector<4x8x16xf32>
    %96 = tpu.matmul %62, %94, %cst_26 {dimension_numbers = #tpu.dot_dimension_numbers<[2], [2], [1], [1], [0, 0, 0, 1, 1, 1], [0], [0]>} : vector<4x8x32xbf16>, vector<4x16x32xbf16>, vector<4x8x16xf32> -> vector<4x8x16xf32>
    %97 = tpu.iota {dimensions = array<i32: 0>} : vector<8x16xi32>
    %98 = tpu.iota {dimensions = array<i32: 1>} : vector<8x16xi32>
    %99 = vector.extract_strided_slice %96 {offsets = [0, 0, 7], sizes = [4, 8, 9], strides = [1, 1, 1]} : vector<4x8x16xf32> to vector<4x8x9xf32>
    %100 = vector.extract_strided_slice %96 {offsets = [0, 0, 0], sizes = [4, 8, 7], strides = [1, 1, 1]} : vector<4x8x16xf32> to vector<4x8x7xf32>
    %101 = tpu.concatenate %99, %100 in 2 : vector<4x8x9xf32>, vector<4x8x7xf32> -> vector<4x8x16xf32>
    %102 = vector.extract_strided_slice %101 {offsets = [0, 0, 15], sizes = [4, 8, 1], strides = [1, 1, 1]} : vector<4x8x16xf32> to vector<4x8x1xf32>
    %103 = vector.extract_strided_slice %101 {offsets = [0, 0, 0], sizes = [4, 8, 15], strides = [1, 1, 1]} : vector<4x8x16xf32> to vector<4x8x15xf32>
    %104 = tpu.concatenate %102, %103 in 2 : vector<4x8x1xf32>, vector<4x8x15xf32> -> vector<4x8x16xf32>
    %c0_i32 = arith.constant 0 : i32
    %105 = vector.broadcast %c0_i32 : i32 to vector<8x16xi32>
    %106 = arith.shrsi %97, %105 : vector<8x16xi32>
    %c1_i32 = arith.constant 1 : i32
    %107 = vector.broadcast %c1_i32 : i32 to vector<8x16xi32>
    %108 = arith.andi %106, %107 : vector<8x16xi32>
    %c1_i32_27 = arith.constant 1 : i32
    %109 = vector.broadcast %c1_i32_27 : i32 to vector<8x16xi32>
    %110 = arith.cmpi eq, %108, %109 : vector<8x16xi32>
    %111 = vector.shape_cast %110 : vector<8x16xi1> to vector<1x8x16xi1>
    %112 = vector.shape_cast %111 : vector<1x8x16xi1> to vector<1x8x16xi1>
    %113 = vector.broadcast %112 : vector<1x8x16xi1> to vector<4x8x16xi1>
    %114 = arith.select %113, %104, %101 : vector<4x8x16xi1>, vector<4x8x16xf32>
    %115 = vector.extract_strided_slice %114 {offsets = [0, 0, 14], sizes = [4, 8, 2], strides = [1, 1, 1]} : vector<4x8x16xf32> to vector<4x8x2xf32>
    %116 = vector.extract_strided_slice %114 {offsets = [0, 0, 0], sizes = [4, 8, 14], strides = [1, 1, 1]} : vector<4x8x16xf32> to vector<4x8x14xf32>
    %117 = tpu.concatenate %115, %116 in 2 : vector<4x8x2xf32>, vector<4x8x14xf32> -> vector<4x8x16xf32>
    %c1_i32_28 = arith.constant 1 : i32
    %118 = vector.broadcast %c1_i32_28 : i32 to vector<8x16xi32>
    %119 = arith.shrsi %97, %118 : vector<8x16xi32>
    %c1_i32_29 = arith.constant 1 : i32
    %120 = vector.broadcast %c1_i32_29 : i32 to vector<8x16xi32>
    %121 = arith.andi %119, %120 : vector<8x16xi32>
    %c1_i32_30 = arith.constant 1 : i32
    %122 = vector.broadcast %c1_i32_30 : i32 to vector<8x16xi32>
    %123 = arith.cmpi eq, %121, %122 : vector<8x16xi32>
    %124 = vector.shape_cast %123 : vector<8x16xi1> to vector<1x8x16xi1>
    %125 = vector.shape_cast %124 : vector<1x8x16xi1> to vector<1x8x16xi1>
    %126 = vector.broadcast %125 : vector<1x8x16xi1> to vector<4x8x16xi1>
    %127 = arith.select %126, %117, %114 : vector<4x8x16xi1>, vector<4x8x16xf32>
    %128 = vector.extract_strided_slice %127 {offsets = [0, 0, 12], sizes = [4, 8, 4], strides = [1, 1, 1]} : vector<4x8x16xf32> to vector<4x8x4xf32>
    %129 = vector.extract_strided_slice %127 {offsets = [0, 0, 0], sizes = [4, 8, 12], strides = [1, 1, 1]} : vector<4x8x16xf32> to vector<4x8x12xf32>
    %130 = tpu.concatenate %128, %129 in 2 : vector<4x8x4xf32>, vector<4x8x12xf32> -> vector<4x8x16xf32>
    %c2_i32 = arith.constant 2 : i32
    %131 = vector.broadcast %c2_i32 : i32 to vector<8x16xi32>
    %132 = arith.shrsi %97, %131 : vector<8x16xi32>
    %c1_i32_31 = arith.constant 1 : i32
    %133 = vector.broadcast %c1_i32_31 : i32 to vector<8x16xi32>
    %134 = arith.andi %132, %133 : vector<8x16xi32>
    %c1_i32_32 = arith.constant 1 : i32
    %135 = vector.broadcast %c1_i32_32 : i32 to vector<8x16xi32>
    %136 = arith.cmpi eq, %134, %135 : vector<8x16xi32>
    %137 = vector.shape_cast %136 : vector<8x16xi1> to vector<1x8x16xi1>
    %138 = vector.shape_cast %137 : vector<1x8x16xi1> to vector<1x8x16xi1>
    %139 = vector.broadcast %138 : vector<1x8x16xi1> to vector<4x8x16xi1>
    %140 = arith.select %139, %130, %127 : vector<4x8x16xi1>, vector<4x8x16xf32>
    %c8_i32 = arith.constant 8 : i32
    %141 = vector.broadcast %c8_i32 : i32 to vector<8x16xi32>
    %142 = arith.addi %97, %141 : vector<8x16xi32>
    %143 = arith.cmpi sgt, %98, %142 : vector<8x16xi32>
    %cst_33 = arith.constant -1.000000e+30 : f32
    %cst_34 = arith.constant 0.000000e+00 : f32
    %144 = vector.broadcast %cst_33 : f32 to vector<8x16xf32>
    %145 = vector.broadcast %cst_34 : f32 to vector<8x16xf32>
    %146 = arith.select %143, %144, %145 : vector<8x16xi1>, vector<8x16xf32>
    %147 = arith.addf %95, %140 : vector<4x8x16xf32>
    %cst_35 = arith.constant 0.176776692 : f32
    %148 = vector.broadcast %cst_35 : f32 to vector<4x8x16xf32>
    %149 = arith.mulf %147, %148 : vector<4x8x16xf32>
    %150 = vector.shape_cast %146 : vector<8x16xf32> to vector<1x8x16xf32>
    %151 = vector.broadcast %150 : vector<1x8x16xf32> to vector<4x8x16xf32>
    %152 = arith.addf %149, %151 : vector<4x8x16xf32>
    %cst_36 = arith.constant dense<0xFF800000> : vector<4x8xf32>
    %153 = vector.multi_reduction <maximumf>, %152, %cst_36 [2] : vector<4x8x16xf32> to vector<4x8xf32>
    %154 = vector.shape_cast %153 : vector<4x8xf32> to vector<4x8x1xf32>
    %155 = vector.broadcast %154 : vector<4x8x1xf32> to vector<4x8x16xf32>
    %156 = arith.subf %152, %155 : vector<4x8x16xf32>
    %157 = math.exp %156 : vector<4x8x16xf32>
    %cst_37 = arith.constant dense<0.000000e+00> : vector<4x8xf32>
    %158 = vector.multi_reduction <add>, %157, %cst_37 [2] : vector<4x8x16xf32> to vector<4x8xf32>
    %159 = vector.shape_cast %158 : vector<4x8xf32> to vector<4x8x1xf32>
    %160 = tpu.reciprocal %159 {approx = true} : vector<4x8x1xf32> -> vector<4x8x1xf32>
    %161 = vector.broadcast %160 : vector<4x8x1xf32> to vector<4x8x16xf32>
    %162 = arith.mulf %157, %161 : vector<4x8x16xf32>
    %163 = arith.truncf %162 : vector<4x8x16xf32> to vector<4x8x16xbf16>
    %cst_38 = arith.constant dense<0.000000e+00> : vector<4x8x32xf32>
    %164 = tpu.matmul %163, %84, %cst_38 {dimension_numbers = #tpu.dot_dimension_numbers<[2], [1], [1], [2], [0, 0, 0, 1, 1, 2], [0], [0]>} : vector<4x8x16xbf16>, vector<4x16x32xbf16>, vector<4x8x32xf32> -> vector<4x8x32xf32>
    %165 = vector.extract_strided_slice %164 {offsets = [0, 0, 0], sizes = [1, 8, 32], strides = [1, 1, 1]} : vector<4x8x32xf32> to vector<1x8x32xf32>
    %166 = vector.shape_cast %165 : vector<1x8x32xf32> to vector<8x32xf32>
    %167 = vector.extract_strided_slice %164 {offsets = [1, 0, 0], sizes = [1, 8, 32], strides = [1, 1, 1]} : vector<4x8x32xf32> to vector<1x8x32xf32>
    %168 = vector.shape_cast %167 : vector<1x8x32xf32> to vector<8x32xf32>
    %169 = vector.extract_strided_slice %164 {offsets = [2, 0, 0], sizes = [1, 8, 32], strides = [1, 1, 1]} : vector<4x8x32xf32> to vector<1x8x32xf32>
    %170 = vector.shape_cast %169 : vector<1x8x32xf32> to vector<8x32xf32>
    %171 = vector.extract_strided_slice %164 {offsets = [3, 0, 0], sizes = [1, 8, 32], strides = [1, 1, 1]} : vector<4x8x32xf32> to vector<1x8x32xf32>
    %172 = vector.shape_cast %171 : vector<1x8x32xf32> to vector<8x32xf32>
    %173 = tpu.concatenate %166, %168, %170, %172 in 1 : vector<8x32xf32>, vector<8x32xf32>, vector<8x32xf32>, vector<8x32xf32> -> vector<8x128xf32>
    %174 = arith.truncf %173 : vector<8x128xf32> to vector<8x128xbf16>
    %c0_39 = arith.constant 0 : index
    %c0_40 = arith.constant 0 : index
    %175 = vector.load %arg8[%c0_39, %c0_40] : memref<128x128xbf16, #tpu.memory_space<vmem>>, vector<128x128xbf16>
    %cst_41 = arith.constant dense<0.000000e+00> : vector<8x128xf32>
    %176 = tpu.matmul %174, %175, %cst_41 {dimension_numbers = #tpu.dot_dimension_numbers<[1], [0], [0], [1], [0, 0, 1, 1], [], []>} : vector<8x128xbf16>, vector<128x128xbf16>, vector<8x128xf32> -> vector<8x128xf32>
    %177 = arith.addf %1, %176 : vector<8x128xf32>
    %c0_42 = arith.constant 0 : index
    %c0_43 = arith.constant 0 : index
    %178 = vector.load %arg15[%c0_42, %c0_43] : memref<1x128xf32, #tpu.memory_space<vmem>>, vector<1x128xf32>
    %c0_44 = arith.constant 0 : index
    %c0_45 = arith.constant 0 : index
    %179 = vector.load %arg16[%c0_44, %c0_45] : memref<1x128xf32, #tpu.memory_space<vmem>>, vector<1x128xf32>
    %cst_46 = arith.constant dense<0.000000e+00> : vector<8xf32>
    %180 = vector.multi_reduction <add>, %177, %cst_46 [1] : vector<8x128xf32> to vector<8xf32>
    %181 = vector.shape_cast %180 : vector<8xf32> to vector<8x1xf32>
    %cst_47 = arith.constant 1.280000e+02 : f32
    %182 = vector.broadcast %cst_47 : f32 to vector<8x1xf32>
    %183 = arith.divf %181, %182 : vector<8x1xf32>
    %184 = vector.broadcast %183 : vector<8x1xf32> to vector<8x128xf32>
    %185 = arith.subf %177, %184 : vector<8x128xf32>
    %186 = arith.mulf %185, %185 : vector<8x128xf32>
    %cst_48 = arith.constant dense<0.000000e+00> : vector<8xf32>
    %187 = vector.multi_reduction <add>, %186, %cst_48 [1] : vector<8x128xf32> to vector<8xf32>
    %188 = vector.shape_cast %187 : vector<8xf32> to vector<8x1xf32>
    %cst_49 = arith.constant 1.280000e+02 : f32
    %189 = vector.broadcast %cst_49 : f32 to vector<8x1xf32>
    %190 = arith.divf %188, %189 : vector<8x1xf32>
    %191 = vector.broadcast %183 : vector<8x1xf32> to vector<8x128xf32>
    %192 = arith.subf %177, %191 : vector<8x128xf32>
    %cst_50 = arith.constant 1.000000e-03 : f32
    %193 = vector.broadcast %cst_50 : f32 to vector<8x1xf32>
    %194 = arith.addf %190, %193 : vector<8x1xf32>
    %195 = math.rsqrt %194 : vector<8x1xf32>
    %196 = vector.broadcast %195 : vector<8x1xf32> to vector<8x128xf32>
    %197 = arith.mulf %192, %196 : vector<8x128xf32>
    %198 = vector.broadcast %178 : vector<1x128xf32> to vector<8x128xf32>
    %199 = arith.mulf %197, %198 : vector<8x128xf32>
    %200 = vector.broadcast %179 : vector<1x128xf32> to vector<8x128xf32>
    %201 = arith.addf %199, %200 : vector<8x128xf32>
    %202 = arith.truncf %201 : vector<8x128xf32> to vector<8x128xbf16>
    %c0_51 = arith.constant 0 : index
    %c0_52 = arith.constant 0 : index
    %203 = vector.load %arg11[%c0_51, %c0_52] : memref<128x256xbf16, #tpu.memory_space<vmem>>, vector<128x256xbf16>
    %cst_53 = arith.constant dense<0.000000e+00> : vector<8x256xf32>
    %204 = tpu.matmul %202, %203, %cst_53 {dimension_numbers = #tpu.dot_dimension_numbers<[1], [0], [0], [1], [0, 0, 1, 1], [], []>} : vector<8x128xbf16>, vector<128x256xbf16>, vector<8x256xf32> -> vector<8x256xf32>
    %c0_54 = arith.constant 0 : index
    %c0_55 = arith.constant 0 : index
    %205 = vector.load %arg12[%c0_54, %c0_55] : memref<1x256xf32, #tpu.memory_space<vmem>>, vector<1x256xf32>
    %206 = vector.broadcast %205 : vector<1x256xf32> to vector<8x256xf32>
    %207 = arith.addf %204, %206 : vector<8x256xf32>
    %cst_56 = arith.constant 0.000000e+00 : f32
    %208 = vector.broadcast %cst_56 : f32 to vector<8x256xf32>
    %209 = arith.maximumf %207, %208 : vector<8x256xf32>
    %210 = arith.truncf %209 : vector<8x256xf32> to vector<8x256xbf16>
    %c0_57 = arith.constant 0 : index
    %c0_58 = arith.constant 0 : index
    %211 = vector.load %arg13[%c0_57, %c0_58] : memref<256x128xbf16, #tpu.memory_space<vmem>>, vector<256x128xbf16>
    %cst_59 = arith.constant dense<0.000000e+00> : vector<8x128xf32>
    %212 = tpu.matmul %210, %211, %cst_59 {dimension_numbers = #tpu.dot_dimension_numbers<[1], [0], [0], [1], [0, 0, 1, 1], [], []>} : vector<8x256xbf16>, vector<256x128xbf16>, vector<8x128xf32> -> vector<8x128xf32>
    %c0_60 = arith.constant 0 : index
    %c0_61 = arith.constant 0 : index
    %213 = vector.load %arg14[%c0_60, %c0_61] : memref<1x128xf32, #tpu.memory_space<vmem>>, vector<1x128xf32>
    %214 = vector.broadcast %213 : vector<1x128xf32> to vector<8x128xf32>
    %215 = arith.addf %212, %214 : vector<8x128xf32>
    %216 = arith.addf %177, %215 : vector<8x128xf32>
    %c0_62 = arith.constant 0 : index
    %c0_63 = arith.constant 0 : index
    %c0_64 = arith.constant 0 : index
    %217 = vector.load %arg17[%c0_62, %c0_63, %c0_64] : memref<1x8x128xf32, #tpu.memory_space<vmem>>, vector<1x8x128xf32>
    %218 = vector.shape_cast %217 : vector<1x8x128xf32> to vector<8x128xf32>
    %219 = vector.shape_cast %216 : vector<8x128xf32> to vector<1x8x128xf32>
    tpu.vector_store %arg17[%c0_62, %c0_63, %c0_64], %219 {strides = array<i32>} : memref<1x8x128xf32, #tpu.memory_space<vmem>>, vector<1x8x128xf32>,
    return
  }
  func.func @transform_0(%arg0: i32) -> (i32, i32, i32) {
    %c0_i32 = arith.constant 0 : i32
    %c0_i32_0 = arith.constant 0 : i32
    %c0_i32_1 = arith.constant 0 : i32
    return %arg0, %c0_i32, %c0_i32_0 : i32, i32, i32
  }
  func.func @transform_1(%arg0: i32) -> (i32, i32, i32) {
    %c0_i32 = arith.constant 0 : i32
    %c0_i32_0 = arith.constant 0 : i32
    %c0_i32_1 = arith.constant 0 : i32
    return %arg0, %c0_i32, %c0_i32_0 : i32, i32, i32
  }
  func.func @transform_2(%arg0: i32) -> (i32, i32) {
    %c0_i32 = arith.constant 0 : i32
    %c0_i32_0 = arith.constant 0 : i32
    %c0_i32_1 = arith.constant 0 : i32
    return %c0_i32, %c0_i32_0 : i32, i32
  }
  func.func @transform_3(%arg0: i32) -> (i32, i32) {
    %c0_i32 = arith.constant 0 : i32
    %c0_i32_0 = arith.constant 0 : i32
    %c0_i32_1 = arith.constant 0 : i32
    return %c0_i32, %c0_i32_0 : i32, i32
  }
  func.func @transform_4(%arg0: i32) -> (i32, i32) {
    %c0_i32 = arith.constant 0 : i32
    %c0_i32_0 = arith.constant 0 : i32
    %c0_i32_1 = arith.constant 0 : i32
    return %c0_i32, %c0_i32_0 : i32, i32
  }
  func.func @transform_5(%arg0: i32) -> (i32, i32) {
    %c0_i32 = arith.constant 0 : i32
    %c0_i32_0 = arith.constant 0 : i32
    %c0_i32_1 = arith.constant 0 : i32
    return %c0_i32, %c0_i32_0 : i32, i32
  }
  func.func @transform_6(%arg0: i32) -> (i32, i32) {
    %c0_i32 = arith.constant 0 : i32
    %c0_i32_0 = arith.constant 0 : i32
    %c0_i32_1 = arith.constant 0 : i32
    return %c0_i32, %c0_i32_0 : i32, i32
  }
  func.func @transform_7(%arg0: i32) -> (i32, i32) {
    %c0_i32 = arith.constant 0 : i32
    %c0_i32_0 = arith.constant 0 : i32
    %c0_i32_1 = arith.constant 0 : i32
    return %c0_i32, %c0_i32_0 : i32, i32
  }
  func.func @transform_8(%arg0: i32) -> (i32, i32) {
    %c0_i32 = arith.constant 0 : i32
    %c0_i32_0 = arith.constant 0 : i32
    %c0_i32_1 = arith.constant 0 : i32
    return %c0_i32, %c0_i32_0 : i32, i32
  }
  func.func @transform_9(%arg0: i32) -> (i32, i32) {
    %c0_i32 = arith.constant 0 : i32
    %c0_i32_0 = arith.constant 0 : i32
    %c0_i32_1 = arith.constant 0 : i32
    return %c0_i32, %c0_i32_0 : i32, i32
  }
  func.func @transform_10(%arg0: i32) -> (i32, i32) {
    %c0_i32 = arith.constant 0 : i32
    %c0_i32_0 = arith.constant 0 : i32
    %c0_i32_1 = arith.constant 0 : i32
    return %c0_i32, %c0_i32_0 : i32, i32
  }
  func.func @transform_11(%arg0: i32) -> (i32, i32) {
    %c0_i32 = arith.constant 0 : i32
    %c0_i32_0 = arith.constant 0 : i32
    %c0_i32_1 = arith.constant 0 : i32
    return %c0_i32, %c0_i32_0 : i32, i32
  }
  func.func @transform_12(%arg0: i32) -> (i32, i32) {
    %c0_i32 = arith.constant 0 : i32
    %c0_i32_0 = arith.constant 0 : i32
    %c0_i32_1 = arith.constant 0 : i32
    return %c0_i32, %c0_i32_0 : i32, i32
  }
  func.func @transform_13(%arg0: i32) -> (i32, i32) {
    %c0_i32 = arith.constant 0 : i32
    %c0_i32_0 = arith.constant 0 : i32
    %c0_i32_1 = arith.constant 0 : i32
    return %c0_i32, %c0_i32_0 : i32, i32
  }
  func.func @transform_14(%arg0: i32) -> (i32, i32) {
    %c0_i32 = arith.constant 0 : i32
    %c0_i32_0 = arith.constant 0 : i32
    %c0_i32_1 = arith.constant 0 : i32
    return %c0_i32, %c0_i32_0 : i32, i32
  }
  func.func @transform_15(%arg0: i32) -> (i32, i32) {
    %c0_i32 = arith.constant 0 : i32
    %c0_i32_0 = arith.constant 0 : i32
    %c0_i32_1 = arith.constant 0 : i32
    return %c0_i32, %c0_i32_0 : i32, i32
  }
  func.func @transform_16(%arg0: i32) -> (i32, i32, i32) {
    %c0_i32 = arith.constant 0 : i32
    %c0_i32_0 = arith.constant 0 : i32
    %c0_i32_1 = arith.constant 0 : i32
    return %arg0, %c0_i32, %c0_i32_0 : i32, i32, i32
  }
}

module attributes {stable_mosaic.version = 11 : i64} {
  func.func @_linear_kernel(%arg0: i32, %arg1: i32, %arg2: memref<16x128xf32, #tpu.memory_space<vmem>>, %arg3: memref<128x256xbf16, #tpu.memory_space<vmem>>, %arg4: memref<1x256xf32, #tpu.memory_space<vmem>>, %arg5: memref<16x256xf32, #tpu.memory_space<vmem>>) attributes {dimension_semantics = [#tpu.dimension_semantics<parallel>, #tpu.dimension_semantics<parallel>], iteration_bounds = array<i64: 1, 1>, scalar_prefetch = 0 : i64, scratch_operands = 0 : i64, tpu.core_type = #tpu.core_type<tc>, window_params = [{transform_indices = @transform_0, window_bounds = array<i64: 16, 128>}, {transform_indices = @transform_1, window_bounds = array<i64: 128, 256>}, {transform_indices = @transform_2, window_bounds = array<i64: 1, 256>}, {transform_indices = @transform_3, window_bounds = array<i64: 16, 256>}]} {
    %c0 = arith.constant 0 : index
    %c0_0 = arith.constant 0 : index
    %0 = vector.load %arg2[%c0, %c0_0] : memref<16x128xf32, #tpu.memory_space<vmem>>, vector<16x128xf32>
    %1 = arith.truncf %0 : vector<16x128xf32> to vector<16x128xbf16>
    %c0_1 = arith.constant 0 : index
    %c0_2 = arith.constant 0 : index
    %2 = vector.load %arg3[%c0_1, %c0_2] : memref<128x256xbf16, #tpu.memory_space<vmem>>, vector<128x256xbf16>
    %cst = arith.constant dense<0.000000e+00> : vector<16x256xf32>
    %3 = tpu.matmul %1, %2, %cst {dimension_numbers = #tpu.dot_dimension_numbers<[1], [0], [0], [1], [0, 0, 1, 1], [], []>} : vector<16x128xbf16>, vector<128x256xbf16>, vector<16x256xf32> -> vector<16x256xf32>
    %c0_3 = arith.constant 0 : index
    %c0_4 = arith.constant 0 : index
    %4 = vector.load %arg4[%c0_3, %c0_4] : memref<1x256xf32, #tpu.memory_space<vmem>>, vector<1x256xf32>
    %5 = vector.broadcast %4 : vector<1x256xf32> to vector<16x256xf32>
    %6 = arith.addf %3, %5 : vector<16x256xf32>
    %c0_5 = arith.constant 0 : index
    %c0_6 = arith.constant 0 : index
    %7 = vector.load %arg5[%c0_5, %c0_6] : memref<16x256xf32, #tpu.memory_space<vmem>>, vector<16x256xf32>
    tpu.vector_store %arg5[%c0_5, %c0_6], %6 {strides = array<i32>} : memref<16x256xf32, #tpu.memory_space<vmem>>, vector<16x256xf32>,
    return
  }
  func.func @transform_0(%arg0: i32, %arg1: i32) -> (i32, i32) {
    %c0_i32 = arith.constant 0 : i32
    %c0_i32_0 = arith.constant 0 : i32
    return %arg1, %c0_i32 : i32, i32
  }
  func.func @transform_1(%arg0: i32, %arg1: i32) -> (i32, i32) {
    %c0_i32 = arith.constant 0 : i32
    %c0_i32_0 = arith.constant 0 : i32
    return %c0_i32, %arg0 : i32, i32
  }
  func.func @transform_2(%arg0: i32, %arg1: i32) -> (i32, i32) {
    %c0_i32 = arith.constant 0 : i32
    %c0_i32_0 = arith.constant 0 : i32
    return %c0_i32, %arg0 : i32, i32
  }
  func.func @transform_3(%arg0: i32, %arg1: i32) -> (i32, i32) {
    %c0_i32 = arith.constant 0 : i32
    return %arg1, %arg0 : i32, i32
  }
}

module attributes {stable_mosaic.version = 11 : i64} {
  func.func @_decoder_layer_kernel(%arg0: i32, %arg1: memref<1x8x128xf32, #tpu.memory_space<vmem>>, %arg2: memref<1x8x128xf32, #tpu.memory_space<vmem>>, %arg3: memref<16x128xf32, #tpu.memory_space<vmem>>, %arg4: memref<1x128xf32, #tpu.memory_space<vmem>>, %arg5: memref<1x128xf32, #tpu.memory_space<vmem>>, %arg6: memref<128x384xbf16, #tpu.memory_space<vmem>>, %arg7: memref<128x128xbf16, #tpu.memory_space<vmem>>, %arg8: memref<128x128xbf16, #tpu.memory_space<vmem>>, %arg9: memref<1x128xf32, #tpu.memory_space<vmem>>, %arg10: memref<1x128xf32, #tpu.memory_space<vmem>>, %arg11: memref<128x256xbf16, #tpu.memory_space<vmem>>, %arg12: memref<1x256xf32, #tpu.memory_space<vmem>>, %arg13: memref<256x128xbf16, #tpu.memory_space<vmem>>, %arg14: memref<1x128xf32, #tpu.memory_space<vmem>>, %arg15: memref<1x128xf32, #tpu.memory_space<vmem>>, %arg16: memref<1x128xf32, #tpu.memory_space<vmem>>, %arg17: memref<1x8x128xf32, #tpu.memory_space<vmem>>) attributes {dimension_semantics = [#tpu.dimension_semantics<parallel>], iteration_bounds = array<i64: 2>, scalar_prefetch = 0 : i64, scratch_operands = 0 : i64, tpu.core_type = #tpu.core_type<tc>, window_params = [{transform_indices = @transform_0, window_bounds = array<i64: 1, 8, 128>}, {transform_indices = @transform_1, window_bounds = array<i64: 1, 8, 128>}, {pipeline_mode = #tpu.pipeline_mode<synchronous>, transform_indices = @transform_2, window_bounds = array<i64: 16, 128>}, {pipeline_mode = #tpu.pipeline_mode<synchronous>, transform_indices = @transform_3, window_bounds = array<i64: 1, 128>}, {pipeline_mode = #tpu.pipeline_mode<synchronous>, transform_indices = @transform_4, window_bounds = array<i64: 1, 128>}, {pipeline_mode = #tpu.pipeline_mode<synchronous>, transform_indices = @transform_5, window_bounds = array<i64: 128, 384>}, {pipeline_mode = #tpu.pipeline_mode<synchronous>, transform_indices = @transform_6, window_bounds = array<i64: 128, 128>}, {pipeline_mode = #tpu.pipeline_mode<synchronous>, transform_indices = @transform_7, window_bounds = array<i64: 128, 128>}, {pipeline_mode = #tpu.pipeline_mode<synchronous>, transform_indices = @transform_8, window_bounds = array<i64: 1, 128>}, {pipeline_mode = #tpu.pipeline_mode<synchronous>, transform_indices = @transform_9, window_bounds = array<i64: 1, 128>}, {pipeline_mode = #tpu.pipeline_mode<synchronous>, transform_indices = @transform_10, window_bounds = array<i64: 128, 256>}, {pipeline_mode = #tpu.pipeline_mode<synchronous>, transform_indices = @transform_11, window_bounds = array<i64: 1, 256>}, {pipeline_mode = #tpu.pipeline_mode<synchronous>, transform_indices = @transform_12, window_bounds = array<i64: 256, 128>}, {pipeline_mode = #tpu.pipeline_mode<synchronous>, transform_indices = @transform_13, window_bounds = array<i64: 1, 128>}, {pipeline_mode = #tpu.pipeline_mode<synchronous>, transform_indices = @transform_14, window_bounds = array<i64: 1, 128>}, {pipeline_mode = #tpu.pipeline_mode<synchronous>, transform_indices = @transform_15, window_bounds = array<i64: 1, 128>}, {transform_indices = @transform_16, window_bounds = array<i64: 1, 8, 128>}]} {
    %c0 = arith.constant 0 : index
    %c0_0 = arith.constant 0 : index
    %c0_1 = arith.constant 0 : index
    %0 = vector.load %arg1[%c0, %c0_0, %c0_1] : memref<1x8x128xf32, #tpu.memory_space<vmem>>, vector<1x8x128xf32>
    %1 = vector.shape_cast %0 : vector<1x8x128xf32> to vector<8x128xf32>
    %c0_2 = arith.constant 0 : index
    %c0_3 = arith.constant 0 : index
    %c0_4 = arith.constant 0 : index
    %2 = vector.load %arg2[%c0_2, %c0_3, %c0_4] : memref<1x8x128xf32, #tpu.memory_space<vmem>>, vector<1x8x128xf32>
    %3 = vector.shape_cast %2 : vector<1x8x128xf32> to vector<8x128xf32>
    %c0_5 = arith.constant 0 : index
    %c0_6 = arith.constant 0 : index
    %4 = vector.load %arg3[%c0_5, %c0_6] : memref<16x128xf32, #tpu.memory_space<vmem>>, vector<16x128xf32>
    %5 = tpu.concatenate %3, %1 in 0 : vector<8x128xf32>, vector<8x128xf32> -> vector<16x128xf32>
    %c0_7 = arith.constant 0 : index
    %c0_8 = arith.constant 0 : index
    %6 = vector.load %arg9[%c0_7, %c0_8] : memref<1x128xf32, #tpu.memory_space<vmem>>, vector<1x128xf32>
    %c0_9 = arith.constant 0 : index
    %c0_10 = arith.constant 0 : index
    %7 = vector.load %arg10[%c0_9, %c0_10] : memref<1x128xf32, #tpu.memory_space<vmem>>, vector<1x128xf32>
    %cst = arith.constant dense<0.000000e+00> : vector<16xf32>
    %8 = vector.multi_reduction <add>, %5, %cst [1] : vector<16x128xf32> to vector<16xf32>
    %9 = vector.shape_cast %8 : vector<16xf32> to vector<16x1xf32>
    %cst_11 = arith.constant 1.280000e+02 : f32
    %10 = vector.broadcast %cst_11 : f32 to vector<16x1xf32>
    %11 = arith.divf %9, %10 : vector<16x1xf32>
    %12 = vector.broadcast %11 : vector<16x1xf32> to vector<16x128xf32>
    %13 = arith.subf %5, %12 : vector<16x128xf32>
    %14 = arith.mulf %13, %13 : vector<16x128xf32>
    %cst_12 = arith.constant dense<0.000000e+00> : vector<16xf32>
    %15 = vector.multi_reduction <add>, %14, %cst_12 [1] : vector<16x128xf32> to vector<16xf32>
    %16 = vector.shape_cast %15 : vector<16xf32> to vector<16x1xf32>
    %cst_13 = arith.constant 1.280000e+02 : f32
    %17 = vector.broadcast %cst_13 : f32 to vector<16x1xf32>
    %18 = arith.divf %16, %17 : vector<16x1xf32>
    %19 = vector.broadcast %11 : vector<16x1xf32> to vector<16x128xf32>
    %20 = arith.subf %5, %19 : vector<16x128xf32>
    %cst_14 = arith.constant 1.000000e-03 : f32
    %21 = vector.broadcast %cst_14 : f32 to vector<16x1xf32>
    %22 = arith.addf %18, %21 : vector<16x1xf32>
    %23 = math.rsqrt %22 : vector<16x1xf32>
    %24 = vector.broadcast %23 : vector<16x1xf32> to vector<16x128xf32>
    %25 = arith.mulf %20, %24 : vector<16x128xf32>
    %26 = vector.broadcast %6 : vector<1x128xf32> to vector<16x128xf32>
    %27 = arith.mulf %25, %26 : vector<16x128xf32>
    %28 = vector.broadcast %7 : vector<1x128xf32> to vector<16x128xf32>
    %29 = arith.addf %27, %28 : vector<16x128xf32>
    %30 = arith.truncf %29 : vector<16x128xf32> to vector<16x128xbf16>
    %c0_15 = arith.constant 0 : index
    %c0_16 = arith.constant 0 : index
    %31 = vector.load %arg6[%c0_15, %c0_16] : memref<128x384xbf16, #tpu.memory_space<vmem>>, vector<128x384xbf16>
    %cst_17 = arith.constant dense<0.000000e+00> : vector<16x384xf32>
    %32 = tpu.matmul %30, %31, %cst_17 {dimension_numbers = #tpu.dot_dimension_numbers<[1], [0], [0], [1], [0, 0, 1, 1], [], []>} : vector<16x128xbf16>, vector<128x384xbf16>, vector<16x384xf32> -> vector<16x384xf32>
    %33 = arith.truncf %4 : vector<16x128xf32> to vector<16x128xbf16>
    %c0_18 = arith.constant 0 : index
    %c0_19 = arith.constant 0 : index
    %34 = vector.load %arg7[%c0_18, %c0_19] : memref<128x128xbf16, #tpu.memory_space<vmem>>, vector<128x128xbf16>
    %cst_20 = arith.constant dense<0.000000e+00> : vector<16x128xf32>
    %35 = tpu.matmul %33, %34, %cst_20 {dimension_numbers = #tpu.dot_dimension_numbers<[1], [0], [0], [1], [0, 0, 1, 1], [], []>} : vector<16x128xbf16>, vector<128x128xbf16>, vector<16x128xf32> -> vector<16x128xf32>
    %36 = vector.extract_strided_slice %32 {offsets = [8, 0], sizes = [8, 128], strides = [1, 1]} : vector<16x384xf32> to vector<8x128xf32>
    %c0_21 = arith.constant 0 : index
    %c0_22 = arith.constant 0 : index
    %37 = vector.load %arg4[%c0_21, %c0_22] : memref<1x128xf32, #tpu.memory_space<vmem>>, vector<1x128xf32>
    %38 = vector.broadcast %37 : vector<1x128xf32> to vector<8x128xf32>
    %39 = arith.addf %36, %38 : vector<8x128xf32>
    %40 = arith.truncf %39 : vector<8x128xf32> to vector<8x128xbf16>
    %41 = vector.extract_strided_slice %40 {offsets = [0, 0], sizes = [8, 32], strides = [1, 1]} : vector<8x128xbf16> to vector<8x32xbf16>
    %42 = vector.extract_strided_slice %40 {offsets = [0, 32], sizes = [8, 32], strides = [1, 1]} : vector<8x128xbf16> to vector<8x32xbf16>
    %43 = vector.extract_strided_slice %40 {offsets = [0, 64], sizes = [8, 32], strides = [1, 1]} : vector<8x128xbf16> to vector<8x32xbf16>
    %44 = vector.extract_strided_slice %40 {offsets = [0, 96], sizes = [8, 32], strides = [1, 1]} : vector<8x128xbf16> to vector<8x32xbf16>
    %45 = vector.shape_cast %41 : vector<8x32xbf16> to vector<1x8x32xbf16>
    %46 = vector.shape_cast %42 : vector<8x32xbf16> to vector<1x8x32xbf16>
    %47 = vector.shape_cast %43 : vector<8x32xbf16> to vector<1x8x32xbf16>
    %48 = vector.shape_cast %44 : vector<8x32xbf16> to vector<1x8x32xbf16>
    %49 = tpu.concatenate %45, %46, %47, %48 in 0 : vector<1x8x32xbf16>, vector<1x8x32xbf16>, vector<1x8x32xbf16>, vector<1x8x32xbf16> -> vector<4x8x32xbf16>
    %c0_23 = arith.constant 0 : index
    %c0_24 = arith.constant 0 : index
    %50 = vector.load %arg5[%c0_23, %c0_24] : memref<1x128xf32, #tpu.memory_space<vmem>>, vector<1x128xf32>
    %51 = vector.broadcast %50 : vector<1x128xf32> to vector<8x128xf32>
    %52 = arith.addf %36, %51 : vector<8x128xf32>
    %53 = arith.truncf %52 : vector<8x128xf32> to vector<8x128xbf16>
    %54 = vector.extract_strided_slice %53 {offsets = [0, 0], sizes = [8, 32], strides = [1, 1]} : vector<8x128xbf16> to vector<8x32xbf16>
    %55 = vector.extract_strided_slice %53 {offsets = [0, 32], sizes = [8, 32], strides = [1, 1]} : vector<8x128xbf16> to vector<8x32xbf16>
    %56 = vector.extract_strided_slice %53 {offsets = [0, 64], sizes = [8, 32], strides = [1, 1]} : vector<8x128xbf16> to vector<8x32xbf16>
    %57 = vector.extract_strided_slice %53 {offsets = [0, 96], sizes = [8, 32], strides = [1, 1]} : vector<8x128xbf16> to vector<8x32xbf16>
    %58 = vector.shape_cast %54 : vector<8x32xbf16> to vector<1x8x32xbf16>
    %59 = vector.shape_cast %55 : vector<8x32xbf16> to vector<1x8x32xbf16>
    %60 = vector.shape_cast %56 : vector<8x32xbf16> to vector<1x8x32xbf16>
    %61 = vector.shape_cast %57 : vector<8x32xbf16> to vector<1x8x32xbf16>
    %62 = tpu.concatenate %58, %59, %60, %61 in 0 : vector<1x8x32xbf16>, vector<1x8x32xbf16>, vector<1x8x32xbf16>, vector<1x8x32xbf16> -> vector<4x8x32xbf16>
    %63 = vector.extract_strided_slice %32 {offsets = [0, 128], sizes = [16, 128], strides = [1, 1]} : vector<16x384xf32> to vector<16x128xf32>
    %64 = arith.truncf %63 : vector<16x128xf32> to vector<16x128xbf16>
    %65 = vector.extract_strided_slice %64 {offsets = [0, 0], sizes = [16, 32], strides = [1, 1]} : vector<16x128xbf16> to vector<16x32xbf16>
    %66 = vector.extract_strided_slice %64 {offsets = [0, 32], sizes = [16, 32], strides = [1, 1]} : vector<16x128xbf16> to vector<16x32xbf16>
    %67 = vector.extract_strided_slice %64 {offsets = [0, 64], sizes = [16, 32], strides = [1, 1]} : vector<16x128xbf16> to vector<16x32xbf16>
    %68 = vector.extract_strided_slice %64 {offsets = [0, 96], sizes = [16, 32], strides = [1, 1]} : vector<16x128xbf16> to vector<16x32xbf16>
    %69 = vector.shape_cast %65 : vector<16x32xbf16> to vector<1x16x32xbf16>
    %70 = vector.shape_cast %66 : vector<16x32xbf16> to vector<1x16x32xbf16>
    %71 = vector.shape_cast %67 : vector<16x32xbf16> to vector<1x16x32xbf16>
    %72 = vector.shape_cast %68 : vector<16x32xbf16> to vector<1x16x32xbf16>
    %73 = tpu.concatenate %69, %70, %71, %72 in 0 : vector<1x16x32xbf16>, vector<1x16x32xbf16>, vector<1x16x32xbf16>, vector<1x16x32xbf16> -> vector<4x16x32xbf16>
    %74 = vector.extract_strided_slice %32 {offsets = [0, 256], sizes = [16, 128], strides = [1, 1]} : vector<16x384xf32> to vector<16x128xf32>
    %75 = arith.truncf %74 : vector<16x128xf32> to vector<16x128xbf16>
    %76 = vector.extract_strided_slice %75 {offsets = [0, 0], sizes = [16, 32], strides = [1, 1]} : vector<16x128xbf16> to vector<16x32xbf16>
    %77 = vector.extract_strided_slice %75 {offsets = [0, 32], sizes = [16, 32], strides = [1, 1]} : vector<16x128xbf16> to vector<16x32xbf16>
    %78 = vector.extract_strided_slice %75 {offsets = [0, 64], sizes = [16, 32], strides = [1, 1]} : vector<16x128xbf16> to vector<16x32xbf16>
    %79 = vector.extract_strided_slice %75 {offsets = [0, 96], sizes = [16, 32], strides = [1, 1]} : vector<16x128xbf16> to vector<16x32xbf16>
    %80 = vector.shape_cast %76 : vector<16x32xbf16> to vector<1x16x32xbf16>
    %81 = vector.shape_cast %77 : vector<16x32xbf16> to vector<1x16x32xbf16>
    %82 = vector.shape_cast %78 : vector<16x32xbf16> to vector<1x16x32xbf16>
    %83 = vector.shape_cast %79 : vector<16x32xbf16> to vector<1x16x32xbf16>
    %84 = tpu.concatenate %80, %81, %82, %83 in 0 : vector<1x16x32xbf16>, vector<1x16x32xbf16>, vector<1x16x32xbf16>, vector<1x16x32xbf16> -> vector<4x16x32xbf16>
    %85 = arith.truncf %35 : vector<16x128xf32> to vector<16x128xbf16>
    %86 = vector.extract_strided_slice %85 {offsets = [0, 0], sizes = [16, 32], strides = [1, 1]} : vector<16x128xbf16> to vector<16x32xbf16>
    %87 = vector.extract_strided_slice %85 {offsets = [0, 32], sizes = [16, 32], strides = [1, 1]} : vector<16x128xbf16> to vector<16x32xbf16>
    %88 = vector.extract_strided_slice %85 {offsets = [0, 64], sizes = [16, 32], strides = [1, 1]} : vector<16x128xbf16> to vector<16x32xbf16>
    %89 = vector.extract_strided_slice %85 {offsets = [0, 96], sizes = [16, 32], strides = [1, 1]} : vector<16x128xbf16> to vector<16x32xbf16>
    %90 = vector.shape_cast %86 : vector<16x32xbf16> to vector<1x16x32xbf16>
    %91 = vector.shape_cast %87 : vector<16x32xbf16> to vector<1x16x32xbf16>
    %92 = vector.shape_cast %88 : vector<16x32xbf16> to vector<1x16x32xbf16>
    %93 = vector.shape_cast %89 : vector<16x32xbf16> to vector<1x16x32xbf16>
    %94 = tpu.concatenate %90, %91, %92, %93 in 0 : vector<1x16x32xbf16>, vector<1x16x32xbf16>, vector<1x16x32xbf16>, vector<1x16x32xbf16> -> vector<4x16x32xbf16>
    %cst_25 = arith.constant dense<0.000000e+00> : vector<4x8x16xf32>
    %95 = tpu.matmul %49, %73, %cst_25 {dimension_numbers = #tpu.dot_dimension_numbers<[2], [2], [1], [1], [0, 0, 0, 1, 1, 1], [0], [0]>} : vector<4x8x32xbf16>, vector<4x16x32xbf16>, vector<4x8x16xf32> -> vector<4x8x16xf32>
    %cst_26 = arith.constant dense<0.000000e+00> : vector<4x8x16xf32>
    %96 = tpu.matmul %62, %94, %cst_26 {dimension_numbers = #tpu.dot_dimension_numbers<[2], [2], [1], [1], [0, 0, 0, 1, 1, 1], [0], [0]>} : vector<4x8x32xbf16>, vector<4x16x32xbf16>, vector<4x8x16xf32> -> vector<4x8x16xf32>
    %97 = tpu.iota {dimensions = array<i32: 0>} : vector<8x16xi32>
    %98 = tpu.iota {dimensions = array<i32: 1>} : vector<8x16xi32>
    %99 = vector.extract_strided_slice %96 {offsets = [0, 0, 7], sizes = [4, 8, 9], strides = [1, 1, 1]} : vector<4x8x16xf32> to vector<4x8x9xf32>
    %100 = vector.extract_strided_slice %96 {offsets = [0, 0, 0], sizes = [4, 8, 7], strides = [1, 1, 1]} : vector<4x8x16xf32> to vector<4x8x7xf32>
    %101 = tpu.concatenate %99, %100 in 2 : vector<4x8x9xf32>, vector<4x8x7xf32> -> vector<4x8x16xf32>
    %102 = vector.extract_strided_slice %101 {offsets = [0, 0, 15], sizes = [4, 8, 1], strides = [1, 1, 1]} : vector<4x8x16xf32> to vector<4x8x1xf32>
    %103 = vector.extract_strided_slice %101 {offsets = [0, 0, 0], sizes = [4, 8, 15], strides = [1, 1, 1]} : vector<4x8x16xf32> to vector<4x8x15xf32>
    %104 = tpu.concatenate %102, %103 in 2 : vector<4x8x1xf32>, vector<4x8x15xf32> -> vector<4x8x16xf32>
    %c0_i32 = arith.constant 0 : i32
    %105 = vector.broadcast %c0_i32 : i32 to vector<8x16xi32>
    %106 = arith.shrsi %97, %105 : vector<8x16xi32>
    %c1_i32 = arith.constant 1 : i32
    %107 = vector.broadcast %c1_i32 : i32 to vector<8x16xi32>
    %108 = arith.andi %106, %107 : vector<8x16xi32>
    %c1_i32_27 = arith.constant 1 : i32
    %109 = vector.broadcast %c1_i32_27 : i32 to vector<8x16xi32>
    %110 = arith.cmpi eq, %108, %109 : vector<8x16xi32>
    %111 = vector.shape_cast %110 : vector<8x16xi1> to vector<1x8x16xi1>
    %112 = vector.shape_cast %111 : vector<1x8x16xi1> to vector<1x8x16xi1>
    %113 = vector.broadcast %112 : vector<1x8x16xi1> to vector<4x8x16xi1>
    %114 = arith.select %113, %104, %101 : vector<4x8x16xi1>, vector<4x8x16xf32>
    %115 = vector.extract_strided_slice %114 {offsets = [0, 0, 14], sizes = [4, 8, 2], strides = [1, 1, 1]} : vector<4x8x16xf32> to vector<4x8x2xf32>
    %116 = vector.extract_strided_slice %114 {offsets = [0, 0, 0], sizes = [4, 8, 14], strides = [1, 1, 1]} : vector<4x8x16xf32> to vector<4x8x14xf32>
    %117 = tpu.concatenate %115, %116 in 2 : vector<4x8x2xf32>, vector<4x8x14xf32> -> vector<4x8x16xf32>
    %c1_i32_28 = arith.constant 1 : i32
    %118 = vector.broadcast %c1_i32_28 : i32 to vector<8x16xi32>
    %119 = arith.shrsi %97, %118 : vector<8x16xi32>
    %c1_i32_29 = arith.constant 1 : i32
    %120 = vector.broadcast %c1_i32_29 : i32 to vector<8x16xi32>
    %121 = arith.andi %119, %120 : vector<8x16xi32>
    %c1_i32_30 = arith.constant 1 : i32
    %122 = vector.broadcast %c1_i32_30 : i32 to vector<8x16xi32>
    %123 = arith.cmpi eq, %121, %122 : vector<8x16xi32>
    %124 = vector.shape_cast %123 : vector<8x16xi1> to vector<1x8x16xi1>
    %125 = vector.shape_cast %124 : vector<1x8x16xi1> to vector<1x8x16xi1>
    %126 = vector.broadcast %125 : vector<1x8x16xi1> to vector<4x8x16xi1>
    %127 = arith.select %126, %117, %114 : vector<4x8x16xi1>, vector<4x8x16xf32>
    %128 = vector.extract_strided_slice %127 {offsets = [0, 0, 12], sizes = [4, 8, 4], strides = [1, 1, 1]} : vector<4x8x16xf32> to vector<4x8x4xf32>
    %129 = vector.extract_strided_slice %127 {offsets = [0, 0, 0], sizes = [4, 8, 12], strides = [1, 1, 1]} : vector<4x8x16xf32> to vector<4x8x12xf32>
    %130 = tpu.concatenate %128, %129 in 2 : vector<4x8x4xf32>, vector<4x8x12xf32> -> vector<4x8x16xf32>
    %c2_i32 = arith.constant 2 : i32
    %131 = vector.broadcast %c2_i32 : i32 to vector<8x16xi32>
    %132 = arith.shrsi %97, %131 : vector<8x16xi32>
    %c1_i32_31 = arith.constant 1 : i32
    %133 = vector.broadcast %c1_i32_31 : i32 to vector<8x16xi32>
    %134 = arith.andi %132, %133 : vector<8x16xi32>
    %c1_i32_32 = arith.constant 1 : i32
    %135 = vector.broadcast %c1_i32_32 : i32 to vector<8x16xi32>
    %136 = arith.cmpi eq, %134, %135 : vector<8x16xi32>
    %137 = vector.shape_cast %136 : vector<8x16xi1> to vector<1x8x16xi1>
    %138 = vector.shape_cast %137 : vector<1x8x16xi1> to vector<1x8x16xi1>
    %139 = vector.broadcast %138 : vector<1x8x16xi1> to vector<4x8x16xi1>
    %140 = arith.select %139, %130, %127 : vector<4x8x16xi1>, vector<4x8x16xf32>
    %c8_i32 = arith.constant 8 : i32
    %141 = vector.broadcast %c8_i32 : i32 to vector<8x16xi32>
    %142 = arith.addi %97, %141 : vector<8x16xi32>
    %143 = arith.cmpi sgt, %98, %142 : vector<8x16xi32>
    %cst_33 = arith.constant -1.000000e+30 : f32
    %cst_34 = arith.constant 0.000000e+00 : f32
    %144 = vector.broadcast %cst_33 : f32 to vector<8x16xf32>
    %145 = vector.broadcast %cst_34 : f32 to vector<8x16xf32>
    %146 = arith.select %143, %144, %145 : vector<8x16xi1>, vector<8x16xf32>
    %147 = arith.addf %95, %140 : vector<4x8x16xf32>
    %cst_35 = arith.constant 0.176776692 : f32
    %148 = vector.broadcast %cst_35 : f32 to vector<4x8x16xf32>
    %149 = arith.mulf %147, %148 : vector<4x8x16xf32>
    %150 = vector.shape_cast %146 : vector<8x16xf32> to vector<1x8x16xf32>
    %151 = vector.broadcast %150 : vector<1x8x16xf32> to vector<4x8x16xf32>
    %152 = arith.addf %149, %151 : vector<4x8x16xf32>
    %cst_36 = arith.constant dense<0xFF800000> : vector<4x8xf32>
    %153 = vector.multi_reduction <maximumf>, %152, %cst_36 [2] : vector<4x8x16xf32> to vector<4x8xf32>
    %154 = vector.shape_cast %153 : vector<4x8xf32> to vector<4x8x1xf32>
    %155 = vector.broadcast %154 : vector<4x8x1xf32> to vector<4x8x16xf32>
    %156 = arith.subf %152, %155 : vector<4x8x16xf32>
    %157 = math.exp %156 : vector<4x8x16xf32>
    %cst_37 = arith.constant dense<0.000000e+00> : vector<4x8xf32>
    %158 = vector.multi_reduction <add>, %157, %cst_37 [2] : vector<4x8x16xf32> to vector<4x8xf32>
    %159 = vector.shape_cast %158 : vector<4x8xf32> to vector<4x8x1xf32>
    %160 = tpu.reciprocal %159 {approx = true} : vector<4x8x1xf32> -> vector<4x8x1xf32>
    %161 = vector.broadcast %160 : vector<4x8x1xf32> to vector<4x8x16xf32>
    %162 = arith.mulf %157, %161 : vector<4x8x16xf32>
    %163 = arith.truncf %162 : vector<4x8x16xf32> to vector<4x8x16xbf16>
    %cst_38 = arith.constant dense<0.000000e+00> : vector<4x8x32xf32>
    %164 = tpu.matmul %163, %84, %cst_38 {dimension_numbers = #tpu.dot_dimension_numbers<[2], [1], [1], [2], [0, 0, 0, 1, 1, 2], [0], [0]>} : vector<4x8x16xbf16>, vector<4x16x32xbf16>, vector<4x8x32xf32> -> vector<4x8x32xf32>
    %165 = vector.extract_strided_slice %164 {offsets = [0, 0, 0], sizes = [1, 8, 32], strides = [1, 1, 1]} : vector<4x8x32xf32> to vector<1x8x32xf32>
    %166 = vector.shape_cast %165 : vector<1x8x32xf32> to vector<8x32xf32>
    %167 = vector.extract_strided_slice %164 {offsets = [1, 0, 0], sizes = [1, 8, 32], strides = [1, 1, 1]} : vector<4x8x32xf32> to vector<1x8x32xf32>
    %168 = vector.shape_cast %167 : vector<1x8x32xf32> to vector<8x32xf32>
    %169 = vector.extract_strided_slice %164 {offsets = [2, 0, 0], sizes = [1, 8, 32], strides = [1, 1, 1]} : vector<4x8x32xf32> to vector<1x8x32xf32>
    %170 = vector.shape_cast %169 : vector<1x8x32xf32> to vector<8x32xf32>
    %171 = vector.extract_strided_slice %164 {offsets = [3, 0, 0], sizes = [1, 8, 32], strides = [1, 1, 1]} : vector<4x8x32xf32> to vector<1x8x32xf32>
    %172 = vector.shape_cast %171 : vector<1x8x32xf32> to vector<8x32xf32>
    %173 = tpu.concatenate %166, %168, %170, %172 in 1 : vector<8x32xf32>, vector<8x32xf32>, vector<8x32xf32>, vector<8x32xf32> -> vector<8x128xf32>
    %174 = arith.truncf %173 : vector<8x128xf32> to vector<8x128xbf16>
    %c0_39 = arith.constant 0 : index
    %c0_40 = arith.constant 0 : index
    %175 = vector.load %arg8[%c0_39, %c0_40] : memref<128x128xbf16, #tpu.memory_space<vmem>>, vector<128x128xbf16>
    %cst_41 = arith.constant dense<0.000000e+00> : vector<8x128xf32>
    %176 = tpu.matmul %174, %175, %cst_41 {dimension_numbers = #tpu.dot_dimension_numbers<[1], [0], [0], [1], [0, 0, 1, 1], [], []>} : vector<8x128xbf16>, vector<128x128xbf16>, vector<8x128xf32> -> vector<8x128xf32>
    %177 = arith.addf %1, %176 : vector<8x128xf32>
    %c0_42 = arith.constant 0 : index
    %c0_43 = arith.constant 0 : index
    %178 = vector.load %arg15[%c0_42, %c0_43] : memref<1x128xf32, #tpu.memory_space<vmem>>, vector<1x128xf32>
    %c0_44 = arith.constant 0 : index
    %c0_45 = arith.constant 0 : index
    %179 = vector.load %arg16[%c0_44, %c0_45] : memref<1x128xf32, #tpu.memory_space<vmem>>, vector<1x128xf32>
    %cst_46 = arith.constant dense<0.000000e+00> : vector<8xf32>
    %180 = vector.multi_reduction <add>, %177, %cst_46 [1] : vector<8x128xf32> to vector<8xf32>
    %181 = vector.shape_cast %180 : vector<8xf32> to vector<8x1xf32>
    %cst_47 = arith.constant 1.280000e+02 : f32
    %182 = vector.broadcast %cst_47 : f32 to vector<8x1xf32>
    %183 = arith.divf %181, %182 : vector<8x1xf32>
    %184 = vector.broadcast %183 : vector<8x1xf32> to vector<8x128xf32>
    %185 = arith.subf %177, %184 : vector<8x128xf32>
    %186 = arith.mulf %185, %185 : vector<8x128xf32>
    %cst_48 = arith.constant dense<0.000000e+00> : vector<8xf32>
    %187 = vector.multi_reduction <add>, %186, %cst_48 [1] : vector<8x128xf32> to vector<8xf32>
    %188 = vector.shape_cast %187 : vector<8xf32> to vector<8x1xf32>
    %cst_49 = arith.constant 1.280000e+02 : f32
    %189 = vector.broadcast %cst_49 : f32 to vector<8x1xf32>
    %190 = arith.divf %188, %189 : vector<8x1xf32>
    %191 = vector.broadcast %183 : vector<8x1xf32> to vector<8x128xf32>
    %192 = arith.subf %177, %191 : vector<8x128xf32>
    %cst_50 = arith.constant 1.000000e-03 : f32
    %193 = vector.broadcast %cst_50 : f32 to vector<8x1xf32>
    %194 = arith.addf %190, %193 : vector<8x1xf32>
    %195 = math.rsqrt %194 : vector<8x1xf32>
    %196 = vector.broadcast %195 : vector<8x1xf32> to vector<8x128xf32>
    %197 = arith.mulf %192, %196 : vector<8x128xf32>
    %198 = vector.broadcast %178 : vector<1x128xf32> to vector<8x128xf32>
    %199 = arith.mulf %197, %198 : vector<8x128xf32>
    %200 = vector.broadcast %179 : vector<1x128xf32> to vector<8x128xf32>
    %201 = arith.addf %199, %200 : vector<8x128xf32>
    %202 = arith.truncf %201 : vector<8x128xf32> to vector<8x128xbf16>
    %c0_51 = arith.constant 0 : index
    %c0_52 = arith.constant 0 : index
    %203 = vector.load %arg11[%c0_51, %c0_52] : memref<128x256xbf16, #tpu.memory_space<vmem>>, vector<128x256xbf16>
    %cst_53 = arith.constant dense<0.000000e+00> : vector<8x256xf32>
    %204 = tpu.matmul %202, %203, %cst_53 {dimension_numbers = #tpu.dot_dimension_numbers<[1], [0], [0], [1], [0, 0, 1, 1], [], []>} : vector<8x128xbf16>, vector<128x256xbf16>, vector<8x256xf32> -> vector<8x256xf32>
    %c0_54 = arith.constant 0 : index
    %c0_55 = arith.constant 0 : index
    %205 = vector.load %arg12[%c0_54, %c0_55] : memref<1x256xf32, #tpu.memory_space<vmem>>, vector<1x256xf32>
    %206 = vector.broadcast %205 : vector<1x256xf32> to vector<8x256xf32>
    %207 = arith.addf %204, %206 : vector<8x256xf32>
    %cst_56 = arith.constant 0.000000e+00 : f32
    %208 = vector.broadcast %cst_56 : f32 to vector<8x256xf32>
    %209 = arith.maximumf %207, %208 : vector<8x256xf32>
    %210 = arith.truncf %209 : vector<8x256xf32> to vector<8x256xbf16>
    %c0_57 = arith.constant 0 : index
    %c0_58 = arith.constant 0 : index
    %211 = vector.load %arg13[%c0_57, %c0_58] : memref<256x128xbf16, #tpu.memory_space<vmem>>, vector<256x128xbf16>
    %cst_59 = arith.constant dense<0.000000e+00> : vector<8x128xf32>
    %212 = tpu.matmul %210, %211, %cst_59 {dimension_numbers = #tpu.dot_dimension_numbers<[1], [0], [0], [1], [0, 0, 1, 1], [], []>} : vector<8x256xbf16>, vector<256x128xbf16>, vector<8x128xf32> -> vector<8x128xf32>
    %c0_60 = arith.constant 0 : index
    %c0_61 = arith.constant 0 : index
    %213 = vector.load %arg14[%c0_60, %c0_61] : memref<1x128xf32, #tpu.memory_space<vmem>>, vector<1x128xf32>
    %214 = vector.broadcast %213 : vector<1x128xf32> to vector<8x128xf32>
    %215 = arith.addf %212, %214 : vector<8x128xf32>
    %216 = arith.addf %177, %215 : vector<8x128xf32>
    %c0_62 = arith.constant 0 : index
    %c0_63 = arith.constant 0 : index
    %c0_64 = arith.constant 0 : index
    %217 = vector.load %arg17[%c0_62, %c0_63, %c0_64] : memref<1x8x128xf32, #tpu.memory_space<vmem>>, vector<1x8x128xf32>
    %218 = vector.shape_cast %217 : vector<1x8x128xf32> to vector<8x128xf32>
    %219 = vector.shape_cast %216 : vector<8x128xf32> to vector<1x8x128xf32>
    tpu.vector_store %arg17[%c0_62, %c0_63, %c0_64], %219 {strides = array<i32>} : memref<1x8x128xf32, #tpu.memory_space<vmem>>, vector<1x8x128xf32>,
    return
  }
  func.func @transform_0(%arg0: i32) -> (i32, i32, i32) {
    %c0_i32 = arith.constant 0 : i32
    %c0_i32_0 = arith.constant 0 : i32
    %c0_i32_1 = arith.constant 0 : i32
    return %arg0, %c0_i32, %c0_i32_0 : i32, i32, i32
  }
  func.func @transform_1(%arg0: i32) -> (i32, i32, i32) {
    %c0_i32 = arith.constant 0 : i32
    %c0_i32_0 = arith.constant 0 : i32
    %c0_i32_1 = arith.constant 0 : i32
    return %arg0, %c0_i32, %c0_i32_0 : i32, i32, i32
  }
  func.func @transform_2(%arg0: i32) -> (i32, i32) {
    %c0_i32 = arith.constant 0 : i32
    %c0_i32_0 = arith.constant 0 : i32
    %c0_i32_1 = arith.constant 0 : i32
    return %c0_i32, %c0_i32_0 : i32, i32
  }
  func.func @transform_3(%arg0: i32) -> (i32, i32) {
    %c0_i32 = arith.constant 0 : i32
    %c0_i32_0 = arith.constant 0 : i32
    %c0_i32_1 = arith.constant 0 : i32
    return %c0_i32, %c0_i32_0 : i32, i32
  }
  func.func @transform_4(%arg0: i32) -> (i32, i32) {
    %c0_i32 = arith.constant 0 : i32
    %c0_i32_0 = arith.constant 0 : i32
    %c0_i32_1 = arith.constant 0 : i32
    return %c0_i32, %c0_i32_0 : i32, i32
  }
  func.func @transform_5(%arg0: i32) -> (i32, i32) {
    %c0_i32 = arith.constant 0 : i32
    %c0_i32_0 = arith.constant 0 : i32
    %c0_i32_1 = arith.constant 0 : i32
    return %c0_i32, %c0_i32_0 : i32, i32
  }
  func.func @transform_6(%arg0: i32) -> (i32, i32) {
    %c0_i32 = arith.constant 0 : i32
    %c0_i32_0 = arith.constant 0 : i32
    %c0_i32_1 = arith.constant 0 : i32
    return %c0_i32, %c0_i32_0 : i32, i32
  }
  func.func @transform_7(%arg0: i32) -> (i32, i32) {
    %c0_i32 = arith.constant 0 : i32
    %c0_i32_0 = arith.constant 0 : i32
    %c0_i32_1 = arith.constant 0 : i32
    return %c0_i32, %c0_i32_0 : i32, i32
  }
  func.func @transform_8(%arg0: i32) -> (i32, i32) {
    %c0_i32 = arith.constant 0 : i32
    %c0_i32_0 = arith.constant 0 : i32
    %c0_i32_1 = arith.constant 0 : i32
    return %c0_i32, %c0_i32_0 : i32, i32
  }
  func.func @transform_9(%arg0: i32) -> (i32, i32) {
    %c0_i32 = arith.constant 0 : i32
    %c0_i32_0 = arith.constant 0 : i32
    %c0_i32_1 = arith.constant 0 : i32
    return %c0_i32, %c0_i32_0 : i32, i32
  }
  func.func @transform_10(%arg0: i32) -> (i32, i32) {
    %c0_i32 = arith.constant 0 : i32
    %c0_i32_0 = arith.constant 0 : i32
    %c0_i32_1 = arith.constant 0 : i32
    return %c0_i32, %c0_i32_0 : i32, i32
  }
  func.func @transform_11(%arg0: i32) -> (i32, i32) {
    %c0_i32 = arith.constant 0 : i32
    %c0_i32_0 = arith.constant 0 : i32
    %c0_i32_1 = arith.constant 0 : i32
    return %c0_i32, %c0_i32_0 : i32, i32
  }
  func.func @transform_12(%arg0: i32) -> (i32, i32) {
    %c0_i32 = arith.constant 0 : i32
    %c0_i32_0 = arith.constant 0 : i32
    %c0_i32_1 = arith.constant 0 : i32
    return %c0_i32, %c0_i32_0 : i32, i32
  }
  func.func @transform_13(%arg0: i32) -> (i32, i32) {
    %c0_i32 = arith.constant 0 : i32
    %c0_i32_0 = arith.constant 0 : i32
    %c0_i32_1 = arith.constant 0 : i32
    return %c0_i32, %c0_i32_0 : i32, i32
  }
  func.func @transform_14(%arg0: i32) -> (i32, i32) {
    %c0_i32 = arith.constant 0 : i32
    %c0_i32_0 = arith.constant 0 : i32
    %c0_i32_1 = arith.constant 0 : i32
    return %c0_i32, %c0_i32_0 : i32, i32
  }
  func.func @transform_15(%arg0: i32) -> (i32, i32) {
    %c0_i32 = arith.constant 0 : i32
    %c0_i32_0 = arith.constant 0 : i32
    %c0_i32_1 = arith.constant 0 : i32
    return %c0_i32, %c0_i32_0 : i32, i32
  }
  func.func @transform_16(%arg0: i32) -> (i32, i32, i32) {
    %c0_i32 = arith.constant 0 : i32
    %c0_i32_0 = arith.constant 0 : i32
    %c0_i32_1 = arith.constant 0 : i32
    return %arg0, %c0_i32, %c0_i32_0 : i32, i32, i32
  }
}

</mosaic_0001>

<llo_original>
// kernel: model_forward.5
$region0: #{model_forward.5}
  #allocation0 [shape = 'u32[]', space=smem, size = 0x4, offset = 0x4, fixed_abs, tag = 'smem constant byte address 0x4 - core index']
  #allocation1 [shape = 'u32[72,128]{1,0:T(1,128)}', space=vmem, size = 0x9000, scoped, tag = 'internal scratch']
  %s0 = inlined_call_operand.vmem [shape: f32[16,128], index: 0, kind: input, shape index: {}]
  %s1 = inlined_call_operand.hbm [shape: bf16[128,256], index: 1, kind: input, shape index: {}]
  %s2 = inlined_call_operand.vmem [shape: f32[1,256], index: 2, kind: input, shape index: {}]
  %s3 = inlined_call_operand.hbm [shape: f32[16,256], index: 3, kind: output, shape index: {}]
  %s4 = sld [smem:[#allocation0]]
  $region26: #{model_forward.5} parent=0
    _
  %s6 = ssub.s32 1, %s4
  %s7 = scalar_select 0, %s6, %s4
  $region1: #{model_forward.5} parent=0
    #allocation2 [shape = 'u8[65536]{0}', space=vmem, size = 0x10000, scoped, tag = 'input window, operand 1, single buffered']
    #allocation3 [shape = 's32[1]{0}', space=sflag, size = 0x4, scoped, tag = 'scoped memory for model_forward.5']
    #allocation4 [shape = 's32[1]{0}', space=sflag, size = 0x4, scoped, tag = 'scoped memory for model_forward.5']
    #allocation5 [shape = 'u8[16384]{0}', space=vmem, size = 0x4000, scoped, tag = 'output window, operand 0, single buffered']
    %8 = vsyncpa [#allocation3], 0
    %9 = vsyncpa [#allocation4], 0
    // Predicated region
    $region2: #{model_forward.5} parent=1 // pred_check
      _
    $region3: #{model_forward.5} parent=1 // pred_check_branch
      %11 = sbr.rel (0) target = $region5
    $region4: #{model_forward.5} parent=1 // pred_region
      _
    $region5: #{model_forward.5} parent=1 // pred_fallthru
      _
    // Predicated region
    $region6: #{model_forward.5} parent=1 // pred_check
      _
    $region7: #{model_forward.5} parent=1 // pred_check_branch
      %13 = sbr.rel (0) target = $region9
    $region8: #{model_forward.5} parent=1 // pred_region
      %15 = vsyncadd [#allocation3], 0
      %s16 = sshll.u32 %s1, 4
      %s17 = int_to_ptr.hbm [resolvable:$true] %s16
      %s18 = sshll.u32 [#allocation2], 4
      %s19 = int_to_ptr.vmem [resolvable:$true] %s18
      %24 = dma.hbm_to_vmem [thread:$0]  %s17, 2048, %s19, [#allocation3], 128, 128, 8
    $region9: #{model_forward.5} parent=1 // pred_fallthru
      _
    // Predicated region
    $region10: #{model_forward.5} parent=1 // pred_check
      _
    $region11: #{model_forward.5} parent=1 // pred_check_branch
      %26 = sbr.rel (0) target = $region13
    $region12: #{model_forward.5} parent=1 // pred_region
      _
    $region13: #{model_forward.5} parent=1 // pred_fallthru
      _
    // Predicated region
    $region14: #{model_forward.5} parent=1 // pred_check
      _
    $region15: #{model_forward.5} parent=1 // pred_check_branch
      %28 = sbr.rel (0) target = $region17
    $region16: #{model_forward.5} parent=1 // pred_region
      %30 = dma.done [#allocation3], 2048
    $region17: #{model_forward.5} parent=1 // pred_fallthru
      _
    %v31 = vld [vmem:[%s0] sm:$0xff]
    %v32 = vld [vmem:[%s0 + $0x8] sm:$0xff]
    %v33 = vpack.c.bf16 %v32, %v31
    %v34 = vld [vmem:[#allocation2] sm:$0xff]
    %v35 = vld [vmem:[#allocation2 + $0x8] sm:$0xff]
    %v36 = vld [vmem:[#allocation2 + $0x10] sm:$0xff]
    %v37 = vld [vmem:[#allocation2 + $0x18] sm:$0xff]
    %v38 = vld [vmem:[#allocation2 + $0x20] sm:$0xff]
    %v39 = vld [vmem:[#allocation2 + $0x28] sm:$0xff]
    %v40 = vld [vmem:[#allocation2 + $0x30] sm:$0xff]
    %v41 = vld [vmem:[#allocation2 + $0x38] sm:$0xff]
    %v42 = vld [vmem:[#allocation2 + $0x40] sm:$0xff]
    %v43 = vld [vmem:[#allocation2 + $0x48] sm:$0xff]
    %v44 = vld [vmem:[#allocation2 + $0x50] sm:$0xff]
    %v45 = vld [vmem:[#allocation2 + $0x58] sm:$0xff]
    %v46 = vld [vmem:[#allocation2 + $0x60] sm:$0xff]
    %v47 = vld [vmem:[#allocation2 + $0x68] sm:$0xff]
    %v48 = vld [vmem:[#allocation2 + $0x70] sm:$0xff]
    %v49 = vld [vmem:[#allocation2 + $0x78] sm:$0xff]
    %v50 = vld [vmem:[%s2] sm:$0x3]
    %v52 = vperm.slane %v50, 0
    %v53 = vperm.slane %v50, 1
    %v72 = vunpack.c.l.b16 %v34
    %v73 = vunpack.c.h.b16 %v34
    %v74 = vunpack.c.l.b16 %v35
    %v75 = vunpack.c.h.b16 %v35
    %v76 = vunpack.c.l.b16 %v36
    %v77 = vunpack.c.h.b16 %v36
    %v78 = vunpack.c.l.b16 %v37
    %v79 = vunpack.c.h.b16 %v37
    %v80 = vunpack.c.l.b16 %v38
    %v81 = vunpack.c.h.b16 %v38
    %v82 = vunpack.c.l.b16 %v39
    %v83 = vunpack.c.h.b16 %v39
    %v84 = vunpack.c.l.b16 %v40
    %v85 = vunpack.c.h.b16 %v40
    %v86 = vunpack.c.l.b16 %v41
    %v87 = vunpack.c.h.b16 %v41
    %v88 = vunpack.c.l.b16 %v42
    %v89 = vunpack.c.h.b16 %v42
    %v90 = vunpack.c.l.b16 %v43
    %v91 = vunpack.c.h.b16 %v43
    %v92 = vunpack.c.l.b16 %v44
    %v93 = vunpack.c.h.b16 %v44
    %v94 = vunpack.c.l.b16 %v45
    %v95 = vunpack.c.h.b16 %v45
    %v96 = vunpack.c.l.b16 %v46
    %v97 = vunpack.c.h.b16 %v46
    %v98 = vunpack.c.l.b16 %v47
    %v99 = vunpack.c.h.b16 %v47
    %v100 = vunpack.c.l.b16 %v48
    %v101 = vunpack.c.h.b16 %v48
    %v102 = vunpack.c.l.b16 %v49
    %v103 = vunpack.c.h.b16 %v49
    %v104 = vpack.c.b16 %v74, %v72
    %v105 = vpack.c.b16 %v75, %v73
    %v106 = vpack.c.b16 %v78, %v76
    %v107 = vpack.c.b16 %v79, %v77
    %v108 = vpack.c.b16 %v82, %v80
    %v109 = vpack.c.b16 %v83, %v81
    %v110 = vpack.c.b16 %v86, %v84
    %v111 = vpack.c.b16 %v87, %v85
    %v112 = vpack.c.b16 %v90, %v88
    %v113 = vpack.c.b16 %v91, %v89
    %v114 = vpack.c.b16 %v94, %v92
    %v115 = vpack.c.b16 %v95, %v93
    %v116 = vpack.c.b16 %v98, %v96
    %v117 = vpack.c.b16 %v99, %v97
    %v118 = vpack.c.b16 %v102, %v100
    %v119 = vpack.c.b16 %v103, %v101
    %136 = vmatpush.bf16.msra.mxu0 %v118
    %137 = vmatpush.bf16.msra.mxu0 %v116
    %138 = vmatpush.bf16.msra.mxu0 %v114
    %139 = vmatpush.bf16.msra.mxu0 %v112
    %140 = vmatpush.bf16.msra.mxu0 %v110
    %141 = vmatpush.bf16.msra.mxu0 %v108
    %142 = vmatpush.bf16.msra.mxu0 %v106
    %143 = vmatpush.bf16.msra.mxu0 %v104
    %144 = vmatmul.bf16.gmra.mxu0 %v33
    %v145 = vpop.f32.mrf.mxu0
    %v146 = vadd.f32 %v52, %v145
    %v147 = vpop.f32.mrf.mxu0
    %v148 = vadd.f32 %v52, %v147
    %149 = vdwg.mxu0
    %150 = vmatpush.bf16.msra.mxu0 %v119
    %151 = vmatpush.bf16.msra.mxu0 %v117
    %152 = vmatpush.bf16.msra.mxu0 %v115
    %153 = vmatpush.bf16.msra.mxu0 %v113
    %154 = vmatpush.bf16.msra.mxu0 %v111
    %155 = vmatpush.bf16.msra.mxu0 %v109
    %156 = vmatpush.bf16.msra.mxu0 %v107
    %157 = vmatpush.bf16.msra.mxu0 %v105
    %158 = vmatmul.bf16.gmra.mxu0 %v33
    %v159 = vpop.f32.mrf.mxu0
    %v160 = vadd.f32 %v53, %v159
    %v161 = vpop.f32.mrf.mxu0
    %v162 = vadd.f32 %v53, %v161
    %163 = vdwg.mxu0
    %164 = vst [vmem:[#allocation5] sm:$0xff] %v146
    %165 = vst [vmem:[#allocation5 + $0x8] sm:$0xff] %v160
    %166 = vst [vmem:[#allocation5 + $0x10] sm:$0xff] %v148
    %167 = vst [vmem:[#allocation5 + $0x18] sm:$0xff] %v162
    // Predicated region
    $region18: #{model_forward.5} parent=1 // pred_check
      _
    $region19: #{model_forward.5} parent=1 // pred_check_branch
      %169 = sbr.rel (0) target = $region21
    $region20: #{model_forward.5} parent=1 // pred_region
      %171 = vsyncadd [#allocation4], 0
      %s172 = sshll.u32 [#allocation5], 4
      %s173 = int_to_ptr.vmem [resolvable:$true] %s172
      %s174 = sshll.u32 %s3, 4
      %s175 = int_to_ptr.hbm [resolvable:$true] %s174
      %180 = dma.vmem_to_hbm [thread:$0]  %s173, 512, %s175, [#allocation4], 256, 256, 16
    $region21: #{model_forward.5} parent=1 // pred_fallthru
      _
    // Predicated region
    $region22: #{model_forward.5} parent=1 // pred_check
      _
    $region23: #{model_forward.5} parent=1 // pred_check_branch
      %182 = sbr.rel (0) target = $region25
    $region24: #{model_forward.5} parent=1 // pred_region
      %184 = dma.done [#allocation4], 512
    $region25: #{model_forward.5} parent=1 // pred_fallthru
      _
    %185 = vsyncpa [#allocation3], 1
    %186 = vsyncpa [#allocation4], 1

// kernel: model_forward.4
$region0: #{model_forward.4}
  #allocation0 [shape = 'u32[]', space=smem, size = 0x4, offset = 0x4, fixed_abs, tag = 'smem constant byte address 0x4 - core index']
  #allocation1 [shape = 'u32[72,128]{1,0:T(1,128)}', space=vmem, size = 0x9000, scoped, tag = 'internal scratch']
  %s0 = inlined_call_operand.vmem [shape: f32[2,8,128], index: 0, kind: input, shape index: {}]
  %s1 = inlined_call_operand.vmem [shape: f32[2,8,128], index: 1, kind: input, shape index: {}]
  %s2 = inlined_call_operand.vmem [shape: f32[16,128], index: 2, kind: input, shape index: {}]
  %s3 = inlined_call_operand.vmem [shape: f32[1,128], index: 3, kind: input, shape index: {}]
  %s4 = inlined_call_operand.vmem [shape: f32[1,128], index: 4, kind: input, shape index: {}]
  %s5 = inlined_call_operand.hbm [shape: bf16[128,384], index: 5, kind: input, shape index: {}]
  %s6 = inlined_call_operand.hbm [shape: bf16[128,128], index: 6, kind: input, shape index: {}]
  %s7 = inlined_call_operand.hbm [shape: bf16[128,128], index: 7, kind: input, shape index: {}]
  %s8 = inlined_call_operand.vmem [shape: f32[1,128], index: 8, kind: input, shape index: {}]
  %s9 = inlined_call_operand.vmem [shape: f32[1,128], index: 9, kind: input, shape index: {}]
  %s10 = inlined_call_operand.hbm [shape: bf16[128,256], index: 10, kind: input, shape index: {}]
  %s11 = inlined_call_operand.vmem [shape: f32[1,256], index: 11, kind: input, shape index: {}]
  %s12 = inlined_call_operand.hbm [shape: bf16[256,128], index: 12, kind: input, shape index: {}]
  %s13 = inlined_call_operand.vmem [shape: f32[1,128], index: 13, kind: input, shape index: {}]
  %s14 = inlined_call_operand.vmem [shape: f32[1,128], index: 14, kind: input, shape index: {}]
  %s15 = inlined_call_operand.vmem [shape: f32[1,128], index: 15, kind: input, shape index: {}]
  %s16 = inlined_call_operand.vmem [shape: f32[2,8,128], index: 16, kind: output, shape index: {}]
  %s17 = sld [smem:[#allocation0]]
  $region117: #{model_forward.4} parent=0
    _
  %s19 = ssub.s32 1, %s17
  %s20 = scalar_select 0, %s19, %s17
  $region1: #{model_forward.4} parent=0
    #allocation2 [shape = 'u8[98304]{0}', space=vmem, size = 0x18000, scoped, tag = 'input window, operand 5, single buffered']
    #allocation3 [shape = 's32[2]{0}', space=sflag, size = 0x8, scoped, tag = 'scoped memory for model_forward.4']
    #allocation4 [shape = 'u8[32768]{0}', space=vmem, size = 0x8000, scoped, tag = 'input window, operand 6, single buffered']
    #allocation5 [shape = 's32[1]{0}', space=sflag, size = 0x4, scoped, tag = 'scoped memory for model_forward.4']
    #allocation6 [shape = 'u8[32768]{0}', space=vmem, size = 0x8000, scoped, tag = 'input window, operand 7, single buffered']
    #allocation7 [shape = 'u8[65536]{0}', space=vmem, size = 0x10000, scoped, tag = 'input window, operand 10, single buffered']
    #allocation8 [shape = 's32[1]{0}', space=sflag, size = 0x4, scoped, tag = 'scoped memory for model_forward.4']
    #allocation9 [shape = 'u8[65536]{0}', space=vmem, size = 0x10000, scoped, tag = 'input window, operand 12, single buffered']
    %21 = vsyncpa [#allocation3], 0
    %22 = vsyncpa [#allocation5], 0
    %23 = vsyncpa [#allocation8], 0
    loop: start=0, step=1, limit=4
    $region2: #{model_forward.4} parent=1 // loop_pre_header
      _
    $region3: #{model_forward.4} parent=1 // loop_header
      %s25 = sphi 0, %s29
      %p26 = scmp.ge.s32.totalorder %s25, 4
      %s35 = sphi 0, %s37
      %s38 = sphi 0, %s35
      %s39 = sphi 0, %s38
      %s55 = sphi 0, %s39
      %s61 = sphi 0, %s63
      %s64 = sphi 0, %s61
      %s65 = sphi 0, %s64
      %s81 = sphi 0, %s65
      %s85 = sphi 0, %s85
      %s87 = sphi 0, %s85
      %s88 = sphi 0, %s87
      %s102 = sphi 0, %s88
      %s106 = sphi 0, %s106
      %s108 = sphi 0, %s106
      %s109 = sphi 0, %s108
      %s123 = sphi 0, %s109
      %s127 = sphi 0, %s127
      %s129 = sphi 0, %s127
      %s130 = sphi 0, %s129
      %s144 = sphi 0, %s130
      %s148 = sphi 0, %s148
      %s150 = sphi 0, %s148
      %s151 = sphi 0, %s150
      %s165 = sphi 0, %s151
      %s169 = sphi 0, %s169
      %s171 = sphi 0, %s169
      %s172 = sphi 0, %s171
      %s186 = sphi 0, %s172
      %s190 = sphi 0, %s190
      %s192 = sphi 0, %s190
      %s193 = sphi 0, %s192
      %s207 = sphi 0, %s193
      %s211 = sphi 0, %s211
      %s213 = sphi 0, %s211
      %s214 = sphi 0, %s213
      %s228 = sphi 0, %s214
      %s232 = sphi 0, %s232
      %s234 = sphi 0, %s232
      %s235 = sphi 0, %s234
      %s249 = sphi 0, %s235
      %s253 = sphi 0, %s253
      %s255 = sphi 0, %s253
      %s256 = sphi 0, %s255
      %s270 = sphi 0, %s256
      %s274 = sphi 0, %s274
      %s276 = sphi 0, %s274
      %s277 = sphi 0, %s276
      %s291 = sphi 0, %s277
      %s295 = sphi 0, %s295
      %s297 = sphi 0, %s295
      %s298 = sphi 0, %s297
      %s312 = sphi 0, %s298
      %s316 = sphi 0, %s316
      %s318 = sphi 0, %s316
      %s319 = sphi 0, %s318
      %s333 = sphi 0, %s319
      %s337 = sphi 0, %s337
      %s339 = sphi 0, %s337
      %s340 = sphi 0, %s339
      %s354 = sphi 0, %s340
      %s358 = sphi 0, %s358
      %s360 = sphi 0, %s358
      %s361 = sphi 0, %s360
      %s375 = sphi 0, %s361
      %s381 = sphi 0, %s383
      %s384 = sphi 0, %s381
      %s385 = sphi 0, %s384
      %s401 = sphi 0, %s385
    $region4: #{model_forward.4} parent=1 // loop_header_branch
      %28 = sbr.rel (%p26) target = $region8
    $region5: #{model_forward.4} parent=1 // loop_body
      %s30 = ssub.s32 %s25, 1
      %s31 = ssub.s32 %s25, 2
      %s32 = sadd.s32 %s25, 1
      %s33 = ssub.s32 %s25, %s32
      %p34 = scmp.eq.s32.totalorder %s33, 0
      %s36 = sadd.s32 %s35, 1
      %s37 = scalar_select %p34, %s35, %s36
      %p40 = pneg %p34
      %p41 = scmp.eq.s32.totalorder %s25, 1
      %p42 = por %p40, %p41
      %p43 = scmp.ne.s32.totalorder %s35, %s38
      %p44 = scmp.eq.s32.totalorder %s25, 0
      %p45 = por %p43, %p44
      %p46 = scmp.ne.s32.totalorder %s35, %s38
      %p47 = scmp.eq.s32.totalorder %s30, 1
      %p48 = por %p46, %p47
      %p49 = scmp.ne.s32.totalorder %s38, %s39
      %p50 = scmp.eq.s32.totalorder %s30, 0
      %p51 = por %p49, %p50
      %p52 = scmp.ne.s32.totalorder %s38, %s39
      %p53 = scmp.eq.s32.totalorder %s31, 1
      %p54 = por %p52, %p53
      %p56 = scmp.ne.s32.totalorder %s39, %s55
      %p57 = scmp.eq.s32.totalorder %s31, 0
      %p58 = por %p56, %p57
      %s59 = ssub.s32 %s25, %s32
      %p60 = scmp.eq.s32.totalorder %s59, 0
      %s62 = sadd.s32 %s61, 1
      %s63 = scalar_select %p60, %s61, %s62
      %p66 = pneg %p60
      %p67 = scmp.eq.s32.totalorder %s25, 1
      %p68 = por %p66, %p67
      %p69 = scmp.ne.s32.totalorder %s61, %s64
      %p70 = scmp.eq.s32.totalorder %s25, 0
      %p71 = por %p69, %p70
      %p72 = scmp.ne.s32.totalorder %s61, %s64
      %p73 = scmp.eq.s32.totalorder %s30, 1
      %p74 = por %p72, %p73
      %p75 = scmp.ne.s32.totalorder %s64, %s65
      %p76 = scmp.eq.s32.totalorder %s30, 0
      %p77 = por %p75, %p76
      %p78 = scmp.ne.s32.totalorder %s64, %s65
      %p79 = scmp.eq.s32.totalorder %s31, 1
      %p80 = por %p78, %p79
      %p82 = scmp.ne.s32.totalorder %s65, %s81
      %p83 = scmp.eq.s32.totalorder %s31, 0
      %p84 = por %p82, %p83
      %s86 = sadd.s32 %s85, 1
      %p89 = scmp.eq.s32.totalorder %s25, 1
      %p90 = scmp.ne.s32.totalorder %s85, %s87
      %p91 = scmp.eq.s32.totalorder %s25, 0
      %p92 = por %p90, %p91
      %p93 = scmp.ne.s32.totalorder %s85, %s87
      %p94 = scmp.eq.s32.totalorder %s30, 1
      %p95 = por %p93, %p94
      %p96 = scmp.ne.s32.totalorder %s87, %s88
      %p97 = scmp.eq.s32.totalorder %s30, 0
      %p98 = por %p96, %p97
      %p99 = scmp.ne.s32.totalorder %s87, %s88
      %p100 = scmp.eq.s32.totalorder %s31, 1
      %p101 = por %p99, %p100
      %p103 = scmp.ne.s32.totalorder %s88, %s102
      %p104 = scmp.eq.s32.totalorder %s31, 0
      %p105 = por %p103, %p104
      %s107 = sadd.s32 %s106, 1
      %p110 = scmp.eq.s32.totalorder %s25, 1
      %p111 = scmp.ne.s32.totalorder %s106, %s108
      %p112 = scmp.eq.s32.totalorder %s25, 0
      %p113 = por %p111, %p112
      %p114 = scmp.ne.s32.totalorder %s106, %s108
      %p115 = scmp.eq.s32.totalorder %s30, 1
      %p116 = por %p114, %p115
      %p117 = scmp.ne.s32.totalorder %s108, %s109
      %p118 = scmp.eq.s32.totalorder %s30, 0
      %p119 = por %p117, %p118
      %p120 = scmp.ne.s32.totalorder %s108, %s109
      %p121 = scmp.eq.s32.totalorder %s31, 1
      %p122 = por %p120, %p121
      %p124 = scmp.ne.s32.totalorder %s109, %s123
      %p125 = scmp.eq.s32.totalorder %s31, 0
      %p126 = por %p124, %p125
      %s128 = sadd.s32 %s127, 1
      %p131 = scmp.eq.s32.totalorder %s25, 1
      %p132 = scmp.ne.s32.totalorder %s127, %s129
      %p133 = scmp.eq.s32.totalorder %s25, 0
      %p134 = por %p132, %p133
      %p135 = scmp.ne.s32.totalorder %s127, %s129
      %p136 = scmp.eq.s32.totalorder %s30, 1
      %p137 = por %p135, %p136
      %p138 = scmp.ne.s32.totalorder %s129, %s130
      %p139 = scmp.eq.s32.totalorder %s30, 0
      %p140 = por %p138, %p139
      %p141 = scmp.ne.s32.totalorder %s129, %s130
      %p142 = scmp.eq.s32.totalorder %s31, 1
      %p143 = por %p141, %p142
      %p145 = scmp.ne.s32.totalorder %s130, %s144
      %p146 = scmp.eq.s32.totalorder %s31, 0
      %p147 = por %p145, %p146
      %s149 = sadd.s32 %s148, 1
      %p152 = scmp.eq.s32.totalorder %s25, 1
      %p153 = scmp.ne.s32.totalorder %s148, %s150
      %p154 = scmp.eq.s32.totalorder %s25, 0
      %p155 = por %p153, %p154
      %p156 = scmp.ne.s32.totalorder %s148, %s150
      %p157 = scmp.eq.s32.totalorder %s30, 1
      %p158 = por %p156, %p157
      %p159 = scmp.ne.s32.totalorder %s150, %s151
      %p160 = scmp.eq.s32.totalorder %s30, 0
      %p161 = por %p159, %p160
      %p162 = scmp.ne.s32.totalorder %s150, %s151
      %p163 = scmp.eq.s32.totalorder %s31, 1
      %p164 = por %p162, %p163
      %p166 = scmp.ne.s32.totalorder %s151, %s165
      %p167 = scmp.eq.s32.totalorder %s31, 0
      %p168 = por %p166, %p167
      %s170 = sadd.s32 %s169, 1
      %p173 = scmp.eq.s32.totalorder %s25, 1
      %p174 = scmp.ne.s32.totalorder %s169, %s171
      %p175 = scmp.eq.s32.totalorder %s25, 0
      %p176 = por %p174, %p175
      %p177 = scmp.ne.s32.totalorder %s169, %s171
      %p178 = scmp.eq.s32.totalorder %s30, 1
      %p179 = por %p177, %p178
      %p180 = scmp.ne.s32.totalorder %s171, %s172
      %p181 = scmp.eq.s32.totalorder %s30, 0
      %p182 = por %p180, %p181
      %p183 = scmp.ne.s32.totalorder %s171, %s172
      %p184 = scmp.eq.s32.totalorder %s31, 1
      %p185 = por %p183, %p184
      %p187 = scmp.ne.s32.totalorder %s172, %s186
      %p188 = scmp.eq.s32.totalorder %s31, 0
      %p189 = por %p187, %p188
      %s191 = sadd.s32 %s190, 1
      %p194 = scmp.eq.s32.totalorder %s25, 1
      %p195 = scmp.ne.s32.totalorder %s190, %s192
      %p196 = scmp.eq.s32.totalorder %s25, 0
      %p197 = por %p195, %p196
      %p198 = scmp.ne.s32.totalorder %s190, %s192
      %p199 = scmp.eq.s32.totalorder %s30, 1
      %p200 = por %p198, %p199
      %p201 = scmp.ne.s32.totalorder %s192, %s193
      %p202 = scmp.eq.s32.totalorder %s30, 0
      %p203 = por %p201, %p202
      %p204 = scmp.ne.s32.totalorder %s192, %s193
      %p205 = scmp.eq.s32.totalorder %s31, 1
      %p206 = por %p204, %p205
      %p208 = scmp.ne.s32.totalorder %s193, %s207
      %p209 = scmp.eq.s32.totalorder %s31, 0
      %p210 = por %p208, %p209
      %s212 = sadd.s32 %s211, 1
      %p215 = scmp.eq.s32.totalorder %s25, 1
      %p216 = scmp.ne.s32.totalorder %s211, %s213
      %p217 = scmp.eq.s32.totalorder %s25, 0
      %p218 = por %p216, %p217
      %p219 = scmp.ne.s32.totalorder %s211, %s213
      %p220 = scmp.eq.s32.totalorder %s30, 1
      %p221 = por %p219, %p220
      %p222 = scmp.ne.s32.totalorder %s213, %s214
      %p223 = scmp.eq.s32.totalorder %s30, 0
      %p224 = por %p222, %p223
      %p225 = scmp.ne.s32.totalorder %s213, %s214
      %p226 = scmp.eq.s32.totalorder %s31, 1
      %p227 = por %p225, %p226
      %p229 = scmp.ne.s32.totalorder %s214, %s228
      %p230 = scmp.eq.s32.totalorder %s31, 0
      %p231 = por %p229, %p230
      %s233 = sadd.s32 %s232, 1
      %p236 = scmp.eq.s32.totalorder %s25, 1
      %p237 = scmp.ne.s32.totalorder %s232, %s234
      %p238 = scmp.eq.s32.totalorder %s25, 0
      %p239 = por %p237, %p238
      %p240 = scmp.ne.s32.totalorder %s232, %s234
      %p241 = scmp.eq.s32.totalorder %s30, 1
      %p242 = por %p240, %p241
      %p243 = scmp.ne.s32.totalorder %s234, %s235
      %p244 = scmp.eq.s32.totalorder %s30, 0
      %p245 = por %p243, %p244
      %p246 = scmp.ne.s32.totalorder %s234, %s235
      %p247 = scmp.eq.s32.totalorder %s31, 1
      %p248 = por %p246, %p247
      %p250 = scmp.ne.s32.totalorder %s235, %s249
      %p251 = scmp.eq.s32.totalorder %s31, 0
      %p252 = por %p250, %p251
      %s254 = sadd.s32 %s253, 1
      %p257 = scmp.eq.s32.totalorder %s25, 1
      %p258 = scmp.ne.s32.totalorder %s253, %s255
      %p259 = scmp.eq.s32.totalorder %s25, 0
      %p260 = por %p258, %p259
      %p261 = scmp.ne.s32.totalorder %s253, %s255
      %p262 = scmp.eq.s32.totalorder %s30, 1
      %p263 = por %p261, %p262
      %p264 = scmp.ne.s32.totalorder %s255, %s256
      %p265 = scmp.eq.s32.totalorder %s30, 0
      %p266 = por %p264, %p265
      %p267 = scmp.ne.s32.totalorder %s255, %s256
      %p268 = scmp.eq.s32.totalorder %s31, 1
      %p269 = por %p267, %p268
      %p271 = scmp.ne.s32.totalorder %s256, %s270
      %p272 = scmp.eq.s32.totalorder %s31, 0
      %p273 = por %p271, %p272
      %s275 = sadd.s32 %s274, 1
      %p278 = scmp.eq.s32.totalorder %s25, 1
      %p279 = scmp.ne.s32.totalorder %s274, %s276
      %p280 = scmp.eq.s32.totalorder %s25, 0
      %p281 = por %p279, %p280
      %p282 = scmp.ne.s32.totalorder %s274, %s276
      %p283 = scmp.eq.s32.totalorder %s30, 1
      %p284 = por %p282, %p283
      %p285 = scmp.ne.s32.totalorder %s276, %s277
      %p286 = scmp.eq.s32.totalorder %s30, 0
      %p287 = por %p285, %p286
      %p288 = scmp.ne.s32.totalorder %s276, %s277
      %p289 = scmp.eq.s32.totalorder %s31, 1
      %p290 = por %p288, %p289
      %p292 = scmp.ne.s32.totalorder %s277, %s291
      %p293 = scmp.eq.s32.totalorder %s31, 0
      %p294 = por %p292, %p293
      %s296 = sadd.s32 %s295, 1
      %p299 = scmp.eq.s32.totalorder %s25, 1
      %p300 = scmp.ne.s32.totalorder %s295, %s297
      %p301 = scmp.eq.s32.totalorder %s25, 0
      %p302 = por %p300, %p301
      %p303 = scmp.ne.s32.totalorder %s295, %s297
      %p304 = scmp.eq.s32.totalorder %s30, 1
      %p305 = por %p303, %p304
      %p306 = scmp.ne.s32.totalorder %s297, %s298
      %p307 = scmp.eq.s32.totalorder %s30, 0
      %p308 = por %p306, %p307
      %p309 = scmp.ne.s32.totalorder %s297, %s298
      %p310 = scmp.eq.s32.totalorder %s31, 1
      %p311 = por %p309, %p310
      %p313 = scmp.ne.s32.totalorder %s298, %s312
      %p314 = scmp.eq.s32.totalorder %s31, 0
      %p315 = por %p313, %p314
      %s317 = sadd.s32 %s316, 1
      %p320 = scmp.eq.s32.totalorder %s25, 1
      %p321 = scmp.ne.s32.totalorder %s316, %s318
      %p322 = scmp.eq.s32.totalorder %s25, 0
      %p323 = por %p321, %p322
      %p324 = scmp.ne.s32.totalorder %s316, %s318
      %p325 = scmp.eq.s32.totalorder %s30, 1
      %p326 = por %p324, %p325
      %p327 = scmp.ne.s32.totalorder %s318, %s319
      %p328 = scmp.eq.s32.totalorder %s30, 0
      %p329 = por %p327, %p328
      %p330 = scmp.ne.s32.totalorder %s318, %s319
      %p331 = scmp.eq.s32.totalorder %s31, 1
      %p332 = por %p330, %p331
      %p334 = scmp.ne.s32.totalorder %s319, %s333
      %p335 = scmp.eq.s32.totalorder %s31, 0
      %p336 = por %p334, %p335
      %s338 = sadd.s32 %s337, 1
      %p341 = scmp.eq.s32.totalorder %s25, 1
      %p342 = scmp.ne.s32.totalorder %s337, %s339
      %p343 = scmp.eq.s32.totalorder %s25, 0
      %p344 = por %p342, %p343
      %p345 = scmp.ne.s32.totalorder %s337, %s339
      %p346 = scmp.eq.s32.totalorder %s30, 1
      %p347 = por %p345, %p346
      %p348 = scmp.ne.s32.totalorder %s339, %s340
      %p349 = scmp.eq.s32.totalorder %s30, 0
      %p350 = por %p348, %p349
      %p351 = scmp.ne.s32.totalorder %s339, %s340
      %p352 = scmp.eq.s32.totalorder %s31, 1
      %p353 = por %p351, %p352
      %p355 = scmp.ne.s32.totalorder %s340, %s354
      %p356 = scmp.eq.s32.totalorder %s31, 0
      %p357 = por %p355, %p356
      %s359 = sadd.s32 %s358, 1
      %p362 = scmp.eq.s32.totalorder %s25, 1
      %p363 = scmp.ne.s32.totalorder %s358, %s360
      %p364 = scmp.eq.s32.totalorder %s25, 0
      %p365 = por %p363, %p364
      %p366 = scmp.ne.s32.totalorder %s358, %s360
      %p367 = scmp.eq.s32.totalorder %s30, 1
      %p368 = por %p366, %p367
      %p369 = scmp.ne.s32.totalorder %s360, %s361
      %p370 = scmp.eq.s32.totalorder %s30, 0
      %p371 = por %p369, %p370
      %p372 = scmp.ne.s32.totalorder %s360, %s361
      %p373 = scmp.eq.s32.totalorder %s31, 1
      %p374 = por %p372, %p373
      %p376 = scmp.ne.s32.totalorder %s361, %s375
      %p377 = scmp.eq.s32.totalorder %s31, 0
      %p378 = por %p376, %p377
      %s379 = ssub.s32 %s25, %s32
      %p380 = scmp.eq.s32.totalorder %s379, 0
      %s382 = sadd.s32 %s381, 1
      %s383 = scalar_select %p380, %s381, %s382
      %p386 = pneg %p380
      %p387 = scmp.eq.s32.totalorder %s25, 1
      %p388 = por %p386, %p387
      %p389 = scmp.ne.s32.totalorder %s381, %s384
      %p390 = scmp.eq.s32.totalorder %s25, 0
      %p391 = por %p389, %p390
      %p392 = scmp.ne.s32.totalorder %s381, %s384
      %p393 = scmp.eq.s32.totalorder %s30, 1
      %p394 = por %p392, %p393
      %p395 = scmp.ne.s32.totalorder %s384, %s385
      %p396 = scmp.eq.s32.totalorder %s30, 0
      %p397 = por %p395, %p396
      %p398 = scmp.ne.s32.totalorder %s384, %s385
      %p399 = scmp.eq.s32.totalorder %s31, 1
      %p400 = por %p398, %p399
      %p402 = scmp.ne.s32.totalorder %s385, %s401
      %p403 = scmp.eq.s32.totalorder %s31, 0
      %p404 = por %p402, %p403
      %p405 = scmp.le.s32.totalorder 1, %s25
      %p406 = scmp.lt.s32.totalorder %s25, 3
      %p407 = pnand %p405, %p406
      %p408 = pneg %p407
      // Predicated region
      $region9: #{model_forward.4} parent=5 // pred_check
        _
      $region10: #{model_forward.4} parent=5 // pred_check_branch
        %410 = sbr.rel (%p407) target = $region12
      $region11: #{model_forward.4} parent=5 // pred_region
        %s411 = ssub.s32 %s25, 1
        // Predicated region
        $region13: #{model_forward.4} parent=11 // pred_check
          %p412 = pneg %p98
        $region14: #{model_forward.4} parent=11 // pred_check_branch
          %414 = sbr.rel (%p412) target = $region16
        $region15: #{model_forward.4} parent=11 // pred_region
          _
        $region16: #{model_forward.4} parent=11 // pred_fallthru
          _
        // Predicated region
        $region17: #{model_forward.4} parent=11 // pred_check
          %p415 = pneg %p119
        $region18: #{model_forward.4} parent=11 // pred_check_branch
          %417 = sbr.rel (%p415) target = $region20
        $region19: #{model_forward.4} parent=11 // pred_region
          _
        $region20: #{model_forward.4} parent=11 // pred_fallthru
          _
        // Predicated region
        $region21: #{model_forward.4} parent=11 // pred_check
          %p418 = pneg %p140
        $region22: #{model_forward.4} parent=11 // pred_check_branch
          %420 = sbr.rel (%p418) target = $region24
        $region23: #{model_forward.4} parent=11 // pred_region
          _
        $region24: #{model_forward.4} parent=11 // pred_fallthru
          _
        // Predicated region
        $region25: #{model_forward.4} parent=11 // pred_check
          %p421 = pneg %p161
        $region26: #{model_forward.4} parent=11 // pred_check_branch
          %423 = sbr.rel (%p421) target = $region28
        $region27: #{model_forward.4} parent=11 // pred_region
          %425 = vsyncadd [#allocation3], 0
          %s426 = sshll.u32 %s5, 4
          %s427 = int_to_ptr.hbm [resolvable:$true] %s426
          %s428 = sshll.u32 [#allocation2], 4
          %s429 = int_to_ptr.vmem [resolvable:$true] %s428
          %434 = dma.hbm_to_vmem [thread:$0]  %s427, 3072, %s429, [#allocation3], 192, 192, 12
        $region28: #{model_forward.4} parent=11 // pred_fallthru
          _
        // Predicated region
        $region29: #{model_forward.4} parent=11 // pred_check
          %p435 = pneg %p182
        $region30: #{model_forward.4} parent=11 // pred_check_branch
          %437 = sbr.rel (%p435) target = $region32
        $region31: #{model_forward.4} parent=11 // pred_region
          %439 = vsyncadd [#allocation5], 0
          %s440 = sshll.u32 %s6, 4
          %s441 = int_to_ptr.hbm [resolvable:$true] %s440
          %s442 = sshll.u32 [#allocation4], 4
          %s443 = int_to_ptr.vmem [resolvable:$true] %s442
          %448 = dma.hbm_to_vmem [thread:$0]  %s441, 1024, %s443, [#allocation5], 64, 64, 4
        $region32: #{model_forward.4} parent=11 // pred_fallthru
          _
        // Predicated region
        $region33: #{model_forward.4} parent=11 // pred_check
          %p449 = pneg %p203
        $region34: #{model_forward.4} parent=11 // pred_check_branch
          %451 = sbr.rel (%p449) target = $region36
        $region35: #{model_forward.4} parent=11 // pred_region
          %453 = vsyncadd [#allocation5], 0
          %s454 = sshll.u32 %s7, 4
          %s455 = int_to_ptr.hbm [resolvable:$true] %s454
          %s456 = sshll.u32 [#allocation6], 4
          %s457 = int_to_ptr.vmem [resolvable:$true] %s456
          %462 = dma.hbm_to_vmem [thread:$0]  %s455, 1024, %s457, [#allocation5], 64, 64, 4
        $region36: #{model_forward.4} parent=11 // pred_fallthru
          _
        // Predicated region
        $region37: #{model_forward.4} parent=11 // pred_check
          %p463 = pneg %p224
        $region38: #{model_forward.4} parent=11 // pred_check_branch
          %465 = sbr.rel (%p463) target = $region40
        $region39: #{model_forward.4} parent=11 // pred_region
          _
        $region40: #{model_forward.4} parent=11 // pred_fallthru
          _
        // Predicated region
        $region41: #{model_forward.4} parent=11 // pred_check
          %p466 = pneg %p245
        $region42: #{model_forward.4} parent=11 // pred_check_branch
          %468 = sbr.rel (%p466) target = $region44
        $region43: #{model_forward.4} parent=11 // pred_region
          _
        $region44: #{model_forward.4} parent=11 // pred_fallthru
          _
        // Predicated region
        $region45: #{model_forward.4} parent=11 // pred_check
          %p469 = pneg %p266
        $region46: #{model_forward.4} parent=11 // pred_check_branch
          %471 = sbr.rel (%p469) target = $region48
        $region47: #{model_forward.4} parent=11 // pred_region
          %473 = vsyncadd [#allocation8], 0
          %s474 = sshll.u32 %s10, 4
          %s475 = int_to_ptr.hbm [resolvable:$true] %s474
          %s476 = sshll.u32 [#allocation7], 4
          %s477 = int_to_ptr.vmem [resolvable:$true] %s476
          %482 = dma.hbm_to_vmem [thread:$0]  %s475, 2048, %s477, [#allocation8], 128, 128, 8
        $region48: #{model_forward.4} parent=11 // pred_fallthru
          _
        // Predicated region
        $region49: #{model_forward.4} parent=11 // pred_check
          %p483 = pneg %p287
        $region50: #{model_forward.4} parent=11 // pred_check_branch
          %485 = sbr.rel (%p483) target = $region52
        $region51: #{model_forward.4} parent=11 // pred_region
          _
        $region52: #{model_forward.4} parent=11 // pred_fallthru
          _
        // Predicated region
        $region53: #{model_forward.4} parent=11 // pred_check
          %p486 = pneg %p308
        $region54: #{model_forward.4} parent=11 // pred_check_branch
          %488 = sbr.rel (%p486) target = $region56
        $region55: #{model_forward.4} parent=11 // pred_region
          %490 = vsyncadd [#allocation8], 0
          %s491 = sshll.u32 %s12, 4
          %s492 = int_to_ptr.hbm [resolvable:$true] %s491
          %s493 = sshll.u32 [#allocation9], 4
          %s494 = int_to_ptr.vmem [resolvable:$true] %s493
          %499 = dma.hbm_to_vmem [thread:$0]  %s492, 2048, %s494, [#allocation8], 64, 64, 4
        $region56: #{model_forward.4} parent=11 // pred_fallthru
          _
        // Predicated region
        $region57: #{model_forward.4} parent=11 // pred_check
          %p500 = pneg %p329
        $region58: #{model_forward.4} parent=11 // pred_check_branch
          %502 = sbr.rel (%p500) target = $region60
        $region59: #{model_forward.4} parent=11 // pred_region
          _
        $region60: #{model_forward.4} parent=11 // pred_fallthru
          _
        // Predicated region
        $region61: #{model_forward.4} parent=11 // pred_check
          %p503 = pneg %p350
        $region62: #{model_forward.4} parent=11 // pred_check_branch
          %505 = sbr.rel (%p503) target = $region64
        $region63: #{model_forward.4} parent=11 // pred_region
          _
        $region64: #{model_forward.4} parent=11 // pred_fallthru
          _
        // Predicated region
        $region65: #{model_forward.4} parent=11 // pred_check
          %p506 = pneg %p371
        $region66: #{model_forward.4} parent=11 // pred_check_branch
          %508 = sbr.rel (%p506) target = $region68
        $region67: #{model_forward.4} parent=11 // pred_region
          _
        $region68: #{model_forward.4} parent=11 // pred_fallthru
          _
      $region12: #{model_forward.4} parent=5 // pred_fallthru
        _
      %p509 = scmp.lt.s32.totalorder %s25, 2
      // Predicated region
      $region69: #{model_forward.4} parent=5 // pred_check
        %p510 = pneg %p509
      $region70: #{model_forward.4} parent=5 // pred_check_branch
        %512 = sbr.rel (%p510) target = $region72
      $region71: #{model_forward.4} parent=5 // pred_region
        // Predicated region
        $region73: #{model_forward.4} parent=71 // pred_check
          %p513 = pneg %p45
        $region74: #{model_forward.4} parent=71 // pred_check_branch
          %515 = sbr.rel (%p513) target = $region76
        $region75: #{model_forward.4} parent=71 // pred_region
          %p516 = scmp.lt.s32.totalorder %s25, 1
          %s517 = scalar_select %p516, %s25, 1
          %s518 = smul.addr %s517, 8
          %s519 = scalar_lea.vmem %s0, %s518
        $region76: #{model_forward.4} parent=71 // pred_fallthru
          _
        // Predicated region
        $region77: #{model_forward.4} parent=71 // pred_check
          %p520 = pneg %p71
        $region78: #{model_forward.4} parent=71 // pred_check_branch
          %522 = sbr.rel (%p520) target = $region80
        $region79: #{model_forward.4} parent=71 // pred_region
          %p523 = scmp.lt.s32.totalorder %s25, 1
          %s524 = scalar_select %p523, %s25, 1
          %s525 = smul.addr %s524, 8
          %s526 = scalar_lea.vmem %s1, %s525
        $region80: #{model_forward.4} parent=71 // pred_fallthru
          _
      $region72: #{model_forward.4} parent=5 // pred_fallthru
        _
      %p527 = scmp.le.s32.totalorder 1, %s25
      %p528 = scmp.lt.s32.totalorder %s25, 3
      %p529 = pnand %p527, %p528
      %p530 = pneg %p529
      // Predicated region
      $region81: #{model_forward.4} parent=5 // pred_check
        _
      $region82: #{model_forward.4} parent=5 // pred_check_branch
        %532 = sbr.rel (%p529) target = $region84
      $region83: #{model_forward.4} parent=5 // pred_region
        %s533 = ssub.s32 %s25, 1
        // Predicated region
        $region85: #{model_forward.4} parent=83 // pred_check
          %p534 = pneg %p161
        $region86: #{model_forward.4} parent=83 // pred_check_branch
          %536 = sbr.rel (%p534) target = $region88
        $region87: #{model_forward.4} parent=83 // pred_region
          %538 = dma.done [#allocation3], 3072
        $region88: #{model_forward.4} parent=83 // pred_fallthru
          _
        // Predicated region
        $region89: #{model_forward.4} parent=83 // pred_check
          %p539 = pneg %p182
        $region90: #{model_forward.4} parent=83 // pred_check_branch
          %541 = sbr.rel (%p539) target = $region92
        $region91: #{model_forward.4} parent=83 // pred_region
          %543 = dma.done [#allocation5], 1024
        $region92: #{model_forward.4} parent=83 // pred_fallthru
          _
        // Predicated region
        $region93: #{model_forward.4} parent=83 // pred_check
          %p544 = pneg %p203
        $region94: #{model_forward.4} parent=83 // pred_check_branch
          %546 = sbr.rel (%p544) target = $region96
        $region95: #{model_forward.4} parent=83 // pred_region
          %548 = dma.done [#allocation5], 1024
        $region96: #{model_forward.4} parent=83 // pred_fallthru
          _
        // Predicated region
        $region97: #{model_forward.4} parent=83 // pred_check
          %p549 = pneg %p266
        $region98: #{model_forward.4} parent=83 // pred_check_branch
          %551 = sbr.rel (%p549) target = $region100
        $region99: #{model_forward.4} parent=83 // pred_region
          %553 = dma.done [#allocation8], 2048
        $region100: #{model_forward.4} parent=83 // pred_fallthru
          _
        // Predicated region
        $region101: #{model_forward.4} parent=83 // pred_check
          %p554 = pneg %p308
        $region102: #{model_forward.4} parent=83 // pred_check_branch
          %556 = sbr.rel (%p554) target = $region104
        $region103: #{model_forward.4} parent=83 // pred_region
          %558 = dma.done [#allocation8], 2048
        $region104: #{model_forward.4} parent=83 // pred_fallthru
          _
        %p559 = scmp.lt.s32.totalorder %s30, 1
        %s560 = scalar_select %p559, %s30, 1
        %s561 = smul.addr %s560, 8
        %s562 = scalar_lea.vmem %s0, %s561
        %p563 = pneg %p51
        %p564 = pneg %p48
        %p565 = scmp.lt.s32.totalorder %s30, 1
        %s566 = scalar_select %p565, %s30, 1
        %s567 = smul.addr %s566, 8
        %s568 = scalar_lea.vmem %s1, %s567
        %p569 = pneg %p77
        %p570 = pneg %p74
        %p571 = pneg %p98
        %p572 = pneg %p95
        %p573 = pneg %p119
        %p574 = pneg %p116
        %p575 = pneg %p140
        %p576 = pneg %p137
        %p577 = pneg %p161
        %p578 = pneg %p158
        %p579 = pneg %p182
        %p580 = pneg %p179
        %p581 = pneg %p203
        %p582 = pneg %p200
        %p583 = pneg %p224
        %p584 = pneg %p221
        %p585 = pneg %p245
        %p586 = pneg %p242
        %p587 = pneg %p266
        %p588 = pneg %p263
        %p589 = pneg %p287
        %p590 = pneg %p284
        %p591 = pneg %p308
        %p592 = pneg %p305
        %p593 = pneg %p329
        %p594 = pneg %p326
        %p595 = pneg %p350
        %p596 = pneg %p347
        %p597 = pneg %p371
        %p598 = pneg %p368
        %p599 = pneg %p397
        %p600 = pneg %p394
        %p601 = scmp.lt.s32.totalorder %s30, 1
        %s602 = scalar_select %p601, %s30, 1
        %s603 = smul.addr %s602, 8
        %s604 = scalar_lea.vmem %s16, %s603
        %p605 = scmp.lt.s32.totalorder %s30, 1
        %s606 = scalar_select %p605, %s30, 1
        %s607 = smul.addr %s606, 8
        %s608 = scalar_lea.vmem %s0, %s607
        %p609 = scmp.lt.s32.totalorder %s30, 1
        %s610 = scalar_select %p609, %s30, 1
        %s611 = smul.addr %s610, 8
        %s612 = scalar_lea.vmem %s1, %s611
        %p613 = scmp.lt.s32.totalorder %s30, 1
        %s614 = scalar_select %p613, %s30, 1
        %s615 = smul.addr %s614, 8
        %s616 = scalar_lea.vmem %s16, %s615
        %v618 = vld [vmem:[%s608] sm:$0xff]
        %v619 = vld [vmem:[%s612] sm:$0xff]
        %v620 = vld [vmem:[%s2] sm:$0xff]
        %v621 = vld [vmem:[%s2 + $0x8] sm:$0xff]
        %v622 = vld [vmem:[%s8] sm:$0x1]
        %v623 = vld [vmem:[%s9] sm:$0x1]
        %624 = vadd.xlane.f32.xlu0 %v619
        %v625 = vpop.xlane.xlu0 %624
        %626 = vadd.xlane.f32.xlu0 %v618
        %v627 = vpop.xlane.xlu0 %626
        %v628 = vrcp.pop 128.0
        %v629 = vmul.f32 128.0, %v628
        %v630 = vsub.f32 1.0, %v629
        %v631 = vmul.f32 %v628, %v630
        %v632 = vadd.f32 %v628, %v631
        %vm633 = vweird.f32 %v628
        %v634 = vsel %vm633, %v628, %v632
        %v635 = vmul.f32 %v625, %v634
        %v636 = vmul.f32 %v627, %v634
        %v637 = vsub.f32 %v619, %v635
        %v638 = vsub.f32 %v618, %v636
        %v639 = vmul.f32 %v637, %v637
        %v640 = vmul.f32 %v638, %v638
        %641 = vadd.xlane.f32.xlu0 %v639
        %v642 = vpop.xlane.xlu0 %641
        %643 = vadd.xlane.f32.xlu0 %v640
        %v644 = vpop.xlane.xlu0 %643
        %v645 = vmul.f32 %v642, %v634
        %v646 = vmul.f32 %v644, %v634
        %v647 = vadd.f32 %v645, 0.001
        %v648 = vadd.f32 %v646, 0.001
        %v649 = vrsqrt.pop %v647
        %v650 = vmul.f32 %v649, %v647
        %v651 = vmul.f32 %v650, %v649
        %v652 = vmul.f32 0.5, %v651
        %v653 = vsub.f32 1.5, %v652
        %v654 = vmul.f32 %v649, %v653
        %vm655 = vweird.f32 %v647
        %vm656 = vweird.f32 %v649
        %vm657 = vmor %vm655, %vm656
        %v658 = vsel %vm657, %v649, %v654
        %v659 = vrsqrt.pop %v648
        %v660 = vmul.f32 %v659, %v648
        %v661 = vmul.f32 %v660, %v659
        %v662 = vmul.f32 0.5, %v661
        %v663 = vsub.f32 1.5, %v662
        %v664 = vmul.f32 %v659, %v663
        %vm665 = vweird.f32 %v648
        %vm666 = vweird.f32 %v659
        %vm667 = vmor %vm665, %vm666
        %v668 = vsel %vm667, %v659, %v664
        %v669 = vmul.f32 %v637, %v658
        %v670 = vmul.f32 %v638, %v668
        %v672 = vperm.slane %v622, 0
        %v674 = vmul.f32 %v669, %v672
        %v675 = vmul.f32 %v670, %v672
        %v677 = vperm.slane %v623, 0
        %v679 = vadd.f32 %v674, %v677
        %v680 = vadd.f32 %v675, %v677
        %v681 = vpack.c.bf16 %v680, %v679
        %v682 = vld [vmem:[#allocation2] sm:$0xff]
        %v683 = vld [vmem:[#allocation2 + $0x8] sm:$0xf]
        %v684 = vld [vmem:[#allocation2 + $0xc] sm:$0xff]
        %v685 = vld [vmem:[#allocation2 + $0x14] sm:$0xf]
        %v686 = vld [vmem:[#allocation2 + $0x18] sm:$0xff]
        %v687 = vld [vmem:[#allocation2 + $0x20] sm:$0xf]
        %v688 = vld [vmem:[#allocation2 + $0x24] sm:$0xff]
        %v689 = vld [vmem:[#allocation2 + $0x2c] sm:$0xf]
        %v690 = vld [vmem:[#allocation2 + $0x30] sm:$0xff]
        %v691 = vld [vmem:[#allocation2 + $0x38] sm:$0xf]
        %v692 = vld [vmem:[#allocation2 + $0x3c] sm:$0xff]
        %v693 = vld [vmem:[#allocation2 + $0x44] sm:$0xf]
        %v694 = vld [vmem:[#allocation2 + $0x48] sm:$0xff]
        %v695 = vld [vmem:[#allocation2 + $0x50] sm:$0xf]
        %v696 = vld [vmem:[#allocation2 + $0x54] sm:$0xff]
        %v697 = vld [vmem:[#allocation2 + $0x5c] sm:$0xf]
        %v698 = vld [vmem:[#allocation2 + $0x60] sm:$0xff]
        %v699 = vld [vmem:[#allocation2 + $0x68] sm:$0xf]
        %v700 = vld [vmem:[#allocation2 + $0x6c] sm:$0xff]
        %v701 = vld [vmem:[#allocation2 + $0x74] sm:$0xf]
        %v702 = vld [vmem:[#allocation2 + $0x78] sm:$0xff]
        %v703 = vld [vmem:[#allocation2 + $0x80] sm:$0xf]
        %v704 = vld [vmem:[#allocation2 + $0x84] sm:$0xff]
        %v705 = vld [vmem:[#allocation2 + $0x8c] sm:$0xf]
        %v706 = vld [vmem:[#allocation2 + $0x90] sm:$0xff]
        %v707 = vld [vmem:[#allocation2 + $0x98] sm:$0xf]
        %v708 = vld [vmem:[#allocation2 + $0x9c] sm:$0xff]
        %v709 = vld [vmem:[#allocation2 + $0xa4] sm:$0xf]
        %v710 = vld [vmem:[#allocation2 + $0xa8] sm:$0xff]
        %v711 = vld [vmem:[#allocation2 + $0xb0] sm:$0xf]
        %v712 = vld [vmem:[#allocation2 + $0xb4] sm:$0xff]
        %v713 = vld [vmem:[#allocation2 + $0xbc] sm:$0xf]
        %v746 = vunpack.c.l.b16 %v682
        %v747 = vunpack.c.h.b16 %v682
        %v748 = vunpack.c.l.b16 %v683
        %v749 = vunpack.c.l.b16 %v684
        %v750 = vunpack.c.h.b16 %v684
        %v751 = vunpack.c.l.b16 %v685
        %v752 = vunpack.c.l.b16 %v686
        %v753 = vunpack.c.h.b16 %v686
        %v754 = vunpack.c.l.b16 %v687
        %v755 = vunpack.c.l.b16 %v688
        %v756 = vunpack.c.h.b16 %v688
        %v757 = vunpack.c.l.b16 %v689
        %v758 = vunpack.c.l.b16 %v690
        %v759 = vunpack.c.h.b16 %v690
        %v760 = vunpack.c.l.b16 %v691
        %v761 = vunpack.c.l.b16 %v692
        %v762 = vunpack.c.h.b16 %v692
        %v763 = vunpack.c.l.b16 %v693
        %v764 = vunpack.c.l.b16 %v694
        %v765 = vunpack.c.h.b16 %v694
        %v766 = vunpack.c.l.b16 %v695
        %v767 = vunpack.c.l.b16 %v696
        %v768 = vunpack.c.h.b16 %v696
        %v769 = vunpack.c.l.b16 %v697
        %v770 = vunpack.c.l.b16 %v698
        %v771 = vunpack.c.h.b16 %v698
        %v772 = vunpack.c.l.b16 %v699
        %v773 = vunpack.c.l.b16 %v700
        %v774 = vunpack.c.h.b16 %v700
        %v775 = vunpack.c.l.b16 %v701
        %v776 = vunpack.c.l.b16 %v702
        %v777 = vunpack.c.h.b16 %v702
        %v778 = vunpack.c.l.b16 %v703
        %v779 = vunpack.c.l.b16 %v704
        %v780 = vunpack.c.h.b16 %v704
        %v781 = vunpack.c.l.b16 %v705
        %v782 = vunpack.c.l.b16 %v706
        %v783 = vunpack.c.h.b16 %v706
        %v784 = vunpack.c.l.b16 %v707
        %v785 = vunpack.c.l.b16 %v708
        %v786 = vunpack.c.h.b16 %v708
        %v787 = vunpack.c.l.b16 %v709
        %v788 = vunpack.c.l.b16 %v710
        %v789 = vunpack.c.h.b16 %v710
        %v790 = vunpack.c.l.b16 %v711
        %v791 = vunpack.c.l.b16 %v712
        %v792 = vunpack.c.h.b16 %v712
        %v793 = vunpack.c.l.b16 %v713
        %v794 = vpack.c.b16 %v749, %v746
        %v795 = vpack.c.b16 %v750, %v747
        %v796 = vpack.c.b16 %v751, %v748
        %v797 = vpack.c.b16 %v755, %v752
        %v798 = vpack.c.b16 %v756, %v753
        %v799 = vpack.c.b16 %v757, %v754
        %v800 = vpack.c.b16 %v761, %v758
        %v801 = vpack.c.b16 %v762, %v759
        %v802 = vpack.c.b16 %v763, %v760
        %v803 = vpack.c.b16 %v767, %v764
        %v804 = vpack.c.b16 %v768, %v765
        %v805 = vpack.c.b16 %v769, %v766
        %v806 = vpack.c.b16 %v773, %v770
        %v807 = vpack.c.b16 %v774, %v771
        %v808 = vpack.c.b16 %v775, %v772
        %v809 = vpack.c.b16 %v779, %v776
        %v810 = vpack.c.b16 %v780, %v777
        %v811 = vpack.c.b16 %v781, %v778
        %v812 = vpack.c.b16 %v785, %v782
        %v813 = vpack.c.b16 %v786, %v783
        %v814 = vpack.c.b16 %v787, %v784
        %v815 = vpack.c.b16 %v791, %v788
        %v816 = vpack.c.b16 %v792, %v789
        %v817 = vpack.c.b16 %v793, %v790
        %842 = vmatpush.bf16.msra.mxu0 %v815
        %843 = vmatpush.bf16.msra.mxu0 %v812
        %844 = vmatpush.bf16.msra.mxu0 %v809
        %845 = vmatpush.bf16.msra.mxu0 %v806
        %846 = vmatpush.bf16.msra.mxu0 %v803
        %847 = vmatpush.bf16.msra.mxu0 %v800
        %848 = vmatpush.bf16.msra.mxu0 %v797
        %849 = vmatpush.bf16.msra.mxu0 %v794
        %850 = vmatmul.bf16.gmra.mxu0 %v681
        %v851 = vpop.f32.mrf.mxu0
        %v852 = vpop.f32.mrf.mxu0
        %v853 = vadd.f32 0.0, %v852
        %854 = vdwg.mxu0
        %855 = vmatpush.bf16.msra.mxu0 %v816
        %856 = vmatpush.bf16.msra.mxu0 %v813
        %857 = vmatpush.bf16.msra.mxu0 %v810
        %858 = vmatpush.bf16.msra.mxu0 %v807
        %859 = vmatpush.bf16.msra.mxu0 %v804
        %860 = vmatpush.bf16.msra.mxu0 %v801
        %861 = vmatpush.bf16.msra.mxu0 %v798
        %862 = vmatpush.bf16.msra.mxu0 %v795
        %863 = vmatmul.bf16.gmra.mxu0 %v681
        %v864 = vpop.f32.mrf.mxu0
        %v865 = vadd.f32 0.0, %v864
        %v866 = vpop.f32.mrf.mxu0
        %v867 = vadd.f32 0.0, %v866
        %868 = vdwg.mxu0
        %869 = vmatpush.bf16.msra.mxu0 %v817
        %870 = vmatpush.bf16.msra.mxu0 %v814
        %871 = vmatpush.bf16.msra.mxu0 %v811
        %872 = vmatpush.bf16.msra.mxu0 %v808
        %873 = vmatpush.bf16.msra.mxu0 %v805
        %874 = vmatpush.bf16.msra.mxu0 %v802
        %875 = vmatpush.bf16.msra.mxu0 %v799
        %876 = vmatpush.bf16.msra.mxu0 %v796
        %877 = vmatmul.bf16.gmra.mxu0 %v681
        %v878 = vpop.f32.mrf.mxu0
        %v879 = vadd.f32 0.0, %v878
        %v880 = vpop.f32.mrf.mxu0
        %v881 = vadd.f32 0.0, %v880
        %882 = vdwg.mxu0
        %v883 = vpack.c.bf16 %v621, %v620
        %v884 = vld [vmem:[#allocation4] sm:$0xf]
        %v885 = vld [vmem:[#allocation4 + $0x4] sm:$0xf]
        %v886 = vld [vmem:[#allocation4 + $0x8] sm:$0xf]
        %v887 = vld [vmem:[#allocation4 + $0xc] sm:$0xf]
        %v888 = vld [vmem:[#allocation4 + $0x10] sm:$0xf]
        %v889 = vld [vmem:[#allocation4 + $0x14] sm:$0xf]
        %v890 = vld [vmem:[#allocation4 + $0x18] sm:$0xf]
        %v891 = vld [vmem:[#allocation4 + $0x1c] sm:$0xf]
        %v892 = vld [vmem:[#allocation4 + $0x20] sm:$0xf]
        %v893 = vld [vmem:[#allocation4 + $0x24] sm:$0xf]
        %v894 = vld [vmem:[#allocation4 + $0x28] sm:$0xf]
        %v895 = vld [vmem:[#allocation4 + $0x2c] sm:$0xf]
        %v896 = vld [vmem:[#allocation4 + $0x30] sm:$0xf]
        %v897 = vld [vmem:[#allocation4 + $0x34] sm:$0xf]
        %v898 = vld [vmem:[#allocation4 + $0x38] sm:$0xf]
        %v899 = vld [vmem:[#allocation4 + $0x3c] sm:$0xf]
        %v916 = vunpack.c.l.b16 %v884
        %v917 = vunpack.c.l.b16 %v885
        %v918 = vunpack.c.l.b16 %v886
        %v919 = vunpack.c.l.b16 %v887
        %v920 = vunpack.c.l.b16 %v888
        %v921 = vunpack.c.l.b16 %v889
        %v922 = vunpack.c.l.b16 %v890
        %v923 = vunpack.c.l.b16 %v891
        %v924 = vunpack.c.l.b16 %v892
        %v925 = vunpack.c.l.b16 %v893
        %v926 = vunpack.c.l.b16 %v894
        %v927 = vunpack.c.l.b16 %v895
        %v928 = vunpack.c.l.b16 %v896
        %v929 = vunpack.c.l.b16 %v897
        %v930 = vunpack.c.l.b16 %v898
        %v931 = vunpack.c.l.b16 %v899
        %v932 = vpack.c.b16 %v917, %v916
        %v933 = vpack.c.b16 %v919, %v918
        %v934 = vpack.c.b16 %v921, %v920
        %v935 = vpack.c.b16 %v923, %v922
        %v936 = vpack.c.b16 %v925, %v924
        %v937 = vpack.c.b16 %v927, %v926
        %v938 = vpack.c.b16 %v929, %v928
        %v939 = vpack.c.b16 %v931, %v930
        %948 = vmatpush.bf16.msra.mxu0 %v939
        %949 = vmatpush.bf16.msra.mxu0 %v938
        %950 = vmatpush.bf16.msra.mxu0 %v937
        %951 = vmatpush.bf16.msra.mxu0 %v936
        %952 = vmatpush.bf16.msra.mxu0 %v935
        %953 = vmatpush.bf16.msra.mxu0 %v934
        %954 = vmatpush.bf16.msra.mxu0 %v933
        %955 = vmatpush.bf16.msra.mxu0 %v932
        %956 = vmatmul.bf16.gmra.mxu0 %v883
        %v957 = vpop.f32.mrf.mxu0
        %v958 = vadd.f32 0.0, %v957
        %v959 = vpop.f32.mrf.mxu0
        %v960 = vadd.f32 0.0, %v959
        %961 = vdwg.mxu0
        %v962 = vld [vmem:[%s3] sm:$0x1]
        %v964 = vperm.slane %v962, 0
        %v966 = vadd.f32 %v853, %v964
        %v967 = vpack.c.bf16 %v966, %v966
        %969 = vrot.lane.b32.xlu0 %v967, 96
        %v970 = vpop.permute.xlu0 %969
        %971 = vrot.lane.b32.xlu0 %v967, 64
        %v972 = vpop.permute.xlu0 %971
        %973 = vrot.lane.b32.xlu0 %v967, 32
        %v974 = vpop.permute.xlu0 %973
        %v975 = vld [vmem:[%s4] sm:$0x1]
        %v977 = vperm.slane %v975, 0
        %v979 = vadd.f32 %v853, %v977
        %v980 = vpack.c.bf16 %v979, %v979
        %982 = vrot.lane.b32.xlu0 %v980, 96
        %v983 = vpop.permute.xlu0 %982
        %984 = vrot.lane.b32.xlu0 %v980, 64
        %v985 = vpop.permute.xlu0 %984
        %986 = vrot.lane.b32.xlu0 %v980, 32
        %v987 = vpop.permute.xlu0 %986
        %v988 = vpack.c.bf16 %v865, %v865
        %v989 = vpack.c.bf16 %v867, %v867
        %992 = vrot.lane.b32.xlu0 %v988, 96
        %v993 = vpop.permute.xlu0 %992
        %994 = vrot.lane.b32.xlu0 %v989, 96
        %v995 = vpop.permute.xlu0 %994
        %996 = vrot.lane.b32.xlu0 %v988, 64
        %v997 = vpop.permute.xlu0 %996
        %998 = vrot.lane.b32.xlu0 %v989, 64
        %v999 = vpop.permute.xlu0 %998
        %1000 = vrot.lane.b32.xlu0 %v988, 32
        %v1001 = vpop.permute.xlu0 %1000
        %1002 = vrot.lane.b32.xlu0 %v989, 32
        %v1003 = vpop.permute.xlu0 %1002
        %v1004 = vpack.c.bf16 %v879, %v879
        %v1005 = vpack.c.bf16 %v881, %v881
        %1008 = vrot.lane.b32.xlu0 %v1004, 96
        %v1009 = vpop.permute.xlu0 %1008
        %1010 = vrot.lane.b32.xlu0 %v1005, 96
        %v1011 = vpop.permute.xlu0 %1010
        %1012 = vrot.lane.b32.xlu0 %v1004, 64
        %v1013 = vpop.permute.xlu0 %1012
        %1014 = vrot.lane.b32.xlu0 %v1005, 64
        %v1015 = vpop.permute.xlu0 %1014
        %1016 = vrot.lane.b32.xlu0 %v1004, 32
        %v1017 = vpop.permute.xlu0 %1016
        %1018 = vrot.lane.b32.xlu0 %v1005, 32
        %v1019 = vpop.permute.xlu0 %1018
        %v1020 = vpack.c.bf16 %v958, %v958
        %v1021 = vpack.c.bf16 %v960, %v960
        %1024 = vrot.lane.b32.xlu0 %v1020, 96
        %v1025 = vpop.permute.xlu0 %1024
        %1026 = vrot.lane.b32.xlu0 %v1021, 96
        %v1027 = vpop.permute.xlu0 %1026
        %1028 = vrot.lane.b32.xlu0 %v1020, 64
        %v1029 = vpop.permute.xlu0 %1028
        %1030 = vrot.lane.b32.xlu0 %v1021, 64
        %v1031 = vpop.permute.xlu0 %1030
        %1032 = vrot.lane.b32.xlu0 %v1020, 32
        %v1033 = vpop.permute.xlu0 %1032
        %1034 = vrot.lane.b32.xlu0 %v1021, 32
        %v1035 = vpop.permute.xlu0 %1034
        %v1036 = vunpack.c.l.b16 %v1020
        %v1037 = vunpack.c.l.b16 %v1021
        %v1038 = vpack.c.b16 %v1037, %v1036
        %vm1039 = vcmask 261120
        %v1041 = vsel %vm1039, %v980, 0
        %v1044 = vsel %vm1039, %v1038, 0
        %1046 = vmatpush.bf16.xpose.msra.mxu0 0
        %1047 = vmatpush.bf16.xpose.msra.mxu0 0
        %1048 = vmatpush.bf16.xpose.msra.mxu0 0
        %1049 = vmatpush.bf16.xpose.msra.mxu0 0
        %1050 = vmatpush.bf16.xpose.msra.mxu0 0
        %1051 = vmatpush.bf16.xpose.msra.mxu0 0
        %1052 = vmatpush.bf16.xpose.msra.mxu0 0
        %1053 = vmatpush.bf16.xpose.msra.mxu0 %v1044
        %1054 = vmatmul.bf16.gmra.mxu0 %v1041
        %v1055 = vpop.f32.mrf.mxu0
        %v1056 = vadd.f32 0.0, %v1055
        %v1057 = vpop.f32.mrf.mxu0
        %1058 = vdwg.mxu0
        %v1059 = vunpack.c.l.b16 %v1025
        %v1060 = vunpack.c.l.b16 %v1027
        %v1061 = vpack.c.b16 %v1060, %v1059
        %v1063 = vsel %vm1039, %v983, 0
        %v1066 = vsel %vm1039, %v1061, 0
        %1068 = vmatpush.bf16.xpose.msra.mxu0 0
        %1069 = vmatpush.bf16.xpose.msra.mxu0 0
        %1070 = vmatpush.bf16.xpose.msra.mxu0 0
        %1071 = vmatpush.bf16.xpose.msra.mxu0 0
        %1072 = vmatpush.bf16.xpose.msra.mxu0 0
        %1073 = vmatpush.bf16.xpose.msra.mxu0 0
        %1074 = vmatpush.bf16.xpose.msra.mxu0 0
        %1075 = vmatpush.bf16.xpose.msra.mxu0 %v1066
        %1076 = vmatmul.bf16.gmra.mxu0 %v1063
        %v1077 = vpop.f32.mrf.mxu0
        %v1078 = vadd.f32 0.0, %v1077
        %v1079 = vpop.f32.mrf.mxu0
        %1080 = vdwg.mxu0
        %v1081 = vunpack.c.l.b16 %v1029
        %v1082 = vunpack.c.l.b16 %v1031
        %v1083 = vpack.c.b16 %v1082, %v1081
        %v1085 = vsel %vm1039, %v985, 0
        %v1088 = vsel %vm1039, %v1083, 0
        %1090 = vmatpush.bf16.xpose.msra.mxu0 0
        %1091 = vmatpush.bf16.xpose.msra.mxu0 0
        %1092 = vmatpush.bf16.xpose.msra.mxu0 0
        %1093 = vmatpush.bf16.xpose.msra.mxu0 0
        %1094 = vmatpush.bf16.xpose.msra.mxu0 0
        %1095 = vmatpush.bf16.xpose.msra.mxu0 0
        %1096 = vmatpush.bf16.xpose.msra.mxu0 0
        %1097 = vmatpush.bf16.xpose.msra.mxu0 %v1088
        %1098 = vmatmul.bf16.gmra.mxu0 %v1085
        %v1099 = vpop.f32.mrf.mxu0
        %v1100 = vadd.f32 0.0, %v1099
        %v1101 = vpop.f32.mrf.mxu0
        %1102 = vdwg.mxu0
        %v1103 = vunpack.c.l.b16 %v1033
        %v1104 = vunpack.c.l.b16 %v1035
        %v1105 = vpack.c.b16 %v1104, %v1103
        %v1107 = vsel %vm1039, %v987, 0
        %v1110 = vsel %vm1039, %v1105, 0
        %1112 = vmatpush.bf16.xpose.msra.mxu0 0
        %1113 = vmatpush.bf16.xpose.msra.mxu0 0
        %1114 = vmatpush.bf16.xpose.msra.mxu0 0
        %1115 = vmatpush.bf16.xpose.msra.mxu0 0
        %1116 = vmatpush.bf16.xpose.msra.mxu0 0
        %1117 = vmatpush.bf16.xpose.msra.mxu0 0
        %1118 = vmatpush.bf16.xpose.msra.mxu0 0
        %1119 = vmatpush.bf16.xpose.msra.mxu0 %v1110
        %1120 = vmatmul.bf16.gmra.mxu0 %v1107
        %v1121 = vpop.f32.mrf.mxu0
        %v1122 = vadd.f32 0.0, %v1121
        %v1123 = vpop.f32.mrf.mxu0
        %1124 = vdwg.mxu0
        %v1125 = vlaneseq
        %v1126 = vshrl.u32 %v1125, 7
        %v1127 = vlaneseq
        %v1128 = vand.u32 %v1127, 127
        %1133 = vrot.lane.b32.xlu0 %v1056, 121
        %v1134 = vpop.permute.xlu0 %1133
        %1135 = vrot.lane.b32.xlu0 %v1078, 121
        %v1136 = vpop.permute.xlu0 %1135
        %1137 = vrot.lane.b32.xlu0 %v1100, 121
        %v1138 = vpop.permute.xlu0 %1137
        %1139 = vrot.lane.b32.xlu0 %v1122, 121
        %v1140 = vpop.permute.xlu0 %1139
        %1145 = vrot.lane.b32.xlu0 %v1056, 9
        %v1146 = vpop.permute.xlu0 %1145
        %1147 = vrot.lane.b32.xlu0 %v1078, 9
        %v1148 = vpop.permute.xlu0 %1147
        %1149 = vrot.lane.b32.xlu0 %v1100, 9
        %v1150 = vpop.permute.xlu0 %1149
        %1151 = vrot.lane.b32.xlu0 %v1122, 9
        %v1152 = vpop.permute.xlu0 %1151
        %vm1157 = vcmask 72704
        %v1158 = vsel %vm1157, %v1134, %v1146
        %v1159 = vsel %vm1157, %v1136, %v1148
        %v1160 = vsel %vm1157, %v1138, %v1150
        %v1161 = vsel %vm1157, %v1140, %v1152
        %1166 = vrot.lane.b32.xlu0 %v1158, 113
        %v1167 = vpop.permute.xlu0 %1166
        %1168 = vrot.lane.b32.xlu0 %v1159, 113
        %v1169 = vpop.permute.xlu0 %1168
        %1170 = vrot.lane.b32.xlu0 %v1160, 113
        %v1171 = vpop.permute.xlu0 %1170
        %1172 = vrot.lane.b32.xlu0 %v1161, 113
        %v1173 = vpop.permute.xlu0 %1172
        %1178 = vrot.lane.b32.xlu0 %v1158, 1
        %v1179 = vpop.permute.xlu0 %1178
        %1180 = vrot.lane.b32.xlu0 %v1159, 1
        %v1181 = vpop.permute.xlu0 %1180
        %1182 = vrot.lane.b32.xlu0 %v1160, 1
        %v1183 = vpop.permute.xlu0 %1182
        %1184 = vrot.lane.b32.xlu0 %v1161, 1
        %v1185 = vpop.permute.xlu0 %1184
        %vm1190 = vcmask 7168
        %v1191 = vsel %vm1190, %v1167, %v1179
        %v1192 = vsel %vm1190, %v1169, %v1181
        %v1193 = vsel %vm1190, %v1171, %v1183
        %v1194 = vsel %vm1190, %v1173, %v1185
        %v1195 = vand.u32 %v1126, 1
        %vm1196 = vcmp.eq.s32.totalorder %v1195, 1
        %v1197 = vsel %vm1196, 1, 0
        %vm1198 = vcmp.eq.s32.totalorder %v1197, 1
        %v1199 = vsel %vm1198, %v1191, %v1158
        %v1200 = vsel %vm1198, %v1192, %v1159
        %v1201 = vsel %vm1198, %v1193, %v1160
        %v1202 = vsel %vm1198, %v1194, %v1161
        %1207 = vrot.lane.b32.xlu0 %v1199, 114
        %v1208 = vpop.permute.xlu0 %1207
        %1209 = vrot.lane.b32.xlu0 %v1200, 114
        %v1210 = vpop.permute.xlu0 %1209
        %1211 = vrot.lane.b32.xlu0 %v1201, 114
        %v1212 = vpop.permute.xlu0 %1211
        %1213 = vrot.lane.b32.xlu0 %v1202, 114
        %v1214 = vpop.permute.xlu0 %1213
        %1219 = vrot.lane.b32.xlu0 %v1199, 2
        %v1220 = vpop.permute.xlu0 %1219
        %1221 = vrot.lane.b32.xlu0 %v1200, 2
        %v1222 = vpop.permute.xlu0 %1221
        %1223 = vrot.lane.b32.xlu0 %v1201, 2
        %v1224 = vpop.permute.xlu0 %1223
        %1225 = vrot.lane.b32.xlu0 %v1202, 2
        %v1226 = vpop.permute.xlu0 %1225
        %vm1231 = vcmask 15360
        %v1232 = vsel %vm1231, %v1208, %v1220
        %v1233 = vsel %vm1231, %v1210, %v1222
        %v1234 = vsel %vm1231, %v1212, %v1224
        %v1235 = vsel %vm1231, %v1214, %v1226
        %v1236 = vshra.s32 %v1126, 1
        %v1237 = vand.u32 %v1236, 1
        %vm1238 = vcmp.eq.s32.totalorder %v1237, 1
        %v1239 = vsel %vm1238, 1, 0
        %vm1240 = vcmp.eq.s32.totalorder %v1239, 1
        %v1241 = vsel %vm1240, %v1232, %v1199
        %v1242 = vsel %vm1240, %v1233, %v1200
        %v1243 = vsel %vm1240, %v1234, %v1201
        %v1244 = vsel %vm1240, %v1235, %v1202
        %1249 = vrot.lane.b32.xlu0 %v1241, 116
        %v1250 = vpop.permute.xlu0 %1249
        %1251 = vrot.lane.b32.xlu0 %v1242, 116
        %v1252 = vpop.permute.xlu0 %1251
        %1253 = vrot.lane.b32.xlu0 %v1243, 116
        %v1254 = vpop.permute.xlu0 %1253
        %1255 = vrot.lane.b32.xlu0 %v1244, 116
        %v1256 = vpop.permute.xlu0 %1255
        %1261 = vrot.lane.b32.xlu0 %v1241, 4
        %v1262 = vpop.permute.xlu0 %1261
        %1263 = vrot.lane.b32.xlu0 %v1242, 4
        %v1264 = vpop.permute.xlu0 %1263
        %1265 = vrot.lane.b32.xlu0 %v1243, 4
        %v1266 = vpop.permute.xlu0 %1265
        %1267 = vrot.lane.b32.xlu0 %v1244, 4
        %v1268 = vpop.permute.xlu0 %1267
        %vm1273 = vcmask 31744
        %v1274 = vsel %vm1273, %v1250, %v1262
        %v1275 = vsel %vm1273, %v1252, %v1264
        %v1276 = vsel %vm1273, %v1254, %v1266
        %v1277 = vsel %vm1273, %v1256, %v1268
        %v1278 = vshra.s32 %v1126, 2
        %v1279 = vand.u32 %v1278, 1
        %vm1280 = vcmp.eq.s32.totalorder %v1279, 1
        %v1281 = vsel %vm1280, 1, 0
        %vm1282 = vcmp.eq.s32.totalorder %v1281, 1
        %v1283 = vsel %vm1282, %v1274, %v1241
        %v1284 = vsel %vm1282, %v1275, %v1242
        %v1285 = vsel %vm1282, %v1276, %v1243
        %v1286 = vsel %vm1282, %v1277, %v1244
        %v1287 = vadd.s32 %v1126, 8
        %vm1288 = vcmp.gt.s32.totalorder %v1128, %v1287
        %v1289 = vsel %vm1288, -1e+30, 0.0
        %v1290 = vunpack.c.l.b16 %v988
        %v1291 = vunpack.c.l.b16 %v989
        %v1292 = vpack.c.b16 %v1291, %v1290
        %v1294 = vsel %vm1039, %v967, 0
        %v1297 = vsel %vm1039, %v1292, 0
        %1299 = vmatpush.bf16.xpose.msra.mxu0 0
        %1300 = vmatpush.bf16.xpose.msra.mxu0 0
        %1301 = vmatpush.bf16.xpose.msra.mxu0 0
        %1302 = vmatpush.bf16.xpose.msra.mxu0 0
        %1303 = vmatpush.bf16.xpose.msra.mxu0 0
        %1304 = vmatpush.bf16.xpose.msra.mxu0 0
        %1305 = vmatpush.bf16.xpose.msra.mxu0 0
        %1306 = vmatpush.bf16.xpose.msra.mxu0 %v1297
        %1307 = vmatmul.bf16.gmra.mxu0 %v1294
        %v1308 = vpop.f32.mrf.mxu0
        %v1309 = vadd.f32 %v1283, %v1308
        %v1310 = vpop.f32.mrf.mxu0
        %1311 = vdwg.mxu0
        %v1312 = vunpack.c.l.b16 %v993
        %v1313 = vunpack.c.l.b16 %v995
        %v1314 = vpack.c.b16 %v1313, %v1312
        %v1316 = vsel %vm1039, %v970, 0
        %v1319 = vsel %vm1039, %v1314, 0
        %1321 = vmatpush.bf16.xpose.msra.mxu0 0
        %1322 = vmatpush.bf16.xpose.msra.mxu0 0
        %1323 = vmatpush.bf16.xpose.msra.mxu0 0
        %1324 = vmatpush.bf16.xpose.msra.mxu0 0
        %1325 = vmatpush.bf16.xpose.msra.mxu0 0
        %1326 = vmatpush.bf16.xpose.msra.mxu0 0
        %1327 = vmatpush.bf16.xpose.msra.mxu0 0
        %1328 = vmatpush.bf16.xpose.msra.mxu0 %v1319
        %1329 = vmatmul.bf16.gmra.mxu0 %v1316
        %v1330 = vpop.f32.mrf.mxu0
        %v1331 = vadd.f32 %v1284, %v1330
        %v1332 = vpop.f32.mrf.mxu0
        %1333 = vdwg.mxu0
        %v1334 = vunpack.c.l.b16 %v997
        %v1335 = vunpack.c.l.b16 %v999
        %v1336 = vpack.c.b16 %v1335, %v1334
        %v1338 = vsel %vm1039, %v972, 0
        %v1341 = vsel %vm1039, %v1336, 0
        %1343 = vmatpush.bf16.xpose.msra.mxu0 0
        %1344 = vmatpush.bf16.xpose.msra.mxu0 0
        %1345 = vmatpush.bf16.xpose.msra.mxu0 0
        %1346 = vmatpush.bf16.xpose.msra.mxu0 0
        %1347 = vmatpush.bf16.xpose.msra.mxu0 0
        %1348 = vmatpush.bf16.xpose.msra.mxu0 0
        %1349 = vmatpush.bf16.xpose.msra.mxu0 0
        %1350 = vmatpush.bf16.xpose.msra.mxu0 %v1341
        %1351 = vmatmul.bf16.gmra.mxu0 %v1338
        %v1352 = vpop.f32.mrf.mxu0
        %v1353 = vadd.f32 %v1285, %v1352
        %v1354 = vpop.f32.mrf.mxu0
        %1355 = vdwg.mxu0
        %v1356 = vunpack.c.l.b16 %v1001
        %v1357 = vunpack.c.l.b16 %v1003
        %v1358 = vpack.c.b16 %v1357, %v1356
        %v1360 = vsel %vm1039, %v974, 0
        %v1363 = vsel %vm1039, %v1358, 0
        %1365 = vmatpush.bf16.xpose.msra.mxu0 0
        %1366 = vmatpush.bf16.xpose.msra.mxu0 0
        %1367 = vmatpush.bf16.xpose.msra.mxu0 0
        %1368 = vmatpush.bf16.xpose.msra.mxu0 0
        %1369 = vmatpush.bf16.xpose.msra.mxu0 0
        %1370 = vmatpush.bf16.xpose.msra.mxu0 0
        %1371 = vmatpush.bf16.xpose.msra.mxu0 0
        %1372 = vmatpush.bf16.xpose.msra.mxu0 %v1363
        %1373 = vmatmul.bf16.gmra.mxu0 %v1360
        %v1374 = vpop.f32.mrf.mxu0
        %v1375 = vadd.f32 %v1286, %v1374
        %v1376 = vpop.f32.mrf.mxu0
        %1377 = vdwg.mxu0
        %v1378 = vmul.f32 %v1309, 0.17677669
        %v1379 = vmul.f32 %v1331, 0.17677669
        %v1380 = vmul.f32 %v1353, 0.17677669
        %v1381 = vmul.f32 %v1375, 0.17677669
        %v1382 = vadd.f32 %v1378, %v1289
        %v1383 = vadd.f32 %v1379, %v1289
        %v1384 = vadd.f32 %v1380, %v1289
        %v1385 = vadd.f32 %v1381, %v1289
        %vm1386 = vcmask 130048
        %v1387 = vsel %vm1386, %v1382, -inf
        %1388 = vmax.xlane.f32.xlu0 %v1387
        %v1389 = vpop.xlane.xlu0 %1388
        %v1390 = vsel %vm1386, %v1383, -inf
        %1391 = vmax.xlane.f32.xlu0 %v1390
        %v1392 = vpop.xlane.xlu0 %1391
        %v1393 = vsel %vm1386, %v1384, -inf
        %1394 = vmax.xlane.f32.xlu0 %v1393
        %v1395 = vpop.xlane.xlu0 %1394
        %v1396 = vsel %vm1386, %v1385, -inf
        %1397 = vmax.xlane.f32.xlu0 %v1396
        %v1398 = vpop.xlane.xlu0 %1397
        %v1399 = vsub.f32 %v1382, %v1389
        %v1400 = vsub.f32 %v1383, %v1392
        %v1401 = vsub.f32 %v1384, %v1395
        %v1402 = vsub.f32 %v1385, %v1398
        %v1403 = vmul.f32 %v1399, 1.442695
        %v1404 = vpow.pop %v1403
        %v1405 = vmul.f32 %v1400, 1.442695
        %v1406 = vpow.pop %v1405
        %v1407 = vmul.f32 %v1401, 1.442695
        %v1408 = vpow.pop %v1407
        %v1409 = vmul.f32 %v1402, 1.442695
        %v1410 = vpow.pop %v1409
        %v1411 = vsel %vm1386, %v1404, 0.0
        %1412 = vadd.xlane.f32.xlu0 %v1411
        %v1413 = vpop.xlane.xlu0 %1412
        %v1414 = vsel %vm1386, %v1406, 0.0
        %1415 = vadd.xlane.f32.xlu0 %v1414
        %v1416 = vpop.xlane.xlu0 %1415
        %v1417 = vsel %vm1386, %v1408, 0.0
        %1418 = vadd.xlane.f32.xlu0 %v1417
        %v1419 = vpop.xlane.xlu0 %1418
        %v1420 = vsel %vm1386, %v1410, 0.0
        %1421 = vadd.xlane.f32.xlu0 %v1420
        %v1422 = vpop.xlane.xlu0 %1421
        %v1423 = vrcp.pop %v1413
        %v1424 = vrcp.pop %v1416
        %v1425 = vrcp.pop %v1419
        %v1426 = vrcp.pop %v1422
        %v1427 = vmul.f32 %v1404, %v1423
        %v1428 = vmul.f32 %v1406, %v1424
        %v1429 = vmul.f32 %v1408, %v1425
        %v1430 = vmul.f32 %v1410, %v1426
        %v1431 = vpack.c.bf16 %v1427, %v1427
        %v1432 = vpack.c.bf16 %v1428, %v1428
        %v1433 = vpack.c.bf16 %v1429, %v1429
        %v1434 = vpack.c.bf16 %v1430, %v1430
        %v1435 = vunpack.c.l.b16 %v1004
        %v1436 = vunpack.c.l.b16 %v1005
        %v1437 = vpack.c.b16 %v1436, %v1435
        %v1440 = vsel %vm1386, %v1431, 0
        %1442 = vmatpush.bf16.msra.mxu0 0
        %1443 = vmatpush.bf16.msra.mxu0 0
        %1444 = vmatpush.bf16.msra.mxu0 0
        %1445 = vmatpush.bf16.msra.mxu0 0
        %1446 = vmatpush.bf16.msra.mxu0 0
        %1447 = vmatpush.bf16.msra.mxu0 0
        %1448 = vmatpush.bf16.msra.mxu0 0
        %1449 = vmatpush.bf16.msra.mxu0 %v1437
        %1450 = vmatmul.bf16.gmra.mxu0 %v1440
        %v1451 = vpop.f32.mrf.mxu0
        %v1452 = vadd.f32 0.0, %v1451
        %v1453 = vpop.f32.mrf.mxu0
        %1454 = vdwg.mxu0
        %v1455 = vunpack.c.l.b16 %v1009
        %v1456 = vunpack.c.l.b16 %v1011
        %v1457 = vpack.c.b16 %v1456, %v1455
        %v1460 = vsel %vm1386, %v1432, 0
        %1462 = vmatpush.bf16.msra.mxu0 0
        %1463 = vmatpush.bf16.msra.mxu0 0
        %1464 = vmatpush.bf16.msra.mxu0 0
        %1465 = vmatpush.bf16.msra.mxu0 0
        %1466 = vmatpush.bf16.msra.mxu0 0
        %1467 = vmatpush.bf16.msra.mxu0 0
        %1468 = vmatpush.bf16.msra.mxu0 0
        %1469 = vmatpush.bf16.msra.mxu0 %v1457
        %1470 = vmatmul.bf16.gmra.mxu0 %v1460
        %v1471 = vpop.f32.mrf.mxu0
        %v1472 = vadd.f32 0.0, %v1471
        %v1473 = vpop.f32.mrf.mxu0
        %1474 = vdwg.mxu0
        %v1475 = vunpack.c.l.b16 %v1013
        %v1476 = vunpack.c.l.b16 %v1015
        %v1477 = vpack.c.b16 %v1476, %v1475
        %v1480 = vsel %vm1386, %v1433, 0
        %1482 = vmatpush.bf16.msra.mxu0 0
        %1483 = vmatpush.bf16.msra.mxu0 0
        %1484 = vmatpush.bf16.msra.mxu0 0
        %1485 = vmatpush.bf16.msra.mxu0 0
        %1486 = vmatpush.bf16.msra.mxu0 0
        %1487 = vmatpush.bf16.msra.mxu0 0
        %1488 = vmatpush.bf16.msra.mxu0 0
        %1489 = vmatpush.bf16.msra.mxu0 %v1477
        %1490 = vmatmul.bf16.gmra.mxu0 %v1480
        %v1491 = vpop.f32.mrf.mxu0
        %v1492 = vadd.f32 0.0, %v1491
        %v1493 = vpop.f32.mrf.mxu0
        %1494 = vdwg.mxu0
        %v1495 = vunpack.c.l.b16 %v1017
        %v1496 = vunpack.c.l.b16 %v1019
        %v1497 = vpack.c.b16 %v1496, %v1495
        %v1500 = vsel %vm1386, %v1434, 0
        %1502 = vmatpush.bf16.msra.mxu0 0
        %1503 = vmatpush.bf16.msra.mxu0 0
        %1504 = vmatpush.bf16.msra.mxu0 0
        %1505 = vmatpush.bf16.msra.mxu0 0
        %1506 = vmatpush.bf16.msra.mxu0 0
        %1507 = vmatpush.bf16.msra.mxu0 0
        %1508 = vmatpush.bf16.msra.mxu0 0
        %1509 = vmatpush.bf16.msra.mxu0 %v1497
        %1510 = vmatmul.bf16.gmra.mxu0 %v1500
        %v1511 = vpop.f32.mrf.mxu0
        %v1512 = vadd.f32 0.0, %v1511
        %v1513 = vpop.f32.mrf.mxu0
        %1514 = vdwg.mxu0
        %1516 = vrot.lane.b32.xlu0 %v1472, 32
        %v1517 = vpop.permute.xlu0 %1516
        %1520 = vrot.lane.b32.xlu0 %v1492, 64
        %v1521 = vpop.permute.xlu0 %1520
        %1524 = vrot.lane.b32.xlu0 %v1512, 96
        %v1525 = vpop.permute.xlu0 %1524
        %v1527 = vsel %vm1039, %v1452, %v1517
        %vm1528 = vcmask 523264
        %v1529 = vsel %vm1528, %v1527, %v1521
        %vm1530 = vcmask 785408
        %v1531 = vsel %vm1530, %v1529, %v1525
        %v1532 = vpack.c.bf16 %v1531, %v1531
        %v1533 = vld [vmem:[#allocation6] sm:$0xf]
        %v1534 = vld [vmem:[#allocation6 + $0x4] sm:$0xf]
        %v1535 = vld [vmem:[#allocation6 + $0x8] sm:$0xf]
        %v1536 = vld [vmem:[#allocation6 + $0xc] sm:$0xf]
        %v1537 = vld [vmem:[#allocation6 + $0x10] sm:$0xf]
        %v1538 = vld [vmem:[#allocation6 + $0x14] sm:$0xf]
        %v1539 = vld [vmem:[#allocation6 + $0x18] sm:$0xf]
        %v1540 = vld [vmem:[#allocation6 + $0x1c] sm:$0xf]
        %v1541 = vld [vmem:[#allocation6 + $0x20] sm:$0xf]
        %v1542 = vld [vmem:[#allocation6 + $0x24] sm:$0xf]
        %v1543 = vld [vmem:[#allocation6 + $0x28] sm:$0xf]
        %v1544 = vld [vmem:[#allocation6 + $0x2c] sm:$0xf]
        %v1545 = vld [vmem:[#allocation6 + $0x30] sm:$0xf]
        %v1546 = vld [vmem:[#allocation6 + $0x34] sm:$0xf]
        %v1547 = vld [vmem:[#allocation6 + $0x38] sm:$0xf]
        %v1548 = vld [vmem:[#allocation6 + $0x3c] sm:$0xf]
        %v1565 = vunpack.c.l.b16 %v1533
        %v1566 = vunpack.c.l.b16 %v1534
        %v1567 = vunpack.c.l.b16 %v1535
        %v1568 = vunpack.c.l.b16 %v1536
        %v1569 = vunpack.c.l.b16 %v1537
        %v1570 = vunpack.c.l.b16 %v1538
        %v1571 = vunpack.c.l.b16 %v1539
        %v1572 = vunpack.c.l.b16 %v1540
        %v1573 = vunpack.c.l.b16 %v1541
        %v1574 = vunpack.c.l.b16 %v1542
        %v1575 = vunpack.c.l.b16 %v1543
        %v1576 = vunpack.c.l.b16 %v1544
        %v1577 = vunpack.c.l.b16 %v1545
        %v1578 = vunpack.c.l.b16 %v1546
        %v1579 = vunpack.c.l.b16 %v1547
        %v1580 = vunpack.c.l.b16 %v1548
        %v1581 = vpack.c.b16 %v1566, %v1565
        %v1582 = vpack.c.b16 %v1568, %v1567
        %v1583 = vpack.c.b16 %v1570, %v1569
        %v1584 = vpack.c.b16 %v1572, %v1571
        %v1585 = vpack.c.b16 %v1574, %v1573
        %v1586 = vpack.c.b16 %v1576, %v1575
        %v1587 = vpack.c.b16 %v1578, %v1577
        %v1588 = vpack.c.b16 %v1580, %v1579
        %1597 = vmatpush.bf16.msra.mxu0 %v1588
        %1598 = vmatpush.bf16.msra.mxu0 %v1587
        %1599 = vmatpush.bf16.msra.mxu0 %v1586
        %1600 = vmatpush.bf16.msra.mxu0 %v1585
        %1601 = vmatpush.bf16.msra.mxu0 %v1584
        %1602 = vmatpush.bf16.msra.mxu0 %v1583
        %1603 = vmatpush.bf16.msra.mxu0 %v1582
        %1604 = vmatpush.bf16.msra.mxu0 %v1581
        %1605 = vmatmul.bf16.gmra.mxu0 %v1532
        %v1606 = vpop.f32.mrf.mxu0
        %v1607 = vadd.f32 0.0, %v1606
        %v1608 = vpop.f32.mrf.mxu0
        %1609 = vdwg.mxu0
        %v1610 = vadd.f32 %v618, %v1607
        %v1611 = vld [vmem:[%s14] sm:$0x1]
        %v1612 = vld [vmem:[%s15] sm:$0x1]
        %1613 = vadd.xlane.f32.xlu0 %v1610
        %v1614 = vpop.xlane.xlu0 %1613
        %v1615 = vmul.f32 %v1614, %v634
        %v1616 = vsub.f32 %v1610, %v1615
        %v1617 = vmul.f32 %v1616, %v1616
        %1618 = vadd.xlane.f32.xlu0 %v1617
        %v1619 = vpop.xlane.xlu0 %1618
        %v1620 = vmul.f32 %v1619, %v634
        %v1621 = vadd.f32 %v1620, 0.001
        %v1622 = vrsqrt.pop %v1621
        %v1623 = vmul.f32 %v1622, %v1621
        %v1624 = vmul.f32 %v1623, %v1622
        %v1625 = vmul.f32 0.5, %v1624
        %v1626 = vsub.f32 1.5, %v1625
        %v1627 = vmul.f32 %v1622, %v1626
        %vm1628 = vweird.f32 %v1621
        %vm1629 = vweird.f32 %v1622
        %vm1630 = vmor %vm1628, %vm1629
        %v1631 = vsel %vm1630, %v1622, %v1627
        %v1632 = vmul.f32 %v1616, %v1631
        %v1634 = vperm.slane %v1611, 0
        %v1636 = vmul.f32 %v1632, %v1634
        %v1638 = vperm.slane %v1612, 0
        %v1640 = vadd.f32 %v1636, %v1638
        %v1641 = vpack.c.bf16 %v1640, %v1640
        %v1642 = vld [vmem:[#allocation7] sm:$0xff]
        %v1643 = vld [vmem:[#allocation7 + $0x8] sm:$0xff]
        %v1644 = vld [vmem:[#allocation7 + $0x10] sm:$0xff]
        %v1645 = vld [vmem:[#allocation7 + $0x18] sm:$0xff]
        %v1646 = vld [vmem:[#allocation7 + $0x20] sm:$0xff]
        %v1647 = vld [vmem:[#allocation7 + $0x28] sm:$0xff]
        %v1648 = vld [vmem:[#allocation7 + $0x30] sm:$0xff]
        %v1649 = vld [vmem:[#allocation7 + $0x38] sm:$0xff]
        %v1650 = vld [vmem:[#allocation7 + $0x40] sm:$0xff]
        %v1651 = vld [vmem:[#allocation7 + $0x48] sm:$0xff]
        %v1652 = vld [vmem:[#allocation7 + $0x50] sm:$0xff]
        %v1653 = vld [vmem:[#allocation7 + $0x58] sm:$0xff]
        %v1654 = vld [vmem:[#allocation7 + $0x60] sm:$0xff]
        %v1655 = vld [vmem:[#allocation7 + $0x68] sm:$0xff]
        %v1656 = vld [vmem:[#allocation7 + $0x70] sm:$0xff]
        %v1657 = vld [vmem:[#allocation7 + $0x78] sm:$0xff]
        %v1658 = vld [vmem:[%s11] sm:$0x3]
        %v1660 = vperm.slane %v1658, 0
        %v1661 = vperm.slane %v1658, 1
        %v1680 = vunpack.c.l.b16 %v1642
        %v1681 = vunpack.c.h.b16 %v1642
        %v1682 = vunpack.c.l.b16 %v1643
        %v1683 = vunpack.c.h.b16 %v1643
        %v1684 = vunpack.c.l.b16 %v1644
        %v1685 = vunpack.c.h.b16 %v1644
        %v1686 = vunpack.c.l.b16 %v1645
        %v1687 = vunpack.c.h.b16 %v1645
        %v1688 = vunpack.c.l.b16 %v1646
        %v1689 = vunpack.c.h.b16 %v1646
        %v1690 = vunpack.c.l.b16 %v1647
        %v1691 = vunpack.c.h.b16 %v1647
        %v1692 = vunpack.c.l.b16 %v1648
        %v1693 = vunpack.c.h.b16 %v1648
        %v1694 = vunpack.c.l.b16 %v1649
        %v1695 = vunpack.c.h.b16 %v1649
        %v1696 = vunpack.c.l.b16 %v1650
        %v1697 = vunpack.c.h.b16 %v1650
        %v1698 = vunpack.c.l.b16 %v1651
        %v1699 = vunpack.c.h.b16 %v1651
        %v1700 = vunpack.c.l.b16 %v1652
        %v1701 = vunpack.c.h.b16 %v1652
        %v1702 = vunpack.c.l.b16 %v1653
        %v1703 = vunpack.c.h.b16 %v1653
        %v1704 = vunpack.c.l.b16 %v1654
        %v1705 = vunpack.c.h.b16 %v1654
        %v1706 = vunpack.c.l.b16 %v1655
        %v1707 = vunpack.c.h.b16 %v1655
        %v1708 = vunpack.c.l.b16 %v1656
        %v1709 = vunpack.c.h.b16 %v1656
        %v1710 = vunpack.c.l.b16 %v1657
        %v1711 = vunpack.c.h.b16 %v1657
        %v1712 = vpack.c.b16 %v1682, %v1680
        %v1713 = vpack.c.b16 %v1683, %v1681
        %v1714 = vpack.c.b16 %v1686, %v1684
        %v1715 = vpack.c.b16 %v1687, %v1685
        %v1716 = vpack.c.b16 %v1690, %v1688
        %v1717 = vpack.c.b16 %v1691, %v1689
        %v1718 = vpack.c.b16 %v1694, %v1692
        %v1719 = vpack.c.b16 %v1695, %v1693
        %v1720 = vpack.c.b16 %v1698, %v1696
        %v1721 = vpack.c.b16 %v1699, %v1697
        %v1722 = vpack.c.b16 %v1702, %v1700
        %v1723 = vpack.c.b16 %v1703, %v1701
        %v1724 = vpack.c.b16 %v1706, %v1704
        %v1725 = vpack.c.b16 %v1707, %v1705
        %v1726 = vpack.c.b16 %v1710, %v1708
        %v1727 = vpack.c.b16 %v1711, %v1709
        %1744 = vmatpush.bf16.msra.mxu0 %v1726
        %1745 = vmatpush.bf16.msra.mxu0 %v1724
        %1746 = vmatpush.bf16.msra.mxu0 %v1722
        %1747 = vmatpush.bf16.msra.mxu0 %v1720
        %1748 = vmatpush.bf16.msra.mxu0 %v1718
        %1749 = vmatpush.bf16.msra.mxu0 %v1716
        %1750 = vmatpush.bf16.msra.mxu0 %v1714
        %1751 = vmatpush.bf16.msra.mxu0 %v1712
        %1752 = vmatmul.bf16.gmra.mxu0 %v1641
        %v1753 = vpop.f32.mrf.mxu0
        %v1754 = vadd.f32 %v1660, %v1753
        %v1755 = vpop.f32.mrf.mxu0
        %1756 = vdwg.mxu0
        %1757 = vmatpush.bf16.msra.mxu0 %v1727
        %1758 = vmatpush.bf16.msra.mxu0 %v1725
        %1759 = vmatpush.bf16.msra.mxu0 %v1723
        %1760 = vmatpush.bf16.msra.mxu0 %v1721
        %1761 = vmatpush.bf16.msra.mxu0 %v1719
        %1762 = vmatpush.bf16.msra.mxu0 %v1717
        %1763 = vmatpush.bf16.msra.mxu0 %v1715
        %1764 = vmatpush.bf16.msra.mxu0 %v1713
        %1765 = vmatmul.bf16.gmra.mxu0 %v1641
        %v1766 = vpop.f32.mrf.mxu0
        %v1767 = vadd.f32 %v1661, %v1766
        %v1768 = vpop.f32.mrf.mxu0
        %1769 = vdwg.mxu0
        %v1770 = vmax.f32 %v1754, 0.0
        %v1771 = vmax.f32 %v1767, 0.0
        %v1772 = vpack.c.bf16 %v1770, %v1770
        %v1773 = vpack.c.bf16 %v1771, %v1771
        %v1774 = vld [vmem:[#allocation9] sm:$0xf]
        %v1775 = vld [vmem:[#allocation9 + $0x4] sm:$0xf]
        %v1776 = vld [vmem:[#allocation9 + $0x8] sm:$0xf]
        %v1777 = vld [vmem:[#allocation9 + $0xc] sm:$0xf]
        %v1778 = vld [vmem:[#allocation9 + $0x10] sm:$0xf]
        %v1779 = vld [vmem:[#allocation9 + $0x14] sm:$0xf]
        %v1780 = vld [vmem:[#allocation9 + $0x18] sm:$0xf]
        %v1781 = vld [vmem:[#allocation9 + $0x1c] sm:$0xf]
        %v1782 = vld [vmem:[#allocation9 + $0x20] sm:$0xf]
        %v1783 = vld [vmem:[#allocation9 + $0x24] sm:$0xf]
        %v1784 = vld [vmem:[#allocation9 + $0x28] sm:$0xf]
        %v1785 = vld [vmem:[#allocation9 + $0x2c] sm:$0xf]
        %v1786 = vld [vmem:[#allocation9 + $0x30] sm:$0xf]
        %v1787 = vld [vmem:[#allocation9 + $0x34] sm:$0xf]
        %v1788 = vld [vmem:[#allocation9 + $0x38] sm:$0xf]
        %v1789 = vld [vmem:[#allocation9 + $0x3c] sm:$0xf]
        %v1790 = vld [vmem:[#allocation9 + $0x40] sm:$0xf]
        %v1791 = vld [vmem:[#allocation9 + $0x44] sm:$0xf]
        %v1792 = vld [vmem:[#allocation9 + $0x48] sm:$0xf]
        %v1793 = vld [vmem:[#allocation9 + $0x4c] sm:$0xf]
        %v1794 = vld [vmem:[#allocation9 + $0x50] sm:$0xf]
        %v1795 = vld [vmem:[#allocation9 + $0x54] sm:$0xf]
        %v1796 = vld [vmem:[#allocation9 + $0x58] sm:$0xf]
        %v1797 = vld [vmem:[#allocation9 + $0x5c] sm:$0xf]
        %v1798 = vld [vmem:[#allocation9 + $0x60] sm:$0xf]
        %v1799 = vld [vmem:[#allocation9 + $0x64] sm:$0xf]
        %v1800 = vld [vmem:[#allocation9 + $0x68] sm:$0xf]
        %v1801 = vld [vmem:[#allocation9 + $0x6c] sm:$0xf]
        %v1802 = vld [vmem:[#allocation9 + $0x70] sm:$0xf]
        %v1803 = vld [vmem:[#allocation9 + $0x74] sm:$0xf]
        %v1804 = vld [vmem:[#allocation9 + $0x78] sm:$0xf]
        %v1805 = vld [vmem:[#allocation9 + $0x7c] sm:$0xf]
        %v1806 = vld [vmem:[%s13] sm:$0x1]
        %v1808 = vperm.slane %v1806, 0
        %v1842 = vunpack.c.l.b16 %v1774
        %v1843 = vunpack.c.l.b16 %v1775
        %v1844 = vunpack.c.l.b16 %v1776
        %v1845 = vunpack.c.l.b16 %v1777
        %v1846 = vunpack.c.l.b16 %v1778
        %v1847 = vunpack.c.l.b16 %v1779
        %v1848 = vunpack.c.l.b16 %v1780
        %v1849 = vunpack.c.l.b16 %v1781
        %v1850 = vunpack.c.l.b16 %v1782
        %v1851 = vunpack.c.l.b16 %v1783
        %v1852 = vunpack.c.l.b16 %v1784
        %v1853 = vunpack.c.l.b16 %v1785
        %v1854 = vunpack.c.l.b16 %v1786
        %v1855 = vunpack.c.l.b16 %v1787
        %v1856 = vunpack.c.l.b16 %v1788
        %v1857 = vunpack.c.l.b16 %v1789
        %v1858 = vunpack.c.l.b16 %v1790
        %v1859 = vunpack.c.l.b16 %v1791
        %v1860 = vunpack.c.l.b16 %v1792
        %v1861 = vunpack.c.l.b16 %v1793
        %v1862 = vunpack.c.l.b16 %v1794
        %v1863 = vunpack.c.l.b16 %v1795
        %v1864 = vunpack.c.l.b16 %v1796
        %v1865 = vunpack.c.l.b16 %v1797
        %v1866 = vunpack.c.l.b16 %v1798
        %v1867 = vunpack.c.l.b16 %v1799
        %v1868 = vunpack.c.l.b16 %v1800
        %v1869 = vunpack.c.l.b16 %v1801
        %v1870 = vunpack.c.l.b16 %v1802
        %v1871 = vunpack.c.l.b16 %v1803
        %v1872 = vunpack.c.l.b16 %v1804
        %v1873 = vunpack.c.l.b16 %v1805
        %v1874 = vpack.c.b16 %v1843, %v1842
        %v1875 = vpack.c.b16 %v1845, %v1844
        %v1876 = vpack.c.b16 %v1847, %v1846
        %v1877 = vpack.c.b16 %v1849, %v1848
        %v1878 = vpack.c.b16 %v1851, %v1850
        %v1879 = vpack.c.b16 %v1853, %v1852
        %v1880 = vpack.c.b16 %v1855, %v1854
        %v1881 = vpack.c.b16 %v1857, %v1856
        %v1882 = vpack.c.b16 %v1859, %v1858
        %v1883 = vpack.c.b16 %v1861, %v1860
        %v1884 = vpack.c.b16 %v1863, %v1862
        %v1885 = vpack.c.b16 %v1865, %v1864
        %v1886 = vpack.c.b16 %v1867, %v1866
        %v1887 = vpack.c.b16 %v1869, %v1868
        %v1888 = vpack.c.b16 %v1871, %v1870
        %v1889 = vpack.c.b16 %v1873, %v1872
        %1906 = vmatpush.bf16.msra.mxu0 %v1881
        %1907 = vmatpush.bf16.msra.mxu0 %v1880
        %1908 = vmatpush.bf16.msra.mxu0 %v1879
        %1909 = vmatpush.bf16.msra.mxu0 %v1878
        %1910 = vmatpush.bf16.msra.mxu0 %v1877
        %1911 = vmatpush.bf16.msra.mxu0 %v1876
        %1912 = vmatpush.bf16.msra.mxu0 %v1875
        %1913 = vmatpush.bf16.msra.mxu0 %v1874
        %1914 = vmatmul.bf16.gmra.mxu0 %v1772
        %v1915 = vpop.f32.mrf.mxu0
        %v1916 = vadd.f32 %v1808, %v1915
        %v1917 = vpop.f32.mrf.mxu0
        %1918 = vdwg.mxu0
        %1919 = vmatpush.bf16.msra.mxu0 %v1889
        %1920 = vmatpush.bf16.msra.mxu0 %v1888
        %1921 = vmatpush.bf16.msra.mxu0 %v1887
        %1922 = vmatpush.bf16.msra.mxu0 %v1886
        %1923 = vmatpush.bf16.msra.mxu0 %v1885
        %1924 = vmatpush.bf16.msra.mxu0 %v1884
        %1925 = vmatpush.bf16.msra.mxu0 %v1883
        %1926 = vmatpush.bf16.msra.mxu0 %v1882
        %1927 = vmatmul.bf16.gmra.mxu0 %v1773
        %v1928 = vpop.f32.mrf.mxu0
        %v1929 = vadd.f32 %v1916, %v1928
        %v1930 = vpop.f32.mrf.mxu0
        %1931 = vdwg.mxu0
        %v1932 = vadd.f32 %v1610, %v1929
        %1933 = vst [vmem:[%s616] sm:$0xff] %v1932
        %p1934 = scmp.lt.s32.totalorder %s30, 1
        %s1935 = scalar_select %p1934, %s30, 1
        %s1936 = smul.addr %s1935, 8
        %s1937 = scalar_lea.vmem %s16, %s1936
        // Predicated region
        $region105: #{model_forward.4} parent=83 // pred_check
          %p1938 = pneg %p394
        $region106: #{model_forward.4} parent=83 // pred_check_branch
          %1940 = sbr.rel (%p1938) target = $region108
        $region107: #{model_forward.4} parent=83 // pred_region
          _
        $region108: #{model_forward.4} parent=83 // pred_fallthru
          _
      $region84: #{model_forward.4} parent=5 // pred_fallthru
        _
      %p1941 = scmp.le.s32.totalorder 2, %s25
      // Predicated region
      $region109: #{model_forward.4} parent=5 // pred_check
        %p1942 = pneg %p1941
      $region110: #{model_forward.4} parent=5 // pred_check_branch
        %1944 = sbr.rel (%p1942) target = $region112
      $region111: #{model_forward.4} parent=5 // pred_region
        %s1945 = ssub.s32 %s25, 2
        // Predicated region
        $region113: #{model_forward.4} parent=111 // pred_check
          %p1946 = pneg %p400
        $region114: #{model_forward.4} parent=111 // pred_check_branch
          %1948 = sbr.rel (%p1946) target = $region116
        $region115: #{model_forward.4} parent=111 // pred_region
          %p1949 = scmp.lt.s32.totalorder %s31, 1
          %s1950 = scalar_select %p1949, %s31, 1
          %s1951 = smul.addr %s1950, 8
          %s1952 = scalar_lea.vmem %s16, %s1951
        $region116: #{model_forward.4} parent=111 // pred_fallthru
          _
      $region112: #{model_forward.4} parent=5 // pred_fallthru
        _
    $region6: #{model_forward.4} parent=1 // loop_footer
      %s29 = sadd.s32 1, %s25
    $region7: #{model_forward.4} parent=1 // loop_footer_branch
      %24 = sbr.rel target = $region3
    $region8: #{model_forward.4} parent=1 // loop_exit
      _
    %1953 = vsyncpa [#allocation3], 1
    %s1954 = scalar_lea.sflag [#allocation3], 1
    %1955 = vsyncpa %s1954, 1
    %1956 = vsyncpa [#allocation5], 1
    %1957 = vsyncpa [#allocation8], 1

// kernel: model_forward.3
$region0: #{model_forward.3}
  #allocation0 [shape = 'u32[]', space=smem, size = 0x4, offset = 0x4, fixed_abs, tag = 'smem constant byte address 0x4 - core index']
  #allocation1 [shape = 'u32[72,128]{1,0:T(1,128)}', space=vmem, size = 0x9000, scoped, tag = 'internal scratch']
  %s0 = inlined_call_operand.vmem [shape: f32[2,8,128], index: 0, kind: input, shape index: {}]
  %s1 = inlined_call_operand.vmem [shape: f32[2,8,128], index: 1, kind: input, shape index: {}]
  %s2 = inlined_call_operand.vmem [shape: f32[16,128], index: 2, kind: input, shape index: {}]
  %s3 = inlined_call_operand.vmem [shape: f32[1,128], index: 3, kind: input, shape index: {}]
  %s4 = inlined_call_operand.vmem [shape: f32[1,128], index: 4, kind: input, shape index: {}]
  %s5 = inlined_call_operand.vmem [shape: bf16[128,384], index: 5, kind: input, shape index: {}]
  %s6 = inlined_call_operand.vmem [shape: bf16[128,128], index: 6, kind: input, shape index: {}]
  %s7 = inlined_call_operand.hbm [shape: bf16[128,128], index: 7, kind: input, shape index: {}]
  %s8 = inlined_call_operand.vmem [shape: f32[1,128], index: 8, kind: input, shape index: {}]
  %s9 = inlined_call_operand.vmem [shape: f32[1,128], index: 9, kind: input, shape index: {}]
  %s10 = inlined_call_operand.hbm [shape: bf16[128,256], index: 10, kind: input, shape index: {}]
  %s11 = inlined_call_operand.vmem [shape: f32[1,256], index: 11, kind: input, shape index: {}]
  %s12 = inlined_call_operand.hbm [shape: bf16[256,128], index: 12, kind: input, shape index: {}]
  %s13 = inlined_call_operand.vmem [shape: f32[1,128], index: 13, kind: input, shape index: {}]
  %s14 = inlined_call_operand.vmem [shape: f32[1,128], index: 14, kind: input, shape index: {}]
  %s15 = inlined_call_operand.vmem [shape: f32[1,128], index: 15, kind: input, shape index: {}]
  %s16 = inlined_call_operand.vmem [shape: f32[2,8,128], index: 16, kind: output, shape index: {}]
  %s17 = sld [smem:[#allocation0]]
  $region109: #{model_forward.3} parent=0
    _
  %s19 = ssub.s32 1, %s17
  %s20 = scalar_select 0, %s19, %s17
  $region1: #{model_forward.3} parent=0
    #allocation2 [shape = 'u8[32768]{0}', space=vmem, size = 0x8000, scoped, tag = 'input window, operand 7, single buffered']
    #allocation3 [shape = 's32[2]{0}', space=sflag, size = 0x8, scoped, tag = 'scoped memory for model_forward.3']
    #allocation4 [shape = 'u8[65536]{0}', space=vmem, size = 0x10000, scoped, tag = 'input window, operand 10, single buffered']
    #allocation5 [shape = 's32[1]{0}', space=sflag, size = 0x4, scoped, tag = 'scoped memory for model_forward.3']
    #allocation6 [shape = 'u8[65536]{0}', space=vmem, size = 0x10000, scoped, tag = 'input window, operand 12, single buffered']
    %21 = vsyncpa [#allocation3], 0
    %22 = vsyncpa [#allocation5], 0
    loop: start=0, step=1, limit=4
    $region2: #{model_forward.3} parent=1 // loop_pre_header
      _
    $region3: #{model_forward.3} parent=1 // loop_header
      %s24 = sphi 0, %s28
      %p25 = scmp.ge.s32.totalorder %s24, 4
      %s34 = sphi 0, %s36
      %s37 = sphi 0, %s34
      %s38 = sphi 0, %s37
      %s54 = sphi 0, %s38
      %s60 = sphi 0, %s62
      %s63 = sphi 0, %s60
      %s64 = sphi 0, %s63
      %s80 = sphi 0, %s64
      %s84 = sphi 0, %s84
      %s86 = sphi 0, %s84
      %s87 = sphi 0, %s86
      %s101 = sphi 0, %s87
      %s105 = sphi 0, %s105
      %s107 = sphi 0, %s105
      %s108 = sphi 0, %s107
      %s122 = sphi 0, %s108
      %s126 = sphi 0, %s126
      %s128 = sphi 0, %s126
      %s129 = sphi 0, %s128
      %s143 = sphi 0, %s129
      %s147 = sphi 0, %s147
      %s149 = sphi 0, %s147
      %s150 = sphi 0, %s149
      %s164 = sphi 0, %s150
      %s168 = sphi 0, %s168
      %s170 = sphi 0, %s168
      %s171 = sphi 0, %s170
      %s185 = sphi 0, %s171
      %s189 = sphi 0, %s189
      %s191 = sphi 0, %s189
      %s192 = sphi 0, %s191
      %s206 = sphi 0, %s192
      %s210 = sphi 0, %s210
      %s212 = sphi 0, %s210
      %s213 = sphi 0, %s212
      %s227 = sphi 0, %s213
      %s231 = sphi 0, %s231
      %s233 = sphi 0, %s231
      %s234 = sphi 0, %s233
      %s248 = sphi 0, %s234
      %s252 = sphi 0, %s252
      %s254 = sphi 0, %s252
      %s255 = sphi 0, %s254
      %s269 = sphi 0, %s255
      %s273 = sphi 0, %s273
      %s275 = sphi 0, %s273
      %s276 = sphi 0, %s275
      %s290 = sphi 0, %s276
      %s294 = sphi 0, %s294
      %s296 = sphi 0, %s294
      %s297 = sphi 0, %s296
      %s311 = sphi 0, %s297
      %s315 = sphi 0, %s315
      %s317 = sphi 0, %s315
      %s318 = sphi 0, %s317
      %s332 = sphi 0, %s318
      %s336 = sphi 0, %s336
      %s338 = sphi 0, %s336
      %s339 = sphi 0, %s338
      %s353 = sphi 0, %s339
      %s357 = sphi 0, %s357
      %s359 = sphi 0, %s357
      %s360 = sphi 0, %s359
      %s374 = sphi 0, %s360
      %s380 = sphi 0, %s382
      %s383 = sphi 0, %s380
      %s384 = sphi 0, %s383
      %s400 = sphi 0, %s384
    $region4: #{model_forward.3} parent=1 // loop_header_branch
      %27 = sbr.rel (%p25) target = $region8
    $region5: #{model_forward.3} parent=1 // loop_body
      %s29 = ssub.s32 %s24, 1
      %s30 = ssub.s32 %s24, 2
      %s31 = sadd.s32 %s24, 1
      %s32 = ssub.s32 %s24, %s31
      %p33 = scmp.eq.s32.totalorder %s32, 0
      %s35 = sadd.s32 %s34, 1
      %s36 = scalar_select %p33, %s34, %s35
      %p39 = pneg %p33
      %p40 = scmp.eq.s32.totalorder %s24, 1
      %p41 = por %p39, %p40
      %p42 = scmp.ne.s32.totalorder %s34, %s37
      %p43 = scmp.eq.s32.totalorder %s24, 0
      %p44 = por %p42, %p43
      %p45 = scmp.ne.s32.totalorder %s34, %s37
      %p46 = scmp.eq.s32.totalorder %s29, 1
      %p47 = por %p45, %p46
      %p48 = scmp.ne.s32.totalorder %s37, %s38
      %p49 = scmp.eq.s32.totalorder %s29, 0
      %p50 = por %p48, %p49
      %p51 = scmp.ne.s32.totalorder %s37, %s38
      %p52 = scmp.eq.s32.totalorder %s30, 1
      %p53 = por %p51, %p52
      %p55 = scmp.ne.s32.totalorder %s38, %s54
      %p56 = scmp.eq.s32.totalorder %s30, 0
      %p57 = por %p55, %p56
      %s58 = ssub.s32 %s24, %s31
      %p59 = scmp.eq.s32.totalorder %s58, 0
      %s61 = sadd.s32 %s60, 1
      %s62 = scalar_select %p59, %s60, %s61
      %p65 = pneg %p59
      %p66 = scmp.eq.s32.totalorder %s24, 1
      %p67 = por %p65, %p66
      %p68 = scmp.ne.s32.totalorder %s60, %s63
      %p69 = scmp.eq.s32.totalorder %s24, 0
      %p70 = por %p68, %p69
      %p71 = scmp.ne.s32.totalorder %s60, %s63
      %p72 = scmp.eq.s32.totalorder %s29, 1
      %p73 = por %p71, %p72
      %p74 = scmp.ne.s32.totalorder %s63, %s64
      %p75 = scmp.eq.s32.totalorder %s29, 0
      %p76 = por %p74, %p75
      %p77 = scmp.ne.s32.totalorder %s63, %s64
      %p78 = scmp.eq.s32.totalorder %s30, 1
      %p79 = por %p77, %p78
      %p81 = scmp.ne.s32.totalorder %s64, %s80
      %p82 = scmp.eq.s32.totalorder %s30, 0
      %p83 = por %p81, %p82
      %s85 = sadd.s32 %s84, 1
      %p88 = scmp.eq.s32.totalorder %s24, 1
      %p89 = scmp.ne.s32.totalorder %s84, %s86
      %p90 = scmp.eq.s32.totalorder %s24, 0
      %p91 = por %p89, %p90
      %p92 = scmp.ne.s32.totalorder %s84, %s86
      %p93 = scmp.eq.s32.totalorder %s29, 1
      %p94 = por %p92, %p93
      %p95 = scmp.ne.s32.totalorder %s86, %s87
      %p96 = scmp.eq.s32.totalorder %s29, 0
      %p97 = por %p95, %p96
      %p98 = scmp.ne.s32.totalorder %s86, %s87
      %p99 = scmp.eq.s32.totalorder %s30, 1
      %p100 = por %p98, %p99
      %p102 = scmp.ne.s32.totalorder %s87, %s101
      %p103 = scmp.eq.s32.totalorder %s30, 0
      %p104 = por %p102, %p103
      %s106 = sadd.s32 %s105, 1
      %p109 = scmp.eq.s32.totalorder %s24, 1
      %p110 = scmp.ne.s32.totalorder %s105, %s107
      %p111 = scmp.eq.s32.totalorder %s24, 0
      %p112 = por %p110, %p111
      %p113 = scmp.ne.s32.totalorder %s105, %s107
      %p114 = scmp.eq.s32.totalorder %s29, 1
      %p115 = por %p113, %p114
      %p116 = scmp.ne.s32.totalorder %s107, %s108
      %p117 = scmp.eq.s32.totalorder %s29, 0
      %p118 = por %p116, %p117
      %p119 = scmp.ne.s32.totalorder %s107, %s108
      %p120 = scmp.eq.s32.totalorder %s30, 1
      %p121 = por %p119, %p120
      %p123 = scmp.ne.s32.totalorder %s108, %s122
      %p124 = scmp.eq.s32.totalorder %s30, 0
      %p125 = por %p123, %p124
      %s127 = sadd.s32 %s126, 1
      %p130 = scmp.eq.s32.totalorder %s24, 1
      %p131 = scmp.ne.s32.totalorder %s126, %s128
      %p132 = scmp.eq.s32.totalorder %s24, 0
      %p133 = por %p131, %p132
      %p134 = scmp.ne.s32.totalorder %s126, %s128
      %p135 = scmp.eq.s32.totalorder %s29, 1
      %p136 = por %p134, %p135
      %p137 = scmp.ne.s32.totalorder %s128, %s129
      %p138 = scmp.eq.s32.totalorder %s29, 0
      %p139 = por %p137, %p138
      %p140 = scmp.ne.s32.totalorder %s128, %s129
      %p141 = scmp.eq.s32.totalorder %s30, 1
      %p142 = por %p140, %p141
      %p144 = scmp.ne.s32.totalorder %s129, %s143
      %p145 = scmp.eq.s32.totalorder %s30, 0
      %p146 = por %p144, %p145
      %s148 = sadd.s32 %s147, 1
      %p151 = scmp.eq.s32.totalorder %s24, 1
      %p152 = scmp.ne.s32.totalorder %s147, %s149
      %p153 = scmp.eq.s32.totalorder %s24, 0
      %p154 = por %p152, %p153
      %p155 = scmp.ne.s32.totalorder %s147, %s149
      %p156 = scmp.eq.s32.totalorder %s29, 1
      %p157 = por %p155, %p156
      %p158 = scmp.ne.s32.totalorder %s149, %s150
      %p159 = scmp.eq.s32.totalorder %s29, 0
      %p160 = por %p158, %p159
      %p161 = scmp.ne.s32.totalorder %s149, %s150
      %p162 = scmp.eq.s32.totalorder %s30, 1
      %p163 = por %p161, %p162
      %p165 = scmp.ne.s32.totalorder %s150, %s164
      %p166 = scmp.eq.s32.totalorder %s30, 0
      %p167 = por %p165, %p166
      %s169 = sadd.s32 %s168, 1
      %p172 = scmp.eq.s32.totalorder %s24, 1
      %p173 = scmp.ne.s32.totalorder %s168, %s170
      %p174 = scmp.eq.s32.totalorder %s24, 0
      %p175 = por %p173, %p174
      %p176 = scmp.ne.s32.totalorder %s168, %s170
      %p177 = scmp.eq.s32.totalorder %s29, 1
      %p178 = por %p176, %p177
      %p179 = scmp.ne.s32.totalorder %s170, %s171
      %p180 = scmp.eq.s32.totalorder %s29, 0
      %p181 = por %p179, %p180
      %p182 = scmp.ne.s32.totalorder %s170, %s171
      %p183 = scmp.eq.s32.totalorder %s30, 1
      %p184 = por %p182, %p183
      %p186 = scmp.ne.s32.totalorder %s171, %s185
      %p187 = scmp.eq.s32.totalorder %s30, 0
      %p188 = por %p186, %p187
      %s190 = sadd.s32 %s189, 1
      %p193 = scmp.eq.s32.totalorder %s24, 1
      %p194 = scmp.ne.s32.totalorder %s189, %s191
      %p195 = scmp.eq.s32.totalorder %s24, 0
      %p196 = por %p194, %p195
      %p197 = scmp.ne.s32.totalorder %s189, %s191
      %p198 = scmp.eq.s32.totalorder %s29, 1
      %p199 = por %p197, %p198
      %p200 = scmp.ne.s32.totalorder %s191, %s192
      %p201 = scmp.eq.s32.totalorder %s29, 0
      %p202 = por %p200, %p201
      %p203 = scmp.ne.s32.totalorder %s191, %s192
      %p204 = scmp.eq.s32.totalorder %s30, 1
      %p205 = por %p203, %p204
      %p207 = scmp.ne.s32.totalorder %s192, %s206
      %p208 = scmp.eq.s32.totalorder %s30, 0
      %p209 = por %p207, %p208
      %s211 = sadd.s32 %s210, 1
      %p214 = scmp.eq.s32.totalorder %s24, 1
      %p215 = scmp.ne.s32.totalorder %s210, %s212
      %p216 = scmp.eq.s32.totalorder %s24, 0
      %p217 = por %p215, %p216
      %p218 = scmp.ne.s32.totalorder %s210, %s212
      %p219 = scmp.eq.s32.totalorder %s29, 1
      %p220 = por %p218, %p219
      %p221 = scmp.ne.s32.totalorder %s212, %s213
      %p222 = scmp.eq.s32.totalorder %s29, 0
      %p223 = por %p221, %p222
      %p224 = scmp.ne.s32.totalorder %s212, %s213
      %p225 = scmp.eq.s32.totalorder %s30, 1
      %p226 = por %p224, %p225
      %p228 = scmp.ne.s32.totalorder %s213, %s227
      %p229 = scmp.eq.s32.totalorder %s30, 0
      %p230 = por %p228, %p229
      %s232 = sadd.s32 %s231, 1
      %p235 = scmp.eq.s32.totalorder %s24, 1
      %p236 = scmp.ne.s32.totalorder %s231, %s233
      %p237 = scmp.eq.s32.totalorder %s24, 0
      %p238 = por %p236, %p237
      %p239 = scmp.ne.s32.totalorder %s231, %s233
      %p240 = scmp.eq.s32.totalorder %s29, 1
      %p241 = por %p239, %p240
      %p242 = scmp.ne.s32.totalorder %s233, %s234
      %p243 = scmp.eq.s32.totalorder %s29, 0
      %p244 = por %p242, %p243
      %p245 = scmp.ne.s32.totalorder %s233, %s234
      %p246 = scmp.eq.s32.totalorder %s30, 1
      %p247 = por %p245, %p246
      %p249 = scmp.ne.s32.totalorder %s234, %s248
      %p250 = scmp.eq.s32.totalorder %s30, 0
      %p251 = por %p249, %p250
      %s253 = sadd.s32 %s252, 1
      %p256 = scmp.eq.s32.totalorder %s24, 1
      %p257 = scmp.ne.s32.totalorder %s252, %s254
      %p258 = scmp.eq.s32.totalorder %s24, 0
      %p259 = por %p257, %p258
      %p260 = scmp.ne.s32.totalorder %s252, %s254
      %p261 = scmp.eq.s32.totalorder %s29, 1
      %p262 = por %p260, %p261
      %p263 = scmp.ne.s32.totalorder %s254, %s255
      %p264 = scmp.eq.s32.totalorder %s29, 0
      %p265 = por %p263, %p264
      %p266 = scmp.ne.s32.totalorder %s254, %s255
      %p267 = scmp.eq.s32.totalorder %s30, 1
      %p268 = por %p266, %p267
      %p270 = scmp.ne.s32.totalorder %s255, %s269
      %p271 = scmp.eq.s32.totalorder %s30, 0
      %p272 = por %p270, %p271
      %s274 = sadd.s32 %s273, 1
      %p277 = scmp.eq.s32.totalorder %s24, 1
      %p278 = scmp.ne.s32.totalorder %s273, %s275
      %p279 = scmp.eq.s32.totalorder %s24, 0
      %p280 = por %p278, %p279
      %p281 = scmp.ne.s32.totalorder %s273, %s275
      %p282 = scmp.eq.s32.totalorder %s29, 1
      %p283 = por %p281, %p282
      %p284 = scmp.ne.s32.totalorder %s275, %s276
      %p285 = scmp.eq.s32.totalorder %s29, 0
      %p286 = por %p284, %p285
      %p287 = scmp.ne.s32.totalorder %s275, %s276
      %p288 = scmp.eq.s32.totalorder %s30, 1
      %p289 = por %p287, %p288
      %p291 = scmp.ne.s32.totalorder %s276, %s290
      %p292 = scmp.eq.s32.totalorder %s30, 0
      %p293 = por %p291, %p292
      %s295 = sadd.s32 %s294, 1
      %p298 = scmp.eq.s32.totalorder %s24, 1
      %p299 = scmp.ne.s32.totalorder %s294, %s296
      %p300 = scmp.eq.s32.totalorder %s24, 0
      %p301 = por %p299, %p300
      %p302 = scmp.ne.s32.totalorder %s294, %s296
      %p303 = scmp.eq.s32.totalorder %s29, 1
      %p304 = por %p302, %p303
      %p305 = scmp.ne.s32.totalorder %s296, %s297
      %p306 = scmp.eq.s32.totalorder %s29, 0
      %p307 = por %p305, %p306
      %p308 = scmp.ne.s32.totalorder %s296, %s297
      %p309 = scmp.eq.s32.totalorder %s30, 1
      %p310 = por %p308, %p309
      %p312 = scmp.ne.s32.totalorder %s297, %s311
      %p313 = scmp.eq.s32.totalorder %s30, 0
      %p314 = por %p312, %p313
      %s316 = sadd.s32 %s315, 1
      %p319 = scmp.eq.s32.totalorder %s24, 1
      %p320 = scmp.ne.s32.totalorder %s315, %s317
      %p321 = scmp.eq.s32.totalorder %s24, 0
      %p322 = por %p320, %p321
      %p323 = scmp.ne.s32.totalorder %s315, %s317
      %p324 = scmp.eq.s32.totalorder %s29, 1
      %p325 = por %p323, %p324
      %p326 = scmp.ne.s32.totalorder %s317, %s318
      %p327 = scmp.eq.s32.totalorder %s29, 0
      %p328 = por %p326, %p327
      %p329 = scmp.ne.s32.totalorder %s317, %s318
      %p330 = scmp.eq.s32.totalorder %s30, 1
      %p331 = por %p329, %p330
      %p333 = scmp.ne.s32.totalorder %s318, %s332
      %p334 = scmp.eq.s32.totalorder %s30, 0
      %p335 = por %p333, %p334
      %s337 = sadd.s32 %s336, 1
      %p340 = scmp.eq.s32.totalorder %s24, 1
      %p341 = scmp.ne.s32.totalorder %s336, %s338
      %p342 = scmp.eq.s32.totalorder %s24, 0
      %p343 = por %p341, %p342
      %p344 = scmp.ne.s32.totalorder %s336, %s338
      %p345 = scmp.eq.s32.totalorder %s29, 1
      %p346 = por %p344, %p345
      %p347 = scmp.ne.s32.totalorder %s338, %s339
      %p348 = scmp.eq.s32.totalorder %s29, 0
      %p349 = por %p347, %p348
      %p350 = scmp.ne.s32.totalorder %s338, %s339
      %p351 = scmp.eq.s32.totalorder %s30, 1
      %p352 = por %p350, %p351
      %p354 = scmp.ne.s32.totalorder %s339, %s353
      %p355 = scmp.eq.s32.totalorder %s30, 0
      %p356 = por %p354, %p355
      %s358 = sadd.s32 %s357, 1
      %p361 = scmp.eq.s32.totalorder %s24, 1
      %p362 = scmp.ne.s32.totalorder %s357, %s359
      %p363 = scmp.eq.s32.totalorder %s24, 0
      %p364 = por %p362, %p363
      %p365 = scmp.ne.s32.totalorder %s357, %s359
      %p366 = scmp.eq.s32.totalorder %s29, 1
      %p367 = por %p365, %p366
      %p368 = scmp.ne.s32.totalorder %s359, %s360
      %p369 = scmp.eq.s32.totalorder %s29, 0
      %p370 = por %p368, %p369
      %p371 = scmp.ne.s32.totalorder %s359, %s360
      %p372 = scmp.eq.s32.totalorder %s30, 1
      %p373 = por %p371, %p372
      %p375 = scmp.ne.s32.totalorder %s360, %s374
      %p376 = scmp.eq.s32.totalorder %s30, 0
      %p377 = por %p375, %p376
      %s378 = ssub.s32 %s24, %s31
      %p379 = scmp.eq.s32.totalorder %s378, 0
      %s381 = sadd.s32 %s380, 1
      %s382 = scalar_select %p379, %s380, %s381
      %p385 = pneg %p379
      %p386 = scmp.eq.s32.totalorder %s24, 1
      %p387 = por %p385, %p386
      %p388 = scmp.ne.s32.totalorder %s380, %s383
      %p389 = scmp.eq.s32.totalorder %s24, 0
      %p390 = por %p388, %p389
      %p391 = scmp.ne.s32.totalorder %s380, %s383
      %p392 = scmp.eq.s32.totalorder %s29, 1
      %p393 = por %p391, %p392
      %p394 = scmp.ne.s32.totalorder %s383, %s384
      %p395 = scmp.eq.s32.totalorder %s29, 0
      %p396 = por %p394, %p395
      %p397 = scmp.ne.s32.totalorder %s383, %s384
      %p398 = scmp.eq.s32.totalorder %s30, 1
      %p399 = por %p397, %p398
      %p401 = scmp.ne.s32.totalorder %s384, %s400
      %p402 = scmp.eq.s32.totalorder %s30, 0
      %p403 = por %p401, %p402
      %p404 = scmp.le.s32.totalorder 1, %s24
      %p405 = scmp.lt.s32.totalorder %s24, 3
      %p406 = pnand %p404, %p405
      %p407 = pneg %p406
      // Predicated region
      $region9: #{model_forward.3} parent=5 // pred_check
        _
      $region10: #{model_forward.3} parent=5 // pred_check_branch
        %409 = sbr.rel (%p406) target = $region12
      $region11: #{model_forward.3} parent=5 // pred_region
        %s410 = ssub.s32 %s24, 1
        // Predicated region
        $region13: #{model_forward.3} parent=11 // pred_check
          %p411 = pneg %p97
        $region14: #{model_forward.3} parent=11 // pred_check_branch
          %413 = sbr.rel (%p411) target = $region16
        $region15: #{model_forward.3} parent=11 // pred_region
          _
        $region16: #{model_forward.3} parent=11 // pred_fallthru
          _
        // Predicated region
        $region17: #{model_forward.3} parent=11 // pred_check
          %p414 = pneg %p118
        $region18: #{model_forward.3} parent=11 // pred_check_branch
          %416 = sbr.rel (%p414) target = $region20
        $region19: #{model_forward.3} parent=11 // pred_region
          _
        $region20: #{model_forward.3} parent=11 // pred_fallthru
          _
        // Predicated region
        $region21: #{model_forward.3} parent=11 // pred_check
          %p417 = pneg %p139
        $region22: #{model_forward.3} parent=11 // pred_check_branch
          %419 = sbr.rel (%p417) target = $region24
        $region23: #{model_forward.3} parent=11 // pred_region
          _
        $region24: #{model_forward.3} parent=11 // pred_fallthru
          _
        // Predicated region
        $region25: #{model_forward.3} parent=11 // pred_check
          %p420 = pneg %p160
        $region26: #{model_forward.3} parent=11 // pred_check_branch
          %422 = sbr.rel (%p420) target = $region28
        $region27: #{model_forward.3} parent=11 // pred_region
          _
        $region28: #{model_forward.3} parent=11 // pred_fallthru
          _
        // Predicated region
        $region29: #{model_forward.3} parent=11 // pred_check
          %p423 = pneg %p181
        $region30: #{model_forward.3} parent=11 // pred_check_branch
          %425 = sbr.rel (%p423) target = $region32
        $region31: #{model_forward.3} parent=11 // pred_region
          _
        $region32: #{model_forward.3} parent=11 // pred_fallthru
          _
        // Predicated region
        $region33: #{model_forward.3} parent=11 // pred_check
          %p426 = pneg %p202
        $region34: #{model_forward.3} parent=11 // pred_check_branch
          %428 = sbr.rel (%p426) target = $region36
        $region35: #{model_forward.3} parent=11 // pred_region
          %430 = vsyncadd [#allocation3], 0
          %s431 = sshll.u32 %s7, 4
          %s432 = int_to_ptr.hbm [resolvable:$true] %s431
          %s433 = sshll.u32 [#allocation2], 4
          %s434 = int_to_ptr.vmem [resolvable:$true] %s433
          %439 = dma.hbm_to_vmem [thread:$0]  %s432, 1024, %s434, [#allocation3], 64, 64, 4
        $region36: #{model_forward.3} parent=11 // pred_fallthru
          _
        // Predicated region
        $region37: #{model_forward.3} parent=11 // pred_check
          %p440 = pneg %p223
        $region38: #{model_forward.3} parent=11 // pred_check_branch
          %442 = sbr.rel (%p440) target = $region40
        $region39: #{model_forward.3} parent=11 // pred_region
          _
        $region40: #{model_forward.3} parent=11 // pred_fallthru
          _
        // Predicated region
        $region41: #{model_forward.3} parent=11 // pred_check
          %p443 = pneg %p244
        $region42: #{model_forward.3} parent=11 // pred_check_branch
          %445 = sbr.rel (%p443) target = $region44
        $region43: #{model_forward.3} parent=11 // pred_region
          _
        $region44: #{model_forward.3} parent=11 // pred_fallthru
          _
        // Predicated region
        $region45: #{model_forward.3} parent=11 // pred_check
          %p446 = pneg %p265
        $region46: #{model_forward.3} parent=11 // pred_check_branch
          %448 = sbr.rel (%p446) target = $region48
        $region47: #{model_forward.3} parent=11 // pred_region
          %450 = vsyncadd [#allocation5], 0
          %s451 = sshll.u32 %s10, 4
          %s452 = int_to_ptr.hbm [resolvable:$true] %s451
          %s453 = sshll.u32 [#allocation4], 4
          %s454 = int_to_ptr.vmem [resolvable:$true] %s453
          %459 = dma.hbm_to_vmem [thread:$0]  %s452, 2048, %s454, [#allocation5], 128, 128, 8
        $region48: #{model_forward.3} parent=11 // pred_fallthru
          _
        // Predicated region
        $region49: #{model_forward.3} parent=11 // pred_check
          %p460 = pneg %p286
        $region50: #{model_forward.3} parent=11 // pred_check_branch
          %462 = sbr.rel (%p460) target = $region52
        $region51: #{model_forward.3} parent=11 // pred_region
          _
        $region52: #{model_forward.3} parent=11 // pred_fallthru
          _
        // Predicated region
        $region53: #{model_forward.3} parent=11 // pred_check
          %p463 = pneg %p307
        $region54: #{model_forward.3} parent=11 // pred_check_branch
          %465 = sbr.rel (%p463) target = $region56
        $region55: #{model_forward.3} parent=11 // pred_region
          %467 = vsyncadd [#allocation5], 0
          %s468 = sshll.u32 %s12, 4
          %s469 = int_to_ptr.hbm [resolvable:$true] %s468
          %s470 = sshll.u32 [#allocation6], 4
          %s471 = int_to_ptr.vmem [resolvable:$true] %s470
          %476 = dma.hbm_to_vmem [thread:$0]  %s469, 2048, %s471, [#allocation5], 64, 64, 4
        $region56: #{model_forward.3} parent=11 // pred_fallthru
          _
        // Predicated region
        $region57: #{model_forward.3} parent=11 // pred_check
          %p477 = pneg %p328
        $region58: #{model_forward.3} parent=11 // pred_check_branch
          %479 = sbr.rel (%p477) target = $region60
        $region59: #{model_forward.3} parent=11 // pred_region
          _
        $region60: #{model_forward.3} parent=11 // pred_fallthru
          _
        // Predicated region
        $region61: #{model_forward.3} parent=11 // pred_check
          %p480 = pneg %p349
        $region62: #{model_forward.3} parent=11 // pred_check_branch
          %482 = sbr.rel (%p480) target = $region64
        $region63: #{model_forward.3} parent=11 // pred_region
          _
        $region64: #{model_forward.3} parent=11 // pred_fallthru
          _
        // Predicated region
        $region65: #{model_forward.3} parent=11 // pred_check
          %p483 = pneg %p370
        $region66: #{model_forward.3} parent=11 // pred_check_branch
          %485 = sbr.rel (%p483) target = $region68
        $region67: #{model_forward.3} parent=11 // pred_region
          _
        $region68: #{model_forward.3} parent=11 // pred_fallthru
          _
      $region12: #{model_forward.3} parent=5 // pred_fallthru
        _
      %p486 = scmp.lt.s32.totalorder %s24, 2
      // Predicated region
      $region69: #{model_forward.3} parent=5 // pred_check
        %p487 = pneg %p486
      $region70: #{model_forward.3} parent=5 // pred_check_branch
        %489 = sbr.rel (%p487) target = $region72
      $region71: #{model_forward.3} parent=5 // pred_region
        // Predicated region
        $region73: #{model_forward.3} parent=71 // pred_check
          %p490 = pneg %p44
        $region74: #{model_forward.3} parent=71 // pred_check_branch
          %492 = sbr.rel (%p490) target = $region76
        $region75: #{model_forward.3} parent=71 // pred_region
          %p493 = scmp.lt.s32.totalorder %s24, 1
          %s494 = scalar_select %p493, %s24, 1
          %s495 = smul.addr %s494, 8
          %s496 = scalar_lea.vmem %s0, %s495
        $region76: #{model_forward.3} parent=71 // pred_fallthru
          _
        // Predicated region
        $region77: #{model_forward.3} parent=71 // pred_check
          %p497 = pneg %p70
        $region78: #{model_forward.3} parent=71 // pred_check_branch
          %499 = sbr.rel (%p497) target = $region80
        $region79: #{model_forward.3} parent=71 // pred_region
          %p500 = scmp.lt.s32.totalorder %s24, 1
          %s501 = scalar_select %p500, %s24, 1
          %s502 = smul.addr %s501, 8
          %s503 = scalar_lea.vmem %s1, %s502
        $region80: #{model_forward.3} parent=71 // pred_fallthru
          _
      $region72: #{model_forward.3} parent=5 // pred_fallthru
        _
      %p504 = scmp.le.s32.totalorder 1, %s24
      %p505 = scmp.lt.s32.totalorder %s24, 3
      %p506 = pnand %p504, %p505
      %p507 = pneg %p506
      // Predicated region
      $region81: #{model_forward.3} parent=5 // pred_check
        _
      $region82: #{model_forward.3} parent=5 // pred_check_branch
        %509 = sbr.rel (%p506) target = $region84
      $region83: #{model_forward.3} parent=5 // pred_region
        %s510 = ssub.s32 %s24, 1
        // Predicated region
        $region85: #{model_forward.3} parent=83 // pred_check
          %p511 = pneg %p202
        $region86: #{model_forward.3} parent=83 // pred_check_branch
          %513 = sbr.rel (%p511) target = $region88
        $region87: #{model_forward.3} parent=83 // pred_region
          %515 = dma.done [#allocation3], 1024
        $region88: #{model_forward.3} parent=83 // pred_fallthru
          _
        // Predicated region
        $region89: #{model_forward.3} parent=83 // pred_check
          %p516 = pneg %p265
        $region90: #{model_forward.3} parent=83 // pred_check_branch
          %518 = sbr.rel (%p516) target = $region92
        $region91: #{model_forward.3} parent=83 // pred_region
          %520 = dma.done [#allocation5], 2048
        $region92: #{model_forward.3} parent=83 // pred_fallthru
          _
        // Predicated region
        $region93: #{model_forward.3} parent=83 // pred_check
          %p521 = pneg %p307
        $region94: #{model_forward.3} parent=83 // pred_check_branch
          %523 = sbr.rel (%p521) target = $region96
        $region95: #{model_forward.3} parent=83 // pred_region
          %525 = dma.done [#allocation5], 2048
        $region96: #{model_forward.3} parent=83 // pred_fallthru
          _
        %p526 = scmp.lt.s32.totalorder %s29, 1
        %s527 = scalar_select %p526, %s29, 1
        %s528 = smul.addr %s527, 8
        %s529 = scalar_lea.vmem %s0, %s528
        %p530 = pneg %p50
        %p531 = pneg %p47
        %p532 = scmp.lt.s32.totalorder %s29, 1
        %s533 = scalar_select %p532, %s29, 1
        %s534 = smul.addr %s533, 8
        %s535 = scalar_lea.vmem %s1, %s534
        %p536 = pneg %p76
        %p537 = pneg %p73
        %p538 = pneg %p97
        %p539 = pneg %p94
        %p540 = pneg %p118
        %p541 = pneg %p115
        %p542 = pneg %p139
        %p543 = pneg %p136
        %p544 = pneg %p160
        %p545 = pneg %p157
        %p546 = pneg %p181
        %p547 = pneg %p178
        %p548 = pneg %p202
        %p549 = pneg %p199
        %p550 = pneg %p223
        %p551 = pneg %p220
        %p552 = pneg %p244
        %p553 = pneg %p241
        %p554 = pneg %p265
        %p555 = pneg %p262
        %p556 = pneg %p286
        %p557 = pneg %p283
        %p558 = pneg %p307
        %p559 = pneg %p304
        %p560 = pneg %p328
        %p561 = pneg %p325
        %p562 = pneg %p349
        %p563 = pneg %p346
        %p564 = pneg %p370
        %p565 = pneg %p367
        %p566 = pneg %p396
        %p567 = pneg %p393
        %p568 = scmp.lt.s32.totalorder %s29, 1
        %s569 = scalar_select %p568, %s29, 1
        %s570 = smul.addr %s569, 8
        %s571 = scalar_lea.vmem %s16, %s570
        %p572 = scmp.lt.s32.totalorder %s29, 1
        %s573 = scalar_select %p572, %s29, 1
        %s574 = smul.addr %s573, 8
        %s575 = scalar_lea.vmem %s0, %s574
        %p576 = scmp.lt.s32.totalorder %s29, 1
        %s577 = scalar_select %p576, %s29, 1
        %s578 = smul.addr %s577, 8
        %s579 = scalar_lea.vmem %s1, %s578
        %p580 = scmp.lt.s32.totalorder %s29, 1
        %s581 = scalar_select %p580, %s29, 1
        %s582 = smul.addr %s581, 8
        %s583 = scalar_lea.vmem %s16, %s582
        %v585 = vld [vmem:[%s575] sm:$0xff]
        %v586 = vld [vmem:[%s579] sm:$0xff]
        %v587 = vld [vmem:[%s2] sm:$0xff]
        %v588 = vld [vmem:[%s2 + $0x8] sm:$0xff]
        %v589 = vld [vmem:[%s8] sm:$0x1]
        %v590 = vld [vmem:[%s9] sm:$0x1]
        %591 = vadd.xlane.f32.xlu0 %v586
        %v592 = vpop.xlane.xlu0 %591
        %593 = vadd.xlane.f32.xlu0 %v585
        %v594 = vpop.xlane.xlu0 %593
        %v595 = vrcp.pop 128.0
        %v596 = vmul.f32 128.0, %v595
        %v597 = vsub.f32 1.0, %v596
        %v598 = vmul.f32 %v595, %v597
        %v599 = vadd.f32 %v595, %v598
        %vm600 = vweird.f32 %v595
        %v601 = vsel %vm600, %v595, %v599
        %v602 = vmul.f32 %v592, %v601
        %v603 = vmul.f32 %v594, %v601
        %v604 = vsub.f32 %v586, %v602
        %v605 = vsub.f32 %v585, %v603
        %v606 = vmul.f32 %v604, %v604
        %v607 = vmul.f32 %v605, %v605
        %608 = vadd.xlane.f32.xlu0 %v606
        %v609 = vpop.xlane.xlu0 %608
        %610 = vadd.xlane.f32.xlu0 %v607
        %v611 = vpop.xlane.xlu0 %610
        %v612 = vmul.f32 %v609, %v601
        %v613 = vmul.f32 %v611, %v601
        %v614 = vadd.f32 %v612, 0.001
        %v615 = vadd.f32 %v613, 0.001
        %v616 = vrsqrt.pop %v614
        %v617 = vmul.f32 %v616, %v614
        %v618 = vmul.f32 %v617, %v616
        %v619 = vmul.f32 0.5, %v618
        %v620 = vsub.f32 1.5, %v619
        %v621 = vmul.f32 %v616, %v620
        %vm622 = vweird.f32 %v614
        %vm623 = vweird.f32 %v616
        %vm624 = vmor %vm622, %vm623
        %v625 = vsel %vm624, %v616, %v621
        %v626 = vrsqrt.pop %v615
        %v627 = vmul.f32 %v626, %v615
        %v628 = vmul.f32 %v627, %v626
        %v629 = vmul.f32 0.5, %v628
        %v630 = vsub.f32 1.5, %v629
        %v631 = vmul.f32 %v626, %v630
        %vm632 = vweird.f32 %v615
        %vm633 = vweird.f32 %v626
        %vm634 = vmor %vm632, %vm633
        %v635 = vsel %vm634, %v626, %v631
        %v636 = vmul.f32 %v604, %v625
        %v637 = vmul.f32 %v605, %v635
        %v639 = vperm.slane %v589, 0
        %v641 = vmul.f32 %v636, %v639
        %v642 = vmul.f32 %v637, %v639
        %v644 = vperm.slane %v590, 0
        %v646 = vadd.f32 %v641, %v644
        %v647 = vadd.f32 %v642, %v644
        %v648 = vpack.c.bf16 %v647, %v646
        %v649 = vld [vmem:[%s5] sm:$0xff]
        %v650 = vld [vmem:[%s5 + $0x8] sm:$0xf]
        %v651 = vld [vmem:[%s5 + $0xc] sm:$0xff]
        %v652 = vld [vmem:[%s5 + $0x14] sm:$0xf]
        %v653 = vld [vmem:[%s5 + $0x18] sm:$0xff]
        %v654 = vld [vmem:[%s5 + $0x20] sm:$0xf]
        %v655 = vld [vmem:[%s5 + $0x24] sm:$0xff]
        %v656 = vld [vmem:[%s5 + $0x2c] sm:$0xf]
        %v657 = vld [vmem:[%s5 + $0x30] sm:$0xff]
        %v658 = vld [vmem:[%s5 + $0x38] sm:$0xf]
        %v659 = vld [vmem:[%s5 + $0x3c] sm:$0xff]
        %v660 = vld [vmem:[%s5 + $0x44] sm:$0xf]
        %v661 = vld [vmem:[%s5 + $0x48] sm:$0xff]
        %v662 = vld [vmem:[%s5 + $0x50] sm:$0xf]
        %v663 = vld [vmem:[%s5 + $0x54] sm:$0xff]
        %v664 = vld [vmem:[%s5 + $0x5c] sm:$0xf]
        %v665 = vld [vmem:[%s5 + $0x60] sm:$0xff]
        %v666 = vld [vmem:[%s5 + $0x68] sm:$0xf]
        %v667 = vld [vmem:[%s5 + $0x6c] sm:$0xff]
        %v668 = vld [vmem:[%s5 + $0x74] sm:$0xf]
        %v669 = vld [vmem:[%s5 + $0x78] sm:$0xff]
        %v670 = vld [vmem:[%s5 + $0x80] sm:$0xf]
        %v671 = vld [vmem:[%s5 + $0x84] sm:$0xff]
        %v672 = vld [vmem:[%s5 + $0x8c] sm:$0xf]
        %v673 = vld [vmem:[%s5 + $0x90] sm:$0xff]
        %v674 = vld [vmem:[%s5 + $0x98] sm:$0xf]
        %v675 = vld [vmem:[%s5 + $0x9c] sm:$0xff]
        %v676 = vld [vmem:[%s5 + $0xa4] sm:$0xf]
        %v677 = vld [vmem:[%s5 + $0xa8] sm:$0xff]
        %v678 = vld [vmem:[%s5 + $0xb0] sm:$0xf]
        %v679 = vld [vmem:[%s5 + $0xb4] sm:$0xff]
        %v680 = vld [vmem:[%s5 + $0xbc] sm:$0xf]
        %v713 = vunpack.c.l.b16 %v649
        %v714 = vunpack.c.h.b16 %v649
        %v715 = vunpack.c.l.b16 %v650
        %v716 = vunpack.c.l.b16 %v651
        %v717 = vunpack.c.h.b16 %v651
        %v718 = vunpack.c.l.b16 %v652
        %v719 = vunpack.c.l.b16 %v653
        %v720 = vunpack.c.h.b16 %v653
        %v721 = vunpack.c.l.b16 %v654
        %v722 = vunpack.c.l.b16 %v655
        %v723 = vunpack.c.h.b16 %v655
        %v724 = vunpack.c.l.b16 %v656
        %v725 = vunpack.c.l.b16 %v657
        %v726 = vunpack.c.h.b16 %v657
        %v727 = vunpack.c.l.b16 %v658
        %v728 = vunpack.c.l.b16 %v659
        %v729 = vunpack.c.h.b16 %v659
        %v730 = vunpack.c.l.b16 %v660
        %v731 = vunpack.c.l.b16 %v661
        %v732 = vunpack.c.h.b16 %v661
        %v733 = vunpack.c.l.b16 %v662
        %v734 = vunpack.c.l.b16 %v663
        %v735 = vunpack.c.h.b16 %v663
        %v736 = vunpack.c.l.b16 %v664
        %v737 = vunpack.c.l.b16 %v665
        %v738 = vunpack.c.h.b16 %v665
        %v739 = vunpack.c.l.b16 %v666
        %v740 = vunpack.c.l.b16 %v667
        %v741 = vunpack.c.h.b16 %v667
        %v742 = vunpack.c.l.b16 %v668
        %v743 = vunpack.c.l.b16 %v669
        %v744 = vunpack.c.h.b16 %v669
        %v745 = vunpack.c.l.b16 %v670
        %v746 = vunpack.c.l.b16 %v671
        %v747 = vunpack.c.h.b16 %v671
        %v748 = vunpack.c.l.b16 %v672
        %v749 = vunpack.c.l.b16 %v673
        %v750 = vunpack.c.h.b16 %v673
        %v751 = vunpack.c.l.b16 %v674
        %v752 = vunpack.c.l.b16 %v675
        %v753 = vunpack.c.h.b16 %v675
        %v754 = vunpack.c.l.b16 %v676
        %v755 = vunpack.c.l.b16 %v677
        %v756 = vunpack.c.h.b16 %v677
        %v757 = vunpack.c.l.b16 %v678
        %v758 = vunpack.c.l.b16 %v679
        %v759 = vunpack.c.h.b16 %v679
        %v760 = vunpack.c.l.b16 %v680
        %v761 = vpack.c.b16 %v716, %v713
        %v762 = vpack.c.b16 %v717, %v714
        %v763 = vpack.c.b16 %v718, %v715
        %v764 = vpack.c.b16 %v722, %v719
        %v765 = vpack.c.b16 %v723, %v720
        %v766 = vpack.c.b16 %v724, %v721
        %v767 = vpack.c.b16 %v728, %v725
        %v768 = vpack.c.b16 %v729, %v726
        %v769 = vpack.c.b16 %v730, %v727
        %v770 = vpack.c.b16 %v734, %v731
        %v771 = vpack.c.b16 %v735, %v732
        %v772 = vpack.c.b16 %v736, %v733
        %v773 = vpack.c.b16 %v740, %v737
        %v774 = vpack.c.b16 %v741, %v738
        %v775 = vpack.c.b16 %v742, %v739
        %v776 = vpack.c.b16 %v746, %v743
        %v777 = vpack.c.b16 %v747, %v744
        %v778 = vpack.c.b16 %v748, %v745
        %v779 = vpack.c.b16 %v752, %v749
        %v780 = vpack.c.b16 %v753, %v750
        %v781 = vpack.c.b16 %v754, %v751
        %v782 = vpack.c.b16 %v758, %v755
        %v783 = vpack.c.b16 %v759, %v756
        %v784 = vpack.c.b16 %v760, %v757
        %809 = vmatpush.bf16.msra.mxu0 %v782
        %810 = vmatpush.bf16.msra.mxu0 %v779
        %811 = vmatpush.bf16.msra.mxu0 %v776
        %812 = vmatpush.bf16.msra.mxu0 %v773
        %813 = vmatpush.bf16.msra.mxu0 %v770
        %814 = vmatpush.bf16.msra.mxu0 %v767
        %815 = vmatpush.bf16.msra.mxu0 %v764
        %816 = vmatpush.bf16.msra.mxu0 %v761
        %817 = vmatmul.bf16.gmra.mxu0 %v648
        %v818 = vpop.f32.mrf.mxu0
        %v819 = vpop.f32.mrf.mxu0
        %v820 = vadd.f32 0.0, %v819
        %821 = vdwg.mxu0
        %822 = vmatpush.bf16.msra.mxu0 %v783
        %823 = vmatpush.bf16.msra.mxu0 %v780
        %824 = vmatpush.bf16.msra.mxu0 %v777
        %825 = vmatpush.bf16.msra.mxu0 %v774
        %826 = vmatpush.bf16.msra.mxu0 %v771
        %827 = vmatpush.bf16.msra.mxu0 %v768
        %828 = vmatpush.bf16.msra.mxu0 %v765
        %829 = vmatpush.bf16.msra.mxu0 %v762
        %830 = vmatmul.bf16.gmra.mxu0 %v648
        %v831 = vpop.f32.mrf.mxu0
        %v832 = vadd.f32 0.0, %v831
        %v833 = vpop.f32.mrf.mxu0
        %v834 = vadd.f32 0.0, %v833
        %835 = vdwg.mxu0
        %836 = vmatpush.bf16.msra.mxu0 %v784
        %837 = vmatpush.bf16.msra.mxu0 %v781
        %838 = vmatpush.bf16.msra.mxu0 %v778
        %839 = vmatpush.bf16.msra.mxu0 %v775
        %840 = vmatpush.bf16.msra.mxu0 %v772
        %841 = vmatpush.bf16.msra.mxu0 %v769
        %842 = vmatpush.bf16.msra.mxu0 %v766
        %843 = vmatpush.bf16.msra.mxu0 %v763
        %844 = vmatmul.bf16.gmra.mxu0 %v648
        %v845 = vpop.f32.mrf.mxu0
        %v846 = vadd.f32 0.0, %v845
        %v847 = vpop.f32.mrf.mxu0
        %v848 = vadd.f32 0.0, %v847
        %849 = vdwg.mxu0
        %v850 = vpack.c.bf16 %v588, %v587
        %v851 = vld [vmem:[%s6] sm:$0xf]
        %v852 = vld [vmem:[%s6 + $0x4] sm:$0xf]
        %v853 = vld [vmem:[%s6 + $0x8] sm:$0xf]
        %v854 = vld [vmem:[%s6 + $0xc] sm:$0xf]
        %v855 = vld [vmem:[%s6 + $0x10] sm:$0xf]
        %v856 = vld [vmem:[%s6 + $0x14] sm:$0xf]
        %v857 = vld [vmem:[%s6 + $0x18] sm:$0xf]
        %v858 = vld [vmem:[%s6 + $0x1c] sm:$0xf]
        %v859 = vld [vmem:[%s6 + $0x20] sm:$0xf]
        %v860 = vld [vmem:[%s6 + $0x24] sm:$0xf]
        %v861 = vld [vmem:[%s6 + $0x28] sm:$0xf]
        %v862 = vld [vmem:[%s6 + $0x2c] sm:$0xf]
        %v863 = vld [vmem:[%s6 + $0x30] sm:$0xf]
        %v864 = vld [vmem:[%s6 + $0x34] sm:$0xf]
        %v865 = vld [vmem:[%s6 + $0x38] sm:$0xf]
        %v866 = vld [vmem:[%s6 + $0x3c] sm:$0xf]
        %v883 = vunpack.c.l.b16 %v851
        %v884 = vunpack.c.l.b16 %v852
        %v885 = vunpack.c.l.b16 %v853
        %v886 = vunpack.c.l.b16 %v854
        %v887 = vunpack.c.l.b16 %v855
        %v888 = vunpack.c.l.b16 %v856
        %v889 = vunpack.c.l.b16 %v857
        %v890 = vunpack.c.l.b16 %v858
        %v891 = vunpack.c.l.b16 %v859
        %v892 = vunpack.c.l.b16 %v860
        %v893 = vunpack.c.l.b16 %v861
        %v894 = vunpack.c.l.b16 %v862
        %v895 = vunpack.c.l.b16 %v863
        %v896 = vunpack.c.l.b16 %v864
        %v897 = vunpack.c.l.b16 %v865
        %v898 = vunpack.c.l.b16 %v866
        %v899 = vpack.c.b16 %v884, %v883
        %v900 = vpack.c.b16 %v886, %v885
        %v901 = vpack.c.b16 %v888, %v887
        %v902 = vpack.c.b16 %v890, %v889
        %v903 = vpack.c.b16 %v892, %v891
        %v904 = vpack.c.b16 %v894, %v893
        %v905 = vpack.c.b16 %v896, %v895
        %v906 = vpack.c.b16 %v898, %v897
        %915 = vmatpush.bf16.msra.mxu0 %v906
        %916 = vmatpush.bf16.msra.mxu0 %v905
        %917 = vmatpush.bf16.msra.mxu0 %v904
        %918 = vmatpush.bf16.msra.mxu0 %v903
        %919 = vmatpush.bf16.msra.mxu0 %v902
        %920 = vmatpush.bf16.msra.mxu0 %v901
        %921 = vmatpush.bf16.msra.mxu0 %v900
        %922 = vmatpush.bf16.msra.mxu0 %v899
        %923 = vmatmul.bf16.gmra.mxu0 %v850
        %v924 = vpop.f32.mrf.mxu0
        %v925 = vadd.f32 0.0, %v924
        %v926 = vpop.f32.mrf.mxu0
        %v927 = vadd.f32 0.0, %v926
        %928 = vdwg.mxu0
        %v929 = vld [vmem:[%s3] sm:$0x1]
        %v931 = vperm.slane %v929, 0
        %v933 = vadd.f32 %v820, %v931
        %v934 = vpack.c.bf16 %v933, %v933
        %936 = vrot.lane.b32.xlu0 %v934, 96
        %v937 = vpop.permute.xlu0 %936
        %938 = vrot.lane.b32.xlu0 %v934, 64
        %v939 = vpop.permute.xlu0 %938
        %940 = vrot.lane.b32.xlu0 %v934, 32
        %v941 = vpop.permute.xlu0 %940
        %v942 = vld [vmem:[%s4] sm:$0x1]
        %v944 = vperm.slane %v942, 0
        %v946 = vadd.f32 %v820, %v944
        %v947 = vpack.c.bf16 %v946, %v946
        %949 = vrot.lane.b32.xlu0 %v947, 96
        %v950 = vpop.permute.xlu0 %949
        %951 = vrot.lane.b32.xlu0 %v947, 64
        %v952 = vpop.permute.xlu0 %951
        %953 = vrot.lane.b32.xlu0 %v947, 32
        %v954 = vpop.permute.xlu0 %953
        %v955 = vpack.c.bf16 %v832, %v832
        %v956 = vpack.c.bf16 %v834, %v834
        %959 = vrot.lane.b32.xlu0 %v955, 96
        %v960 = vpop.permute.xlu0 %959
        %961 = vrot.lane.b32.xlu0 %v956, 96
        %v962 = vpop.permute.xlu0 %961
        %963 = vrot.lane.b32.xlu0 %v955, 64
        %v964 = vpop.permute.xlu0 %963
        %965 = vrot.lane.b32.xlu0 %v956, 64
        %v966 = vpop.permute.xlu0 %965
        %967 = vrot.lane.b32.xlu0 %v955, 32
        %v968 = vpop.permute.xlu0 %967
        %969 = vrot.lane.b32.xlu0 %v956, 32
        %v970 = vpop.permute.xlu0 %969
        %v971 = vpack.c.bf16 %v846, %v846
        %v972 = vpack.c.bf16 %v848, %v848
        %975 = vrot.lane.b32.xlu0 %v971, 96
        %v976 = vpop.permute.xlu0 %975
        %977 = vrot.lane.b32.xlu0 %v972, 96
        %v978 = vpop.permute.xlu0 %977
        %979 = vrot.lane.b32.xlu0 %v971, 64
        %v980 = vpop.permute.xlu0 %979
        %981 = vrot.lane.b32.xlu0 %v972, 64
        %v982 = vpop.permute.xlu0 %981
        %983 = vrot.lane.b32.xlu0 %v971, 32
        %v984 = vpop.permute.xlu0 %983
        %985 = vrot.lane.b32.xlu0 %v972, 32
        %v986 = vpop.permute.xlu0 %985
        %v987 = vpack.c.bf16 %v925, %v925
        %v988 = vpack.c.bf16 %v927, %v927
        %991 = vrot.lane.b32.xlu0 %v987, 96
        %v992 = vpop.permute.xlu0 %991
        %993 = vrot.lane.b32.xlu0 %v988, 96
        %v994 = vpop.permute.xlu0 %993
        %995 = vrot.lane.b32.xlu0 %v987, 64
        %v996 = vpop.permute.xlu0 %995
        %997 = vrot.lane.b32.xlu0 %v988, 64
        %v998 = vpop.permute.xlu0 %997
        %999 = vrot.lane.b32.xlu0 %v987, 32
        %v1000 = vpop.permute.xlu0 %999
        %1001 = vrot.lane.b32.xlu0 %v988, 32
        %v1002 = vpop.permute.xlu0 %1001
        %v1003 = vunpack.c.l.b16 %v987
        %v1004 = vunpack.c.l.b16 %v988
        %v1005 = vpack.c.b16 %v1004, %v1003
        %vm1006 = vcmask 261120
        %v1008 = vsel %vm1006, %v947, 0
        %v1011 = vsel %vm1006, %v1005, 0
        %1013 = vmatpush.bf16.xpose.msra.mxu0 0
        %1014 = vmatpush.bf16.xpose.msra.mxu0 0
        %1015 = vmatpush.bf16.xpose.msra.mxu0 0
        %1016 = vmatpush.bf16.xpose.msra.mxu0 0
        %1017 = vmatpush.bf16.xpose.msra.mxu0 0
        %1018 = vmatpush.bf16.xpose.msra.mxu0 0
        %1019 = vmatpush.bf16.xpose.msra.mxu0 0
        %1020 = vmatpush.bf16.xpose.msra.mxu0 %v1011
        %1021 = vmatmul.bf16.gmra.mxu0 %v1008
        %v1022 = vpop.f32.mrf.mxu0
        %v1023 = vadd.f32 0.0, %v1022
        %v1024 = vpop.f32.mrf.mxu0
        %1025 = vdwg.mxu0
        %v1026 = vunpack.c.l.b16 %v992
        %v1027 = vunpack.c.l.b16 %v994
        %v1028 = vpack.c.b16 %v1027, %v1026
        %v1030 = vsel %vm1006, %v950, 0
        %v1033 = vsel %vm1006, %v1028, 0
        %1035 = vmatpush.bf16.xpose.msra.mxu0 0
        %1036 = vmatpush.bf16.xpose.msra.mxu0 0
        %1037 = vmatpush.bf16.xpose.msra.mxu0 0
        %1038 = vmatpush.bf16.xpose.msra.mxu0 0
        %1039 = vmatpush.bf16.xpose.msra.mxu0 0
        %1040 = vmatpush.bf16.xpose.msra.mxu0 0
        %1041 = vmatpush.bf16.xpose.msra.mxu0 0
        %1042 = vmatpush.bf16.xpose.msra.mxu0 %v1033
        %1043 = vmatmul.bf16.gmra.mxu0 %v1030
        %v1044 = vpop.f32.mrf.mxu0
        %v1045 = vadd.f32 0.0, %v1044
        %v1046 = vpop.f32.mrf.mxu0
        %1047 = vdwg.mxu0
        %v1048 = vunpack.c.l.b16 %v996
        %v1049 = vunpack.c.l.b16 %v998
        %v1050 = vpack.c.b16 %v1049, %v1048
        %v1052 = vsel %vm1006, %v952, 0
        %v1055 = vsel %vm1006, %v1050, 0
        %1057 = vmatpush.bf16.xpose.msra.mxu0 0
        %1058 = vmatpush.bf16.xpose.msra.mxu0 0
        %1059 = vmatpush.bf16.xpose.msra.mxu0 0
        %1060 = vmatpush.bf16.xpose.msra.mxu0 0
        %1061 = vmatpush.bf16.xpose.msra.mxu0 0
        %1062 = vmatpush.bf16.xpose.msra.mxu0 0
        %1063 = vmatpush.bf16.xpose.msra.mxu0 0
        %1064 = vmatpush.bf16.xpose.msra.mxu0 %v1055
        %1065 = vmatmul.bf16.gmra.mxu0 %v1052
        %v1066 = vpop.f32.mrf.mxu0
        %v1067 = vadd.f32 0.0, %v1066
        %v1068 = vpop.f32.mrf.mxu0
        %1069 = vdwg.mxu0
        %v1070 = vunpack.c.l.b16 %v1000
        %v1071 = vunpack.c.l.b16 %v1002
        %v1072 = vpack.c.b16 %v1071, %v1070
        %v1074 = vsel %vm1006, %v954, 0
        %v1077 = vsel %vm1006, %v1072, 0
        %1079 = vmatpush.bf16.xpose.msra.mxu0 0
        %1080 = vmatpush.bf16.xpose.msra.mxu0 0
        %1081 = vmatpush.bf16.xpose.msra.mxu0 0
        %1082 = vmatpush.bf16.xpose.msra.mxu0 0
        %1083 = vmatpush.bf16.xpose.msra.mxu0 0
        %1084 = vmatpush.bf16.xpose.msra.mxu0 0
        %1085 = vmatpush.bf16.xpose.msra.mxu0 0
        %1086 = vmatpush.bf16.xpose.msra.mxu0 %v1077
        %1087 = vmatmul.bf16.gmra.mxu0 %v1074
        %v1088 = vpop.f32.mrf.mxu0
        %v1089 = vadd.f32 0.0, %v1088
        %v1090 = vpop.f32.mrf.mxu0
        %1091 = vdwg.mxu0
        %v1092 = vlaneseq
        %v1093 = vshrl.u32 %v1092, 7
        %v1094 = vlaneseq
        %v1095 = vand.u32 %v1094, 127
        %1100 = vrot.lane.b32.xlu0 %v1023, 121
        %v1101 = vpop.permute.xlu0 %1100
        %1102 = vrot.lane.b32.xlu0 %v1045, 121
        %v1103 = vpop.permute.xlu0 %1102
        %1104 = vrot.lane.b32.xlu0 %v1067, 121
        %v1105 = vpop.permute.xlu0 %1104
        %1106 = vrot.lane.b32.xlu0 %v1089, 121
        %v1107 = vpop.permute.xlu0 %1106
        %1112 = vrot.lane.b32.xlu0 %v1023, 9
        %v1113 = vpop.permute.xlu0 %1112
        %1114 = vrot.lane.b32.xlu0 %v1045, 9
        %v1115 = vpop.permute.xlu0 %1114
        %1116 = vrot.lane.b32.xlu0 %v1067, 9
        %v1117 = vpop.permute.xlu0 %1116
        %1118 = vrot.lane.b32.xlu0 %v1089, 9
        %v1119 = vpop.permute.xlu0 %1118
        %vm1124 = vcmask 72704
        %v1125 = vsel %vm1124, %v1101, %v1113
        %v1126 = vsel %vm1124, %v1103, %v1115
        %v1127 = vsel %vm1124, %v1105, %v1117
        %v1128 = vsel %vm1124, %v1107, %v1119
        %1133 = vrot.lane.b32.xlu0 %v1125, 113
        %v1134 = vpop.permute.xlu0 %1133
        %1135 = vrot.lane.b32.xlu0 %v1126, 113
        %v1136 = vpop.permute.xlu0 %1135
        %1137 = vrot.lane.b32.xlu0 %v1127, 113
        %v1138 = vpop.permute.xlu0 %1137
        %1139 = vrot.lane.b32.xlu0 %v1128, 113
        %v1140 = vpop.permute.xlu0 %1139
        %1145 = vrot.lane.b32.xlu0 %v1125, 1
        %v1146 = vpop.permute.xlu0 %1145
        %1147 = vrot.lane.b32.xlu0 %v1126, 1
        %v1148 = vpop.permute.xlu0 %1147
        %1149 = vrot.lane.b32.xlu0 %v1127, 1
        %v1150 = vpop.permute.xlu0 %1149
        %1151 = vrot.lane.b32.xlu0 %v1128, 1
        %v1152 = vpop.permute.xlu0 %1151
        %vm1157 = vcmask 7168
        %v1158 = vsel %vm1157, %v1134, %v1146
        %v1159 = vsel %vm1157, %v1136, %v1148
        %v1160 = vsel %vm1157, %v1138, %v1150
        %v1161 = vsel %vm1157, %v1140, %v1152
        %v1162 = vand.u32 %v1093, 1
        %vm1163 = vcmp.eq.s32.totalorder %v1162, 1
        %v1164 = vsel %vm1163, 1, 0
        %vm1165 = vcmp.eq.s32.totalorder %v1164, 1
        %v1166 = vsel %vm1165, %v1158, %v1125
        %v1167 = vsel %vm1165, %v1159, %v1126
        %v1168 = vsel %vm1165, %v1160, %v1127
        %v1169 = vsel %vm1165, %v1161, %v1128
        %1174 = vrot.lane.b32.xlu0 %v1166, 114
        %v1175 = vpop.permute.xlu0 %1174
        %1176 = vrot.lane.b32.xlu0 %v1167, 114
        %v1177 = vpop.permute.xlu0 %1176
        %1178 = vrot.lane.b32.xlu0 %v1168, 114
        %v1179 = vpop.permute.xlu0 %1178
        %1180 = vrot.lane.b32.xlu0 %v1169, 114
        %v1181 = vpop.permute.xlu0 %1180
        %1186 = vrot.lane.b32.xlu0 %v1166, 2
        %v1187 = vpop.permute.xlu0 %1186
        %1188 = vrot.lane.b32.xlu0 %v1167, 2
        %v1189 = vpop.permute.xlu0 %1188
        %1190 = vrot.lane.b32.xlu0 %v1168, 2
        %v1191 = vpop.permute.xlu0 %1190
        %1192 = vrot.lane.b32.xlu0 %v1169, 2
        %v1193 = vpop.permute.xlu0 %1192
        %vm1198 = vcmask 15360
        %v1199 = vsel %vm1198, %v1175, %v1187
        %v1200 = vsel %vm1198, %v1177, %v1189
        %v1201 = vsel %vm1198, %v1179, %v1191
        %v1202 = vsel %vm1198, %v1181, %v1193
        %v1203 = vshra.s32 %v1093, 1
        %v1204 = vand.u32 %v1203, 1
        %vm1205 = vcmp.eq.s32.totalorder %v1204, 1
        %v1206 = vsel %vm1205, 1, 0
        %vm1207 = vcmp.eq.s32.totalorder %v1206, 1
        %v1208 = vsel %vm1207, %v1199, %v1166
        %v1209 = vsel %vm1207, %v1200, %v1167
        %v1210 = vsel %vm1207, %v1201, %v1168
        %v1211 = vsel %vm1207, %v1202, %v1169
        %1216 = vrot.lane.b32.xlu0 %v1208, 116
        %v1217 = vpop.permute.xlu0 %1216
        %1218 = vrot.lane.b32.xlu0 %v1209, 116
        %v1219 = vpop.permute.xlu0 %1218
        %1220 = vrot.lane.b32.xlu0 %v1210, 116
        %v1221 = vpop.permute.xlu0 %1220
        %1222 = vrot.lane.b32.xlu0 %v1211, 116
        %v1223 = vpop.permute.xlu0 %1222
        %1228 = vrot.lane.b32.xlu0 %v1208, 4
        %v1229 = vpop.permute.xlu0 %1228
        %1230 = vrot.lane.b32.xlu0 %v1209, 4
        %v1231 = vpop.permute.xlu0 %1230
        %1232 = vrot.lane.b32.xlu0 %v1210, 4
        %v1233 = vpop.permute.xlu0 %1232
        %1234 = vrot.lane.b32.xlu0 %v1211, 4
        %v1235 = vpop.permute.xlu0 %1234
        %vm1240 = vcmask 31744
        %v1241 = vsel %vm1240, %v1217, %v1229
        %v1242 = vsel %vm1240, %v1219, %v1231
        %v1243 = vsel %vm1240, %v1221, %v1233
        %v1244 = vsel %vm1240, %v1223, %v1235
        %v1245 = vshra.s32 %v1093, 2
        %v1246 = vand.u32 %v1245, 1
        %vm1247 = vcmp.eq.s32.totalorder %v1246, 1
        %v1248 = vsel %vm1247, 1, 0
        %vm1249 = vcmp.eq.s32.totalorder %v1248, 1
        %v1250 = vsel %vm1249, %v1241, %v1208
        %v1251 = vsel %vm1249, %v1242, %v1209
        %v1252 = vsel %vm1249, %v1243, %v1210
        %v1253 = vsel %vm1249, %v1244, %v1211
        %v1254 = vadd.s32 %v1093, 8
        %vm1255 = vcmp.gt.s32.totalorder %v1095, %v1254
        %v1256 = vsel %vm1255, -1e+30, 0.0
        %v1257 = vunpack.c.l.b16 %v955
        %v1258 = vunpack.c.l.b16 %v956
        %v1259 = vpack.c.b16 %v1258, %v1257
        %v1261 = vsel %vm1006, %v934, 0
        %v1264 = vsel %vm1006, %v1259, 0
        %1266 = vmatpush.bf16.xpose.msra.mxu0 0
        %1267 = vmatpush.bf16.xpose.msra.mxu0 0
        %1268 = vmatpush.bf16.xpose.msra.mxu0 0
        %1269 = vmatpush.bf16.xpose.msra.mxu0 0
        %1270 = vmatpush.bf16.xpose.msra.mxu0 0
        %1271 = vmatpush.bf16.xpose.msra.mxu0 0
        %1272 = vmatpush.bf16.xpose.msra.mxu0 0
        %1273 = vmatpush.bf16.xpose.msra.mxu0 %v1264
        %1274 = vmatmul.bf16.gmra.mxu0 %v1261
        %v1275 = vpop.f32.mrf.mxu0
        %v1276 = vadd.f32 %v1250, %v1275
        %v1277 = vpop.f32.mrf.mxu0
        %1278 = vdwg.mxu0
        %v1279 = vunpack.c.l.b16 %v960
        %v1280 = vunpack.c.l.b16 %v962
        %v1281 = vpack.c.b16 %v1280, %v1279
        %v1283 = vsel %vm1006, %v937, 0
        %v1286 = vsel %vm1006, %v1281, 0
        %1288 = vmatpush.bf16.xpose.msra.mxu0 0
        %1289 = vmatpush.bf16.xpose.msra.mxu0 0
        %1290 = vmatpush.bf16.xpose.msra.mxu0 0
        %1291 = vmatpush.bf16.xpose.msra.mxu0 0
        %1292 = vmatpush.bf16.xpose.msra.mxu0 0
        %1293 = vmatpush.bf16.xpose.msra.mxu0 0
        %1294 = vmatpush.bf16.xpose.msra.mxu0 0
        %1295 = vmatpush.bf16.xpose.msra.mxu0 %v1286
        %1296 = vmatmul.bf16.gmra.mxu0 %v1283
        %v1297 = vpop.f32.mrf.mxu0
        %v1298 = vadd.f32 %v1251, %v1297
        %v1299 = vpop.f32.mrf.mxu0
        %1300 = vdwg.mxu0
        %v1301 = vunpack.c.l.b16 %v964
        %v1302 = vunpack.c.l.b16 %v966
        %v1303 = vpack.c.b16 %v1302, %v1301
        %v1305 = vsel %vm1006, %v939, 0
        %v1308 = vsel %vm1006, %v1303, 0
        %1310 = vmatpush.bf16.xpose.msra.mxu0 0
        %1311 = vmatpush.bf16.xpose.msra.mxu0 0
        %1312 = vmatpush.bf16.xpose.msra.mxu0 0
        %1313 = vmatpush.bf16.xpose.msra.mxu0 0
        %1314 = vmatpush.bf16.xpose.msra.mxu0 0
        %1315 = vmatpush.bf16.xpose.msra.mxu0 0
        %1316 = vmatpush.bf16.xpose.msra.mxu0 0
        %1317 = vmatpush.bf16.xpose.msra.mxu0 %v1308
        %1318 = vmatmul.bf16.gmra.mxu0 %v1305
        %v1319 = vpop.f32.mrf.mxu0
        %v1320 = vadd.f32 %v1252, %v1319
        %v1321 = vpop.f32.mrf.mxu0
        %1322 = vdwg.mxu0
        %v1323 = vunpack.c.l.b16 %v968
        %v1324 = vunpack.c.l.b16 %v970
        %v1325 = vpack.c.b16 %v1324, %v1323
        %v1327 = vsel %vm1006, %v941, 0
        %v1330 = vsel %vm1006, %v1325, 0
        %1332 = vmatpush.bf16.xpose.msra.mxu0 0
        %1333 = vmatpush.bf16.xpose.msra.mxu0 0
        %1334 = vmatpush.bf16.xpose.msra.mxu0 0
        %1335 = vmatpush.bf16.xpose.msra.mxu0 0
        %1336 = vmatpush.bf16.xpose.msra.mxu0 0
        %1337 = vmatpush.bf16.xpose.msra.mxu0 0
        %1338 = vmatpush.bf16.xpose.msra.mxu0 0
        %1339 = vmatpush.bf16.xpose.msra.mxu0 %v1330
        %1340 = vmatmul.bf16.gmra.mxu0 %v1327
        %v1341 = vpop.f32.mrf.mxu0
        %v1342 = vadd.f32 %v1253, %v1341
        %v1343 = vpop.f32.mrf.mxu0
        %1344 = vdwg.mxu0
        %v1345 = vmul.f32 %v1276, 0.17677669
        %v1346 = vmul.f32 %v1298, 0.17677669
        %v1347 = vmul.f32 %v1320, 0.17677669
        %v1348 = vmul.f32 %v1342, 0.17677669
        %v1349 = vadd.f32 %v1345, %v1256
        %v1350 = vadd.f32 %v1346, %v1256
        %v1351 = vadd.f32 %v1347, %v1256
        %v1352 = vadd.f32 %v1348, %v1256
        %vm1353 = vcmask 130048
        %v1354 = vsel %vm1353, %v1349, -inf
        %1355 = vmax.xlane.f32.xlu0 %v1354
        %v1356 = vpop.xlane.xlu0 %1355
        %v1357 = vsel %vm1353, %v1350, -inf
        %1358 = vmax.xlane.f32.xlu0 %v1357
        %v1359 = vpop.xlane.xlu0 %1358
        %v1360 = vsel %vm1353, %v1351, -inf
        %1361 = vmax.xlane.f32.xlu0 %v1360
        %v1362 = vpop.xlane.xlu0 %1361
        %v1363 = vsel %vm1353, %v1352, -inf
        %1364 = vmax.xlane.f32.xlu0 %v1363
        %v1365 = vpop.xlane.xlu0 %1364
        %v1366 = vsub.f32 %v1349, %v1356
        %v1367 = vsub.f32 %v1350, %v1359
        %v1368 = vsub.f32 %v1351, %v1362
        %v1369 = vsub.f32 %v1352, %v1365
        %v1370 = vmul.f32 %v1366, 1.442695
        %v1371 = vpow.pop %v1370
        %v1372 = vmul.f32 %v1367, 1.442695
        %v1373 = vpow.pop %v1372
        %v1374 = vmul.f32 %v1368, 1.442695
        %v1375 = vpow.pop %v1374
        %v1376 = vmul.f32 %v1369, 1.442695
        %v1377 = vpow.pop %v1376
        %v1378 = vsel %vm1353, %v1371, 0.0
        %1379 = vadd.xlane.f32.xlu0 %v1378
        %v1380 = vpop.xlane.xlu0 %1379
        %v1381 = vsel %vm1353, %v1373, 0.0
        %1382 = vadd.xlane.f32.xlu0 %v1381
        %v1383 = vpop.xlane.xlu0 %1382
        %v1384 = vsel %vm1353, %v1375, 0.0
        %1385 = vadd.xlane.f32.xlu0 %v1384
        %v1386 = vpop.xlane.xlu0 %1385
        %v1387 = vsel %vm1353, %v1377, 0.0
        %1388 = vadd.xlane.f32.xlu0 %v1387
        %v1389 = vpop.xlane.xlu0 %1388
        %v1390 = vrcp.pop %v1380
        %v1391 = vrcp.pop %v1383
        %v1392 = vrcp.pop %v1386
        %v1393 = vrcp.pop %v1389
        %v1394 = vmul.f32 %v1371, %v1390
        %v1395 = vmul.f32 %v1373, %v1391
        %v1396 = vmul.f32 %v1375, %v1392
        %v1397 = vmul.f32 %v1377, %v1393
        %v1398 = vpack.c.bf16 %v1394, %v1394
        %v1399 = vpack.c.bf16 %v1395, %v1395
        %v1400 = vpack.c.bf16 %v1396, %v1396
        %v1401 = vpack.c.bf16 %v1397, %v1397
        %v1402 = vunpack.c.l.b16 %v971
        %v1403 = vunpack.c.l.b16 %v972
        %v1404 = vpack.c.b16 %v1403, %v1402
        %v1407 = vsel %vm1353, %v1398, 0
        %1409 = vmatpush.bf16.msra.mxu0 0
        %1410 = vmatpush.bf16.msra.mxu0 0
        %1411 = vmatpush.bf16.msra.mxu0 0
        %1412 = vmatpush.bf16.msra.mxu0 0
        %1413 = vmatpush.bf16.msra.mxu0 0
        %1414 = vmatpush.bf16.msra.mxu0 0
        %1415 = vmatpush.bf16.msra.mxu0 0
        %1416 = vmatpush.bf16.msra.mxu0 %v1404
        %1417 = vmatmul.bf16.gmra.mxu0 %v1407
        %v1418 = vpop.f32.mrf.mxu0
        %v1419 = vadd.f32 0.0, %v1418
        %v1420 = vpop.f32.mrf.mxu0
        %1421 = vdwg.mxu0
        %v1422 = vunpack.c.l.b16 %v976
        %v1423 = vunpack.c.l.b16 %v978
        %v1424 = vpack.c.b16 %v1423, %v1422
        %v1427 = vsel %vm1353, %v1399, 0
        %1429 = vmatpush.bf16.msra.mxu0 0
        %1430 = vmatpush.bf16.msra.mxu0 0
        %1431 = vmatpush.bf16.msra.mxu0 0
        %1432 = vmatpush.bf16.msra.mxu0 0
        %1433 = vmatpush.bf16.msra.mxu0 0
        %1434 = vmatpush.bf16.msra.mxu0 0
        %1435 = vmatpush.bf16.msra.mxu0 0
        %1436 = vmatpush.bf16.msra.mxu0 %v1424
        %1437 = vmatmul.bf16.gmra.mxu0 %v1427
        %v1438 = vpop.f32.mrf.mxu0
        %v1439 = vadd.f32 0.0, %v1438
        %v1440 = vpop.f32.mrf.mxu0
        %1441 = vdwg.mxu0
        %v1442 = vunpack.c.l.b16 %v980
        %v1443 = vunpack.c.l.b16 %v982
        %v1444 = vpack.c.b16 %v1443, %v1442
        %v1447 = vsel %vm1353, %v1400, 0
        %1449 = vmatpush.bf16.msra.mxu0 0
        %1450 = vmatpush.bf16.msra.mxu0 0
        %1451 = vmatpush.bf16.msra.mxu0 0
        %1452 = vmatpush.bf16.msra.mxu0 0
        %1453 = vmatpush.bf16.msra.mxu0 0
        %1454 = vmatpush.bf16.msra.mxu0 0
        %1455 = vmatpush.bf16.msra.mxu0 0
        %1456 = vmatpush.bf16.msra.mxu0 %v1444
        %1457 = vmatmul.bf16.gmra.mxu0 %v1447
        %v1458 = vpop.f32.mrf.mxu0
        %v1459 = vadd.f32 0.0, %v1458
        %v1460 = vpop.f32.mrf.mxu0
        %1461 = vdwg.mxu0
        %v1462 = vunpack.c.l.b16 %v984
        %v1463 = vunpack.c.l.b16 %v986
        %v1464 = vpack.c.b16 %v1463, %v1462
        %v1467 = vsel %vm1353, %v1401, 0
        %1469 = vmatpush.bf16.msra.mxu0 0
        %1470 = vmatpush.bf16.msra.mxu0 0
        %1471 = vmatpush.bf16.msra.mxu0 0
        %1472 = vmatpush.bf16.msra.mxu0 0
        %1473 = vmatpush.bf16.msra.mxu0 0
        %1474 = vmatpush.bf16.msra.mxu0 0
        %1475 = vmatpush.bf16.msra.mxu0 0
        %1476 = vmatpush.bf16.msra.mxu0 %v1464
        %1477 = vmatmul.bf16.gmra.mxu0 %v1467
        %v1478 = vpop.f32.mrf.mxu0
        %v1479 = vadd.f32 0.0, %v1478
        %v1480 = vpop.f32.mrf.mxu0
        %1481 = vdwg.mxu0
        %1483 = vrot.lane.b32.xlu0 %v1439, 32
        %v1484 = vpop.permute.xlu0 %1483
        %1487 = vrot.lane.b32.xlu0 %v1459, 64
        %v1488 = vpop.permute.xlu0 %1487
        %1491 = vrot.lane.b32.xlu0 %v1479, 96
        %v1492 = vpop.permute.xlu0 %1491
        %v1494 = vsel %vm1006, %v1419, %v1484
        %vm1495 = vcmask 523264
        %v1496 = vsel %vm1495, %v1494, %v1488
        %vm1497 = vcmask 785408
        %v1498 = vsel %vm1497, %v1496, %v1492
        %v1499 = vpack.c.bf16 %v1498, %v1498
        %v1500 = vld [vmem:[#allocation2] sm:$0xf]
        %v1501 = vld [vmem:[#allocation2 + $0x4] sm:$0xf]
        %v1502 = vld [vmem:[#allocation2 + $0x8] sm:$0xf]
        %v1503 = vld [vmem:[#allocation2 + $0xc] sm:$0xf]
        %v1504 = vld [vmem:[#allocation2 + $0x10] sm:$0xf]
        %v1505 = vld [vmem:[#allocation2 + $0x14] sm:$0xf]
        %v1506 = vld [vmem:[#allocation2 + $0x18] sm:$0xf]
        %v1507 = vld [vmem:[#allocation2 + $0x1c] sm:$0xf]
        %v1508 = vld [vmem:[#allocation2 + $0x20] sm:$0xf]
        %v1509 = vld [vmem:[#allocation2 + $0x24] sm:$0xf]
        %v1510 = vld [vmem:[#allocation2 + $0x28] sm:$0xf]
        %v1511 = vld [vmem:[#allocation2 + $0x2c] sm:$0xf]
        %v1512 = vld [vmem:[#allocation2 + $0x30] sm:$0xf]
        %v1513 = vld [vmem:[#allocation2 + $0x34] sm:$0xf]
        %v1514 = vld [vmem:[#allocation2 + $0x38] sm:$0xf]
        %v1515 = vld [vmem:[#allocation2 + $0x3c] sm:$0xf]
        %v1532 = vunpack.c.l.b16 %v1500
        %v1533 = vunpack.c.l.b16 %v1501
        %v1534 = vunpack.c.l.b16 %v1502
        %v1535 = vunpack.c.l.b16 %v1503
        %v1536 = vunpack.c.l.b16 %v1504
        %v1537 = vunpack.c.l.b16 %v1505
        %v1538 = vunpack.c.l.b16 %v1506
        %v1539 = vunpack.c.l.b16 %v1507
        %v1540 = vunpack.c.l.b16 %v1508
        %v1541 = vunpack.c.l.b16 %v1509
        %v1542 = vunpack.c.l.b16 %v1510
        %v1543 = vunpack.c.l.b16 %v1511
        %v1544 = vunpack.c.l.b16 %v1512
        %v1545 = vunpack.c.l.b16 %v1513
        %v1546 = vunpack.c.l.b16 %v1514
        %v1547 = vunpack.c.l.b16 %v1515
        %v1548 = vpack.c.b16 %v1533, %v1532
        %v1549 = vpack.c.b16 %v1535, %v1534
        %v1550 = vpack.c.b16 %v1537, %v1536
        %v1551 = vpack.c.b16 %v1539, %v1538
        %v1552 = vpack.c.b16 %v1541, %v1540
        %v1553 = vpack.c.b16 %v1543, %v1542
        %v1554 = vpack.c.b16 %v1545, %v1544
        %v1555 = vpack.c.b16 %v1547, %v1546
        %1564 = vmatpush.bf16.msra.mxu0 %v1555
        %1565 = vmatpush.bf16.msra.mxu0 %v1554
        %1566 = vmatpush.bf16.msra.mxu0 %v1553
        %1567 = vmatpush.bf16.msra.mxu0 %v1552
        %1568 = vmatpush.bf16.msra.mxu0 %v1551
        %1569 = vmatpush.bf16.msra.mxu0 %v1550
        %1570 = vmatpush.bf16.msra.mxu0 %v1549
        %1571 = vmatpush.bf16.msra.mxu0 %v1548
        %1572 = vmatmul.bf16.gmra.mxu0 %v1499
        %v1573 = vpop.f32.mrf.mxu0
        %v1574 = vadd.f32 0.0, %v1573
        %v1575 = vpop.f32.mrf.mxu0
        %1576 = vdwg.mxu0
        %v1577 = vadd.f32 %v585, %v1574
        %v1578 = vld [vmem:[%s14] sm:$0x1]
        %v1579 = vld [vmem:[%s15] sm:$0x1]
        %1580 = vadd.xlane.f32.xlu0 %v1577
        %v1581 = vpop.xlane.xlu0 %1580
        %v1582 = vmul.f32 %v1581, %v601
        %v1583 = vsub.f32 %v1577, %v1582
        %v1584 = vmul.f32 %v1583, %v1583
        %1585 = vadd.xlane.f32.xlu0 %v1584
        %v1586 = vpop.xlane.xlu0 %1585
        %v1587 = vmul.f32 %v1586, %v601
        %v1588 = vadd.f32 %v1587, 0.001
        %v1589 = vrsqrt.pop %v1588
        %v1590 = vmul.f32 %v1589, %v1588
        %v1591 = vmul.f32 %v1590, %v1589
        %v1592 = vmul.f32 0.5, %v1591
        %v1593 = vsub.f32 1.5, %v1592
        %v1594 = vmul.f32 %v1589, %v1593
        %vm1595 = vweird.f32 %v1588
        %vm1596 = vweird.f32 %v1589
        %vm1597 = vmor %vm1595, %vm1596
        %v1598 = vsel %vm1597, %v1589, %v1594
        %v1599 = vmul.f32 %v1583, %v1598
        %v1601 = vperm.slane %v1578, 0
        %v1603 = vmul.f32 %v1599, %v1601
        %v1605 = vperm.slane %v1579, 0
        %v1607 = vadd.f32 %v1603, %v1605
        %v1608 = vpack.c.bf16 %v1607, %v1607
        %v1609 = vld [vmem:[#allocation4] sm:$0xff]
        %v1610 = vld [vmem:[#allocation4 + $0x8] sm:$0xff]
        %v1611 = vld [vmem:[#allocation4 + $0x10] sm:$0xff]
        %v1612 = vld [vmem:[#allocation4 + $0x18] sm:$0xff]
        %v1613 = vld [vmem:[#allocation4 + $0x20] sm:$0xff]
        %v1614 = vld [vmem:[#allocation4 + $0x28] sm:$0xff]
        %v1615 = vld [vmem:[#allocation4 + $0x30] sm:$0xff]
        %v1616 = vld [vmem:[#allocation4 + $0x38] sm:$0xff]
        %v1617 = vld [vmem:[#allocation4 + $0x40] sm:$0xff]
        %v1618 = vld [vmem:[#allocation4 + $0x48] sm:$0xff]
        %v1619 = vld [vmem:[#allocation4 + $0x50] sm:$0xff]
        %v1620 = vld [vmem:[#allocation4 + $0x58] sm:$0xff]
        %v1621 = vld [vmem:[#allocation4 + $0x60] sm:$0xff]
        %v1622 = vld [vmem:[#allocation4 + $0x68] sm:$0xff]
        %v1623 = vld [vmem:[#allocation4 + $0x70] sm:$0xff]
        %v1624 = vld [vmem:[#allocation4 + $0x78] sm:$0xff]
        %v1625 = vld [vmem:[%s11] sm:$0x3]
        %v1627 = vperm.slane %v1625, 0
        %v1628 = vperm.slane %v1625, 1
        %v1647 = vunpack.c.l.b16 %v1609
        %v1648 = vunpack.c.h.b16 %v1609
        %v1649 = vunpack.c.l.b16 %v1610
        %v1650 = vunpack.c.h.b16 %v1610
        %v1651 = vunpack.c.l.b16 %v1611
        %v1652 = vunpack.c.h.b16 %v1611
        %v1653 = vunpack.c.l.b16 %v1612
        %v1654 = vunpack.c.h.b16 %v1612
        %v1655 = vunpack.c.l.b16 %v1613
        %v1656 = vunpack.c.h.b16 %v1613
        %v1657 = vunpack.c.l.b16 %v1614
        %v1658 = vunpack.c.h.b16 %v1614
        %v1659 = vunpack.c.l.b16 %v1615
        %v1660 = vunpack.c.h.b16 %v1615
        %v1661 = vunpack.c.l.b16 %v1616
        %v1662 = vunpack.c.h.b16 %v1616
        %v1663 = vunpack.c.l.b16 %v1617
        %v1664 = vunpack.c.h.b16 %v1617
        %v1665 = vunpack.c.l.b16 %v1618
        %v1666 = vunpack.c.h.b16 %v1618
        %v1667 = vunpack.c.l.b16 %v1619
        %v1668 = vunpack.c.h.b16 %v1619
        %v1669 = vunpack.c.l.b16 %v1620
        %v1670 = vunpack.c.h.b16 %v1620
        %v1671 = vunpack.c.l.b16 %v1621
        %v1672 = vunpack.c.h.b16 %v1621
        %v1673 = vunpack.c.l.b16 %v1622
        %v1674 = vunpack.c.h.b16 %v1622
        %v1675 = vunpack.c.l.b16 %v1623
        %v1676 = vunpack.c.h.b16 %v1623
        %v1677 = vunpack.c.l.b16 %v1624
        %v1678 = vunpack.c.h.b16 %v1624
        %v1679 = vpack.c.b16 %v1649, %v1647
        %v1680 = vpack.c.b16 %v1650, %v1648
        %v1681 = vpack.c.b16 %v1653, %v1651
        %v1682 = vpack.c.b16 %v1654, %v1652
        %v1683 = vpack.c.b16 %v1657, %v1655
        %v1684 = vpack.c.b16 %v1658, %v1656
        %v1685 = vpack.c.b16 %v1661, %v1659
        %v1686 = vpack.c.b16 %v1662, %v1660
        %v1687 = vpack.c.b16 %v1665, %v1663
        %v1688 = vpack.c.b16 %v1666, %v1664
        %v1689 = vpack.c.b16 %v1669, %v1667
        %v1690 = vpack.c.b16 %v1670, %v1668
        %v1691 = vpack.c.b16 %v1673, %v1671
        %v1692 = vpack.c.b16 %v1674, %v1672
        %v1693 = vpack.c.b16 %v1677, %v1675
        %v1694 = vpack.c.b16 %v1678, %v1676
        %1711 = vmatpush.bf16.msra.mxu0 %v1693
        %1712 = vmatpush.bf16.msra.mxu0 %v1691
        %1713 = vmatpush.bf16.msra.mxu0 %v1689
        %1714 = vmatpush.bf16.msra.mxu0 %v1687
        %1715 = vmatpush.bf16.msra.mxu0 %v1685
        %1716 = vmatpush.bf16.msra.mxu0 %v1683
        %1717 = vmatpush.bf16.msra.mxu0 %v1681
        %1718 = vmatpush.bf16.msra.mxu0 %v1679
        %1719 = vmatmul.bf16.gmra.mxu0 %v1608
        %v1720 = vpop.f32.mrf.mxu0
        %v1721 = vadd.f32 %v1627, %v1720
        %v1722 = vpop.f32.mrf.mxu0
        %1723 = vdwg.mxu0
        %1724 = vmatpush.bf16.msra.mxu0 %v1694
        %1725 = vmatpush.bf16.msra.mxu0 %v1692
        %1726 = vmatpush.bf16.msra.mxu0 %v1690
        %1727 = vmatpush.bf16.msra.mxu0 %v1688
        %1728 = vmatpush.bf16.msra.mxu0 %v1686
        %1729 = vmatpush.bf16.msra.mxu0 %v1684
        %1730 = vmatpush.bf16.msra.mxu0 %v1682
        %1731 = vmatpush.bf16.msra.mxu0 %v1680
        %1732 = vmatmul.bf16.gmra.mxu0 %v1608
        %v1733 = vpop.f32.mrf.mxu0
        %v1734 = vadd.f32 %v1628, %v1733
        %v1735 = vpop.f32.mrf.mxu0
        %1736 = vdwg.mxu0
        %v1737 = vmax.f32 %v1721, 0.0
        %v1738 = vmax.f32 %v1734, 0.0
        %v1739 = vpack.c.bf16 %v1737, %v1737
        %v1740 = vpack.c.bf16 %v1738, %v1738
        %v1741 = vld [vmem:[#allocation6] sm:$0xf]
        %v1742 = vld [vmem:[#allocation6 + $0x4] sm:$0xf]
        %v1743 = vld [vmem:[#allocation6 + $0x8] sm:$0xf]
        %v1744 = vld [vmem:[#allocation6 + $0xc] sm:$0xf]
        %v1745 = vld [vmem:[#allocation6 + $0x10] sm:$0xf]
        %v1746 = vld [vmem:[#allocation6 + $0x14] sm:$0xf]
        %v1747 = vld [vmem:[#allocation6 + $0x18] sm:$0xf]
        %v1748 = vld [vmem:[#allocation6 + $0x1c] sm:$0xf]
        %v1749 = vld [vmem:[#allocation6 + $0x20] sm:$0xf]
        %v1750 = vld [vmem:[#allocation6 + $0x24] sm:$0xf]
        %v1751 = vld [vmem:[#allocation6 + $0x28] sm:$0xf]
        %v1752 = vld [vmem:[#allocation6 + $0x2c] sm:$0xf]
        %v1753 = vld [vmem:[#allocation6 + $0x30] sm:$0xf]
        %v1754 = vld [vmem:[#allocation6 + $0x34] sm:$0xf]
        %v1755 = vld [vmem:[#allocation6 + $0x38] sm:$0xf]
        %v1756 = vld [vmem:[#allocation6 + $0x3c] sm:$0xf]
        %v1757 = vld [vmem:[#allocation6 + $0x40] sm:$0xf]
        %v1758 = vld [vmem:[#allocation6 + $0x44] sm:$0xf]
        %v1759 = vld [vmem:[#allocation6 + $0x48] sm:$0xf]
        %v1760 = vld [vmem:[#allocation6 + $0x4c] sm:$0xf]
        %v1761 = vld [vmem:[#allocation6 + $0x50] sm:$0xf]
        %v1762 = vld [vmem:[#allocation6 + $0x54] sm:$0xf]
        %v1763 = vld [vmem:[#allocation6 + $0x58] sm:$0xf]
        %v1764 = vld [vmem:[#allocation6 + $0x5c] sm:$0xf]
        %v1765 = vld [vmem:[#allocation6 + $0x60] sm:$0xf]
        %v1766 = vld [vmem:[#allocation6 + $0x64] sm:$0xf]
        %v1767 = vld [vmem:[#allocation6 + $0x68] sm:$0xf]
        %v1768 = vld [vmem:[#allocation6 + $0x6c] sm:$0xf]
        %v1769 = vld [vmem:[#allocation6 + $0x70] sm:$0xf]
        %v1770 = vld [vmem:[#allocation6 + $0x74] sm:$0xf]
        %v1771 = vld [vmem:[#allocation6 + $0x78] sm:$0xf]
        %v1772 = vld [vmem:[#allocation6 + $0x7c] sm:$0xf]
        %v1773 = vld [vmem:[%s13] sm:$0x1]
        %v1775 = vperm.slane %v1773, 0
        %v1809 = vunpack.c.l.b16 %v1741
        %v1810 = vunpack.c.l.b16 %v1742
        %v1811 = vunpack.c.l.b16 %v1743
        %v1812 = vunpack.c.l.b16 %v1744
        %v1813 = vunpack.c.l.b16 %v1745
        %v1814 = vunpack.c.l.b16 %v1746
        %v1815 = vunpack.c.l.b16 %v1747
        %v1816 = vunpack.c.l.b16 %v1748
        %v1817 = vunpack.c.l.b16 %v1749
        %v1818 = vunpack.c.l.b16 %v1750
        %v1819 = vunpack.c.l.b16 %v1751
        %v1820 = vunpack.c.l.b16 %v1752
        %v1821 = vunpack.c.l.b16 %v1753
        %v1822 = vunpack.c.l.b16 %v1754
        %v1823 = vunpack.c.l.b16 %v1755
        %v1824 = vunpack.c.l.b16 %v1756
        %v1825 = vunpack.c.l.b16 %v1757
        %v1826 = vunpack.c.l.b16 %v1758
        %v1827 = vunpack.c.l.b16 %v1759
        %v1828 = vunpack.c.l.b16 %v1760
        %v1829 = vunpack.c.l.b16 %v1761
        %v1830 = vunpack.c.l.b16 %v1762
        %v1831 = vunpack.c.l.b16 %v1763
        %v1832 = vunpack.c.l.b16 %v1764
        %v1833 = vunpack.c.l.b16 %v1765
        %v1834 = vunpack.c.l.b16 %v1766
        %v1835 = vunpack.c.l.b16 %v1767
        %v1836 = vunpack.c.l.b16 %v1768
        %v1837 = vunpack.c.l.b16 %v1769
        %v1838 = vunpack.c.l.b16 %v1770
        %v1839 = vunpack.c.l.b16 %v1771
        %v1840 = vunpack.c.l.b16 %v1772
        %v1841 = vpack.c.b16 %v1810, %v1809
        %v1842 = vpack.c.b16 %v1812, %v1811
        %v1843 = vpack.c.b16 %v1814, %v1813
        %v1844 = vpack.c.b16 %v1816, %v1815
        %v1845 = vpack.c.b16 %v1818, %v1817
        %v1846 = vpack.c.b16 %v1820, %v1819
        %v1847 = vpack.c.b16 %v1822, %v1821
        %v1848 = vpack.c.b16 %v1824, %v1823
        %v1849 = vpack.c.b16 %v1826, %v1825
        %v1850 = vpack.c.b16 %v1828, %v1827
        %v1851 = vpack.c.b16 %v1830, %v1829
        %v1852 = vpack.c.b16 %v1832, %v1831
        %v1853 = vpack.c.b16 %v1834, %v1833
        %v1854 = vpack.c.b16 %v1836, %v1835
        %v1855 = vpack.c.b16 %v1838, %v1837
        %v1856 = vpack.c.b16 %v1840, %v1839
        %1873 = vmatpush.bf16.msra.mxu0 %v1848
        %1874 = vmatpush.bf16.msra.mxu0 %v1847
        %1875 = vmatpush.bf16.msra.mxu0 %v1846
        %1876 = vmatpush.bf16.msra.mxu0 %v1845
        %1877 = vmatpush.bf16.msra.mxu0 %v1844
        %1878 = vmatpush.bf16.msra.mxu0 %v1843
        %1879 = vmatpush.bf16.msra.mxu0 %v1842
        %1880 = vmatpush.bf16.msra.mxu0 %v1841
        %1881 = vmatmul.bf16.gmra.mxu0 %v1739
        %v1882 = vpop.f32.mrf.mxu0
        %v1883 = vadd.f32 %v1775, %v1882
        %v1884 = vpop.f32.mrf.mxu0
        %1885 = vdwg.mxu0
        %1886 = vmatpush.bf16.msra.mxu0 %v1856
        %1887 = vmatpush.bf16.msra.mxu0 %v1855
        %1888 = vmatpush.bf16.msra.mxu0 %v1854
        %1889 = vmatpush.bf16.msra.mxu0 %v1853
        %1890 = vmatpush.bf16.msra.mxu0 %v1852
        %1891 = vmatpush.bf16.msra.mxu0 %v1851
        %1892 = vmatpush.bf16.msra.mxu0 %v1850
        %1893 = vmatpush.bf16.msra.mxu0 %v1849
        %1894 = vmatmul.bf16.gmra.mxu0 %v1740
        %v1895 = vpop.f32.mrf.mxu0
        %v1896 = vadd.f32 %v1883, %v1895
        %v1897 = vpop.f32.mrf.mxu0
        %1898 = vdwg.mxu0
        %v1899 = vadd.f32 %v1577, %v1896
        %1900 = vst [vmem:[%s583] sm:$0xff] %v1899
        %p1901 = scmp.lt.s32.totalorder %s29, 1
        %s1902 = scalar_select %p1901, %s29, 1
        %s1903 = smul.addr %s1902, 8
        %s1904 = scalar_lea.vmem %s16, %s1903
        // Predicated region
        $region97: #{model_forward.3} parent=83 // pred_check
          %p1905 = pneg %p393
        $region98: #{model_forward.3} parent=83 // pred_check_branch
          %1907 = sbr.rel (%p1905) target = $region100
        $region99: #{model_forward.3} parent=83 // pred_region
          _
        $region100: #{model_forward.3} parent=83 // pred_fallthru
          _
      $region84: #{model_forward.3} parent=5 // pred_fallthru
        _
      %p1908 = scmp.le.s32.totalorder 2, %s24
      // Predicated region
      $region101: #{model_forward.3} parent=5 // pred_check
        %p1909 = pneg %p1908
      $region102: #{model_forward.3} parent=5 // pred_check_branch
        %1911 = sbr.rel (%p1909) target = $region104
      $region103: #{model_forward.3} parent=5 // pred_region
        %s1912 = ssub.s32 %s24, 2
        // Predicated region
        $region105: #{model_forward.3} parent=103 // pred_check
          %p1913 = pneg %p399
        $region106: #{model_forward.3} parent=103 // pred_check_branch
          %1915 = sbr.rel (%p1913) target = $region108
        $region107: #{model_forward.3} parent=103 // pred_region
          %p1916 = scmp.lt.s32.totalorder %s30, 1
          %s1917 = scalar_select %p1916, %s30, 1
          %s1918 = smul.addr %s1917, 8
          %s1919 = scalar_lea.vmem %s16, %s1918
        $region108: #{model_forward.3} parent=103 // pred_fallthru
          _
      $region104: #{model_forward.3} parent=5 // pred_fallthru
        _
    $region6: #{model_forward.3} parent=1 // loop_footer
      %s28 = sadd.s32 1, %s24
    $region7: #{model_forward.3} parent=1 // loop_footer_branch
      %23 = sbr.rel target = $region3
    $region8: #{model_forward.3} parent=1 // loop_exit
      _
    %1920 = vsyncpa [#allocation3], 1
    %s1921 = scalar_lea.sflag [#allocation3], 1
    %1922 = vsyncpa %s1921, 1
    %1923 = vsyncpa [#allocation5], 1

</llo_original>
